<compile_context>
chip_gen: v6e
topology: v6e:2x2x1
jax: 0.10.0
libtpu: 0.0.40
codegen_flags: <defaults>
</compile_context>

<pallas_src>
import functools

import jax
import jax.numpy as jnp
from jax.experimental import pallas as pl
from jax.experimental.pallas import tpu as pltpu

# --- configuration mirroring conf in degradation_transfer ------------------
G_STRUCTURE = [7, 5, 3, 1, 1, 1]   # conf.G_structure
G_CHAN = 4                         # conf.G_chan
SCALE_FACTOR = 1.0                 # stride = int(1 / scale_factor) = 1
G_KERNEL_SIZE = 13                 # conf.G_kernel_size == sum(k-1) + 1
INPUT_CROP = 20                    # conf.input_crop_size (small spatial size)
LANE = 128                         # TPU lane width / max batch block


def _composed_conv_kernel(ksize, wf_ref, x_ref, out_ref):
    """Single-channel valid cross-correlation with the composed filter.

    wf_ref : (ksize*ksize,) f32 in SMEM (row-major taps, residual folded in)
    x_ref  : (H, W, BB)      f32 in VMEM (batch on lanes, W on sublanes)
    out_ref: (Ho_blk, Wo, BB) f32 in VMEM (one output-row strip)
    """
    ho_blk, wo, _ = out_ref.shape
    hs = ho_blk + ksize - 1
    h0 = pl.program_id(1) * ho_blk                 # output-row strip offset
    xs = x_ref[pl.ds(h0, hs), :, :]                # (hs, W, BB); leading-dim slice

    # Hoist the W (sublane) shifts out of the tap loops: one shifted copy per
    # filter column j (ksize relayouts total instead of one per tap).
    cols = [xs[:, j:j + wo, :] for j in range(ksize)]

    acc = None
    for i in range(ksize):
        for j in range(ksize):
            w = wf_ref[i * ksize + j]              # SMEM scalar read (free scalar slot)
            patch = cols[j][i:i + ho_blk]          # leading-dim static slice: free
            term = patch * w                       # lane-dense scalar-broadcast VPU MAC
            acc = term if acc is None else acc + term
    out_ref[...] = acc.astype(out_ref.dtype)


def _compose_filter(weights, kernel_size):
    """Fold the whole bias/activation-free conv stack into one (k,k) filter.

    Exact because the Generator has no nonlinearity or bias between layers
    (pure linear stack, stride 1); a future module change that adds an
    activation would invalidate this and must fall back to per-layer convs.
    The effective filter is recovered by pushing an impulse basis through the
    stack (trace-time, host-side, tiny).  The residual add is folded by adding
    1.0 to the center tap.
    """
    k = kernel_size
    eye = jnp.eye(k * k, dtype=jnp.float32).reshape(k * k, 1, k, k)  # NCHW impulses
    out = eye
    for wt in weights:
        w_oihw = jnp.transpose(wt, (3, 2, 0, 1))
        out = jax.lax.conv_general_dilated(
            out, w_oihw, window_strides=(1, 1), padding="VALID",
            dimension_numbers=("NCHW", "OIHW", "NCHW"),
            precision=jax.lax.Precision.HIGHEST)
    wf = out.reshape(k, k)                          # response to impulse at (i, j)
    c = (k - 1) // 2
    return wf.at[c, c].add(1.0)                     # fold the residual add


@functools.partial(jax.jit, static_argnames=("kernel_size",))
def generator_forward(x_nchw, weights, kernel_size):
    """x_nchw: (B, 1, H, W) float32; weights: list of HWIO conv filters."""
    b, c_in, h, w = x_nchw.shape
    assert c_in == 1
    shave = sum(int(wt.shape[0]) - 1 for wt in weights)
    assert shave == kernel_size - 1, (
        "residual crop and conv output shapes must match (stride must be 1)")
    ho, wo = h - shave, w - shave

    wf_flat = _compose_filter(weights, kernel_size).reshape(-1)

    # (B, 1, H, W) -> (H, W, B): put batch on the 128-wide lane axis.
    # (Kept for interface fidelity; if the producer/consumer can carry (H,W,B)
    # these HBM relayouts should be dropped.)
    x_hwb = jnp.transpose(x_nchw[:, 0], (1, 2, 0)).astype(jnp.float32)

    # lane-dense batch blocks; pad batch to a multiple of the block for B > 128
    if b > LANE:
        bb = LANE
        n_blk = -(-b // bb)
        b_pad = n_blk * bb
        if b_pad != b:
            x_hwb = jnp.pad(x_hwb, ((0, 0), (0, 0), (0, b_pad - b)))
    else:
        bb, n_blk, b_pad = b, 1, b

    # Single-batch-block case: split output rows into 2 "parallel" strips so
    # both TensorCores are used on v7x (near-free on v5e/v6e).
    n_strips = 2 if (n_blk == 1 and ho >= 2 and ho % 2 == 0) else 1
    ho_blk = ho // n_strips

    out = pl.pallas_call(
        functools.partial(_composed_conv_kernel, kernel_size),
        out_shape=jax.ShapeDtypeStruct((ho, wo, b_pad), jnp.float32),
        grid=(n_blk, n_strips),
        in_specs=[
            pl.BlockSpec(memory_space=pltpu.MemorySpace.SMEM),        # composed filter
            pl.BlockSpec((h, w, bb), lambda bi, si: (0, 0, bi)),      # input block
        ],
        out_specs=pl.BlockSpec((ho_blk, wo, bb), lambda bi, si: (si, 0, bi)),
        compiler_params=pltpu.CompilerParams(
            dimension_semantics=("parallel", "parallel")),
    )(wf_flat, x_hwb)

    out = out[:, :, :b]                               # drop batch padding
    return jnp.transpose(out, (2, 0, 1))[:, None]     # -> (B, 1, Ho, Wo)


def init_weights(key, struct=G_STRUCTURE, chan=G_CHAN):
    """Deterministic synthetic weights, HWIO layout (kh, kw, Cin, Cout)."""
    shapes = []
    cin = 1
    for idx, k in enumerate(struct):
        cout = chan if idx < len(struct) - 1 else 1
        shapes.append((k, k, cin, cout))
        cin = cout
    keys = jax.random.split(key, len(shapes))
    return [0.1 * jax.random.normal(kk, s, dtype=jnp.float32)
            for kk, s in zip(keys, shapes)]


def reference_forward(x_nchw, weights, kernel_size):
    """Plain-JAX layer-by-layer reference (matches the PyTorch forward)."""
    out = x_nchw
    for wt in weights:
        w_oihw = jnp.transpose(wt, (3, 2, 0, 1))
        out = jax.lax.conv_general_dilated(
            out, w_oihw, window_strides=(1, 1), padding="VALID",
            dimension_numbers=("NCHW", "OIHW", "NCHW"),
            precision=jax.lax.Precision.HIGHEST)
    p = (kernel_size - 1) // 2
    h, w = x_nchw.shape[2], x_nchw.shape[3]
    res = x_nchw[:, :, p:p + h - kernel_size + 1, p:p + w - kernel_size + 1]
    return out + res


if __name__ == "__main__":
    key = jax.random.PRNGKey(0)
    kx, kw = jax.random.split(key)

    # small deterministic example input, PyTorch NCHW convention
    x = jax.random.normal(kx, (2, 1, INPUT_CROP, INPUT_CROP), dtype=jnp.float32)
    weights = init_weights(kw)

    out = generator_forward(x, weights, kernel_size=G_KERNEL_SIZE)
    out = jax.block_until_ready(out)

    ref = reference_forward(x, weights, G_KERNEL_SIZE)
    assert out.shape == ref.shape == (2, 1, INPUT_CROP - G_KERNEL_SIZE + 1,
                                      INPUT_CROP - G_KERNEL_SIZE + 1)
    max_err = float(jnp.max(jnp.abs(out - ref)))
    assert max_err < 1e-3, f"mismatch vs reference: {max_err}"

    print("KERNEL_OK")
</pallas_src>

<mosaic_0001>
module attributes {stable_mosaic.version = 11 : i64} {
  func.func @_composed_conv_kernel(%arg0: i32, %arg1: i32, %arg2: memref<169xf32, #tpu.memory_space<smem>>, %arg3: memref<20x20x2xf32, #tpu.memory_space<vmem>>, %arg4: memref<4x8x2xf32, #tpu.memory_space<vmem>>) attributes {dimension_semantics = [#tpu.dimension_semantics<parallel>, #tpu.dimension_semantics<parallel>], iteration_bounds = array<i64: 1, 2>, scalar_prefetch = 0 : i64, scratch_operands = 0 : i64, tpu.core_type = #tpu.core_type<tc>, window_params = [{transform_indices = @transform_0, window_bounds = array<i64: 169>}, {transform_indices = @transform_1, window_bounds = array<i64: 20, 20, 2>}, {transform_indices = @transform_2, window_bounds = array<i64: 4, 8, 2>}]} {
    %c4_i32 = arith.constant 4 : i32
    %0 = arith.muli %arg1, %c4_i32 : i32
    %1 = arith.index_cast %0 : i32 to index
    %c0 = arith.constant 0 : index
    %c0_0 = arith.constant 0 : index
    %2 = vector.load %arg3[%1, %c0, %c0_0] : memref<20x20x2xf32, #tpu.memory_space<vmem>>, vector<16x20x2xf32>
    %3 = vector.extract_strided_slice %2 {offsets = [0, 0, 0], sizes = [16, 8, 2], strides = [1, 1, 1]} : vector<16x20x2xf32> to vector<16x8x2xf32>
    %4 = vector.extract_strided_slice %2 {offsets = [0, 1, 0], sizes = [16, 8, 2], strides = [1, 1, 1]} : vector<16x20x2xf32> to vector<16x8x2xf32>
    %5 = vector.extract_strided_slice %2 {offsets = [0, 2, 0], sizes = [16, 8, 2], strides = [1, 1, 1]} : vector<16x20x2xf32> to vector<16x8x2xf32>
    %6 = vector.extract_strided_slice %2 {offsets = [0, 3, 0], sizes = [16, 8, 2], strides = [1, 1, 1]} : vector<16x20x2xf32> to vector<16x8x2xf32>
    %7 = vector.extract_strided_slice %2 {offsets = [0, 4, 0], sizes = [16, 8, 2], strides = [1, 1, 1]} : vector<16x20x2xf32> to vector<16x8x2xf32>
    %8 = vector.extract_strided_slice %2 {offsets = [0, 5, 0], sizes = [16, 8, 2], strides = [1, 1, 1]} : vector<16x20x2xf32> to vector<16x8x2xf32>
    %9 = vector.extract_strided_slice %2 {offsets = [0, 6, 0], sizes = [16, 8, 2], strides = [1, 1, 1]} : vector<16x20x2xf32> to vector<16x8x2xf32>
    %10 = vector.extract_strided_slice %2 {offsets = [0, 7, 0], sizes = [16, 8, 2], strides = [1, 1, 1]} : vector<16x20x2xf32> to vector<16x8x2xf32>
    %11 = vector.extract_strided_slice %2 {offsets = [0, 8, 0], sizes = [16, 8, 2], strides = [1, 1, 1]} : vector<16x20x2xf32> to vector<16x8x2xf32>
    %12 = vector.extract_strided_slice %2 {offsets = [0, 9, 0], sizes = [16, 8, 2], strides = [1, 1, 1]} : vector<16x20x2xf32> to vector<16x8x2xf32>
    %13 = vector.extract_strided_slice %2 {offsets = [0, 10, 0], sizes = [16, 8, 2], strides = [1, 1, 1]} : vector<16x20x2xf32> to vector<16x8x2xf32>
    %14 = vector.extract_strided_slice %2 {offsets = [0, 11, 0], sizes = [16, 8, 2], strides = [1, 1, 1]} : vector<16x20x2xf32> to vector<16x8x2xf32>
    %15 = vector.extract_strided_slice %2 {offsets = [0, 12, 0], sizes = [16, 8, 2], strides = [1, 1, 1]} : vector<16x20x2xf32> to vector<16x8x2xf32>
    %c0_1 = arith.constant 0 : index
    %16 = memref.load %arg2[%c0_1] : memref<169xf32, #tpu.memory_space<smem>>
    %17 = vector.extract_strided_slice %3 {offsets = [0, 0, 0], sizes = [4, 8, 2], strides = [1, 1, 1]} : vector<16x8x2xf32> to vector<4x8x2xf32>
    %18 = vector.broadcast %16 : f32 to vector<4x8x2xf32>
    %19 = arith.mulf %17, %18 : vector<4x8x2xf32>
    %c1 = arith.constant 1 : index
    %20 = memref.load %arg2[%c1] : memref<169xf32, #tpu.memory_space<smem>>
    %21 = vector.extract_strided_slice %4 {offsets = [0, 0, 0], sizes = [4, 8, 2], strides = [1, 1, 1]} : vector<16x8x2xf32> to vector<4x8x2xf32>
    %22 = vector.broadcast %20 : f32 to vector<4x8x2xf32>
    %23 = arith.mulf %21, %22 : vector<4x8x2xf32>
    %24 = arith.addf %19, %23 : vector<4x8x2xf32>
    %c2 = arith.constant 2 : index
    %25 = memref.load %arg2[%c2] : memref<169xf32, #tpu.memory_space<smem>>
    %26 = vector.extract_strided_slice %5 {offsets = [0, 0, 0], sizes = [4, 8, 2], strides = [1, 1, 1]} : vector<16x8x2xf32> to vector<4x8x2xf32>
    %27 = vector.broadcast %25 : f32 to vector<4x8x2xf32>
    %28 = arith.mulf %26, %27 : vector<4x8x2xf32>
    %29 = arith.addf %24, %28 : vector<4x8x2xf32>
    %c3 = arith.constant 3 : index
    %30 = memref.load %arg2[%c3] : memref<169xf32, #tpu.memory_space<smem>>
    %31 = vector.extract_strided_slice %6 {offsets = [0, 0, 0], sizes = [4, 8, 2], strides = [1, 1, 1]} : vector<16x8x2xf32> to vector<4x8x2xf32>
    %32 = vector.broadcast %30 : f32 to vector<4x8x2xf32>
    %33 = arith.mulf %31, %32 : vector<4x8x2xf32>
    %34 = arith.addf %29, %33 : vector<4x8x2xf32>
    %c4 = arith.constant 4 : index
    %35 = memref.load %arg2[%c4] : memref<169xf32, #tpu.memory_space<smem>>
    %36 = vector.extract_strided_slice %7 {offsets = [0, 0, 0], sizes = [4, 8, 2], strides = [1, 1, 1]} : vector<16x8x2xf32> to vector<4x8x2xf32>
    %37 = vector.broadcast %35 : f32 to vector<4x8x2xf32>
    %38 = arith.mulf %36, %37 : vector<4x8x2xf32>
    %39 = arith.addf %34, %38 : vector<4x8x2xf32>
    %c5 = arith.constant 5 : index
    %40 = memref.load %arg2[%c5] : memref<169xf32, #tpu.memory_space<smem>>
    %41 = vector.extract_strided_slice %8 {offsets = [0, 0, 0], sizes = [4, 8, 2], strides = [1, 1, 1]} : vector<16x8x2xf32> to vector<4x8x2xf32>
    %42 = vector.broadcast %40 : f32 to vector<4x8x2xf32>
    %43 = arith.mulf %41, %42 : vector<4x8x2xf32>
    %44 = arith.addf %39, %43 : vector<4x8x2xf32>
    %c6 = arith.constant 6 : index
    %45 = memref.load %arg2[%c6] : memref<169xf32, #tpu.memory_space<smem>>
    %46 = vector.extract_strided_slice %9 {offsets = [0, 0, 0], sizes = [4, 8, 2], strides = [1, 1, 1]} : vector<16x8x2xf32> to vector<4x8x2xf32>
    %47 = vector.broadcast %45 : f32 to vector<4x8x2xf32>
    %48 = arith.mulf %46, %47 : vector<4x8x2xf32>
    %49 = arith.addf %44, %48 : vector<4x8x2xf32>
    %c7 = arith.constant 7 : index
    %50 = memref.load %arg2[%c7] : memref<169xf32, #tpu.memory_space<smem>>
    %51 = vector.extract_strided_slice %10 {offsets = [0, 0, 0], sizes = [4, 8, 2], strides = [1, 1, 1]} : vector<16x8x2xf32> to vector<4x8x2xf32>
    %52 = vector.broadcast %50 : f32 to vector<4x8x2xf32>
    %53 = arith.mulf %51, %52 : vector<4x8x2xf32>
    %54 = arith.addf %49, %53 : vector<4x8x2xf32>
    %c8 = arith.constant 8 : index
    %55 = memref.load %arg2[%c8] : memref<169xf32, #tpu.memory_space<smem>>
    %56 = vector.extract_strided_slice %11 {offsets = [0, 0, 0], sizes = [4, 8, 2], strides = [1, 1, 1]} : vector<16x8x2xf32> to vector<4x8x2xf32>
    %57 = vector.broadcast %55 : f32 to vector<4x8x2xf32>
    %58 = arith.mulf %56, %57 : vector<4x8x2xf32>
    %59 = arith.addf %54, %58 : vector<4x8x2xf32>
    %c9 = arith.constant 9 : index
    %60 = memref.load %arg2[%c9] : memref<169xf32, #tpu.memory_space<smem>>
    %61 = vector.extract_strided_slice %12 {offsets = [0, 0, 0], sizes = [4, 8, 2], strides = [1, 1, 1]} : vector<16x8x2xf32> to vector<4x8x2xf32>
    %62 = vector.broadcast %60 : f32 to vector<4x8x2xf32>
    %63 = arith.mulf %61, %62 : vector<4x8x2xf32>
    %64 = arith.addf %59, %63 : vector<4x8x2xf32>
    %c10 = arith.constant 10 : index
    %65 = memref.load %arg2[%c10] : memref<169xf32, #tpu.memory_space<smem>>
    %66 = vector.extract_strided_slice %13 {offsets = [0, 0, 0], sizes = [4, 8, 2], strides = [1, 1, 1]} : vector<16x8x2xf32> to vector<4x8x2xf32>
    %67 = vector.broadcast %65 : f32 to vector<4x8x2xf32>
    %68 = arith.mulf %66, %67 : vector<4x8x2xf32>
    %69 = arith.addf %64, %68 : vector<4x8x2xf32>
    %c11 = arith.constant 11 : index
    %70 = memref.load %arg2[%c11] : memref<169xf32, #tpu.memory_space<smem>>
    %71 = vector.extract_strided_slice %14 {offsets = [0, 0, 0], sizes = [4, 8, 2], strides = [1, 1, 1]} : vector<16x8x2xf32> to vector<4x8x2xf32>
    %72 = vector.broadcast %70 : f32 to vector<4x8x2xf32>
    %73 = arith.mulf %71, %72 : vector<4x8x2xf32>
    %74 = arith.addf %69, %73 : vector<4x8x2xf32>
    %c12 = arith.constant 12 : index
    %75 = memref.load %arg2[%c12] : memref<169xf32, #tpu.memory_space<smem>>
    %76 = vector.extract_strided_slice %15 {offsets = [0, 0, 0], sizes = [4, 8, 2], strides = [1, 1, 1]} : vector<16x8x2xf32> to vector<4x8x2xf32>
    %77 = vector.broadcast %75 : f32 to vector<4x8x2xf32>
    %78 = arith.mulf %76, %77 : vector<4x8x2xf32>
    %79 = arith.addf %74, %78 : vector<4x8x2xf32>
    %c13 = arith.constant 13 : index
    %80 = memref.load %arg2[%c13] : memref<169xf32, #tpu.memory_space<smem>>
    %81 = vector.extract_strided_slice %3 {offsets = [1, 0, 0], sizes = [4, 8, 2], strides = [1, 1, 1]} : vector<16x8x2xf32> to vector<4x8x2xf32>
    %82 = vector.broadcast %80 : f32 to vector<4x8x2xf32>
    %83 = arith.mulf %81, %82 : vector<4x8x2xf32>
    %84 = arith.addf %79, %83 : vector<4x8x2xf32>
    %c14 = arith.constant 14 : index
    %85 = memref.load %arg2[%c14] : memref<169xf32, #tpu.memory_space<smem>>
    %86 = vector.extract_strided_slice %4 {offsets = [1, 0, 0], sizes = [4, 8, 2], strides = [1, 1, 1]} : vector<16x8x2xf32> to vector<4x8x2xf32>
    %87 = vector.broadcast %85 : f32 to vector<4x8x2xf32>
    %88 = arith.mulf %86, %87 : vector<4x8x2xf32>
    %89 = arith.addf %84, %88 : vector<4x8x2xf32>
    %c15 = arith.constant 15 : index
    %90 = memref.load %arg2[%c15] : memref<169xf32, #tpu.memory_space<smem>>
    %91 = vector.extract_strided_slice %5 {offsets = [1, 0, 0], sizes = [4, 8, 2], strides = [1, 1, 1]} : vector<16x8x2xf32> to vector<4x8x2xf32>
    %92 = vector.broadcast %90 : f32 to vector<4x8x2xf32>
    %93 = arith.mulf %91, %92 : vector<4x8x2xf32>
    %94 = arith.addf %89, %93 : vector<4x8x2xf32>
    %c16 = arith.constant 16 : index
    %95 = memref.load %arg2[%c16] : memref<169xf32, #tpu.memory_space<smem>>
    %96 = vector.extract_strided_slice %6 {offsets = [1, 0, 0], sizes = [4, 8, 2], strides = [1, 1, 1]} : vector<16x8x2xf32> to vector<4x8x2xf32>
    %97 = vector.broadcast %95 : f32 to vector<4x8x2xf32>
    %98 = arith.mulf %96, %97 : vector<4x8x2xf32>
    %99 = arith.addf %94, %98 : vector<4x8x2xf32>
    %c17 = arith.constant 17 : index
    %100 = memref.load %arg2[%c17] : memref<169xf32, #tpu.memory_space<smem>>
    %101 = vector.extract_strided_slice %7 {offsets = [1, 0, 0], sizes = [4, 8, 2], strides = [1, 1, 1]} : vector<16x8x2xf32> to vector<4x8x2xf32>
    %102 = vector.broadcast %100 : f32 to vector<4x8x2xf32>
    %103 = arith.mulf %101, %102 : vector<4x8x2xf32>
    %104 = arith.addf %99, %103 : vector<4x8x2xf32>
    %c18 = arith.constant 18 : index
    %105 = memref.load %arg2[%c18] : memref<169xf32, #tpu.memory_space<smem>>
    %106 = vector.extract_strided_slice %8 {offsets = [1, 0, 0], sizes = [4, 8, 2], strides = [1, 1, 1]} : vector<16x8x2xf32> to vector<4x8x2xf32>
    %107 = vector.broadcast %105 : f32 to vector<4x8x2xf32>
    %108 = arith.mulf %106, %107 : vector<4x8x2xf32>
    %109 = arith.addf %104, %108 : vector<4x8x2xf32>
    %c19 = arith.constant 19 : index
    %110 = memref.load %arg2[%c19] : memref<169xf32, #tpu.memory_space<smem>>
    %111 = vector.extract_strided_slice %9 {offsets = [1, 0, 0], sizes = [4, 8, 2], strides = [1, 1, 1]} : vector<16x8x2xf32> to vector<4x8x2xf32>
    %112 = vector.broadcast %110 : f32 to vector<4x8x2xf32>
    %113 = arith.mulf %111, %112 : vector<4x8x2xf32>
    %114 = arith.addf %109, %113 : vector<4x8x2xf32>
    %c20 = arith.constant 20 : index
    %115 = memref.load %arg2[%c20] : memref<169xf32, #tpu.memory_space<smem>>
    %116 = vector.extract_strided_slice %10 {offsets = [1, 0, 0], sizes = [4, 8, 2], strides = [1, 1, 1]} : vector<16x8x2xf32> to vector<4x8x2xf32>
    %117 = vector.broadcast %115 : f32 to vector<4x8x2xf32>
    %118 = arith.mulf %116, %117 : vector<4x8x2xf32>
    %119 = arith.addf %114, %118 : vector<4x8x2xf32>
    %c21 = arith.constant 21 : index
    %120 = memref.load %arg2[%c21] : memref<169xf32, #tpu.memory_space<smem>>
    %121 = vector.extract_strided_slice %11 {offsets = [1, 0, 0], sizes = [4, 8, 2], strides = [1, 1, 1]} : vector<16x8x2xf32> to vector<4x8x2xf32>
    %122 = vector.broadcast %120 : f32 to vector<4x8x2xf32>
    %123 = arith.mulf %121, %122 : vector<4x8x2xf32>
    %124 = arith.addf %119, %123 : vector<4x8x2xf32>
    %c22 = arith.constant 22 : index
    %125 = memref.load %arg2[%c22] : memref<169xf32, #tpu.memory_space<smem>>
    %126 = vector.extract_strided_slice %12 {offsets = [1, 0, 0], sizes = [4, 8, 2], strides = [1, 1, 1]} : vector<16x8x2xf32> to vector<4x8x2xf32>
    %127 = vector.broadcast %125 : f32 to vector<4x8x2xf32>
    %128 = arith.mulf %126, %127 : vector<4x8x2xf32>
    %129 = arith.addf %124, %128 : vector<4x8x2xf32>
    %c23 = arith.constant 23 : index
    %130 = memref.load %arg2[%c23] : memref<169xf32, #tpu.memory_space<smem>>
    %131 = vector.extract_strided_slice %13 {offsets = [1, 0, 0], sizes = [4, 8, 2], strides = [1, 1, 1]} : vector<16x8x2xf32> to vector<4x8x2xf32>
    %132 = vector.broadcast %130 : f32 to vector<4x8x2xf32>
    %133 = arith.mulf %131, %132 : vector<4x8x2xf32>
    %134 = arith.addf %129, %133 : vector<4x8x2xf32>
    %c24 = arith.constant 24 : index
    %135 = memref.load %arg2[%c24] : memref<169xf32, #tpu.memory_space<smem>>
    %136 = vector.extract_strided_slice %14 {offsets = [1, 0, 0], sizes = [4, 8, 2], strides = [1, 1, 1]} : vector<16x8x2xf32> to vector<4x8x2xf32>
    %137 = vector.broadcast %135 : f32 to vector<4x8x2xf32>
    %138 = arith.mulf %136, %137 : vector<4x8x2xf32>
    %139 = arith.addf %134, %138 : vector<4x8x2xf32>
    %c25 = arith.constant 25 : index
    %140 = memref.load %arg2[%c25] : memref<169xf32, #tpu.memory_space<smem>>
    %141 = vector.extract_strided_slice %15 {offsets = [1, 0, 0], sizes = [4, 8, 2], strides = [1, 1, 1]} : vector<16x8x2xf32> to vector<4x8x2xf32>
    %142 = vector.broadcast %140 : f32 to vector<4x8x2xf32>
    %143 = arith.mulf %141, %142 : vector<4x8x2xf32>
    %144 = arith.addf %139, %143 : vector<4x8x2xf32>
    %c26 = arith.constant 26 : index
    %145 = memref.load %arg2[%c26] : memref<169xf32, #tpu.memory_space<smem>>
    %146 = vector.extract_strided_slice %3 {offsets = [2, 0, 0], sizes = [4, 8, 2], strides = [1, 1, 1]} : vector<16x8x2xf32> to vector<4x8x2xf32>
    %147 = vector.broadcast %145 : f32 to vector<4x8x2xf32>
    %148 = arith.mulf %146, %147 : vector<4x8x2xf32>
    %149 = arith.addf %144, %148 : vector<4x8x2xf32>
    %c27 = arith.constant 27 : index
    %150 = memref.load %arg2[%c27] : memref<169xf32, #tpu.memory_space<smem>>
    %151 = vector.extract_strided_slice %4 {offsets = [2, 0, 0], sizes = [4, 8, 2], strides = [1, 1, 1]} : vector<16x8x2xf32> to vector<4x8x2xf32>
    %152 = vector.broadcast %150 : f32 to vector<4x8x2xf32>
    %153 = arith.mulf %151, %152 : vector<4x8x2xf32>
    %154 = arith.addf %149, %153 : vector<4x8x2xf32>
    %c28 = arith.constant 28 : index
    %155 = memref.load %arg2[%c28] : memref<169xf32, #tpu.memory_space<smem>>
    %156 = vector.extract_strided_slice %5 {offsets = [2, 0, 0], sizes = [4, 8, 2], strides = [1, 1, 1]} : vector<16x8x2xf32> to vector<4x8x2xf32>
    %157 = vector.broadcast %155 : f32 to vector<4x8x2xf32>
    %158 = arith.mulf %156, %157 : vector<4x8x2xf32>
    %159 = arith.addf %154, %158 : vector<4x8x2xf32>
    %c29 = arith.constant 29 : index
    %160 = memref.load %arg2[%c29] : memref<169xf32, #tpu.memory_space<smem>>
    %161 = vector.extract_strided_slice %6 {offsets = [2, 0, 0], sizes = [4, 8, 2], strides = [1, 1, 1]} : vector<16x8x2xf32> to vector<4x8x2xf32>
    %162 = vector.broadcast %160 : f32 to vector<4x8x2xf32>
    %163 = arith.mulf %161, %162 : vector<4x8x2xf32>
    %164 = arith.addf %159, %163 : vector<4x8x2xf32>
    %c30 = arith.constant 30 : index
    %165 = memref.load %arg2[%c30] : memref<169xf32, #tpu.memory_space<smem>>
    %166 = vector.extract_strided_slice %7 {offsets = [2, 0, 0], sizes = [4, 8, 2], strides = [1, 1, 1]} : vector<16x8x2xf32> to vector<4x8x2xf32>
    %167 = vector.broadcast %165 : f32 to vector<4x8x2xf32>
    %168 = arith.mulf %166, %167 : vector<4x8x2xf32>
    %169 = arith.addf %164, %168 : vector<4x8x2xf32>
    %c31 = arith.constant 31 : index
    %170 = memref.load %arg2[%c31] : memref<169xf32, #tpu.memory_space<smem>>
    %171 = vector.extract_strided_slice %8 {offsets = [2, 0, 0], sizes = [4, 8, 2], strides = [1, 1, 1]} : vector<16x8x2xf32> to vector<4x8x2xf32>
    %172 = vector.broadcast %170 : f32 to vector<4x8x2xf32>
    %173 = arith.mulf %171, %172 : vector<4x8x2xf32>
    %174 = arith.addf %169, %173 : vector<4x8x2xf32>
    %c32 = arith.constant 32 : index
    %175 = memref.load %arg2[%c32] : memref<169xf32, #tpu.memory_space<smem>>
    %176 = vector.extract_strided_slice %9 {offsets = [2, 0, 0], sizes = [4, 8, 2], strides = [1, 1, 1]} : vector<16x8x2xf32> to vector<4x8x2xf32>
    %177 = vector.broadcast %175 : f32 to vector<4x8x2xf32>
    %178 = arith.mulf %176, %177 : vector<4x8x2xf32>
    %179 = arith.addf %174, %178 : vector<4x8x2xf32>
    %c33 = arith.constant 33 : index
    %180 = memref.load %arg2[%c33] : memref<169xf32, #tpu.memory_space<smem>>
    %181 = vector.extract_strided_slice %10 {offsets = [2, 0, 0], sizes = [4, 8, 2], strides = [1, 1, 1]} : vector<16x8x2xf32> to vector<4x8x2xf32>
    %182 = vector.broadcast %180 : f32 to vector<4x8x2xf32>
    %183 = arith.mulf %181, %182 : vector<4x8x2xf32>
    %184 = arith.addf %179, %183 : vector<4x8x2xf32>
    %c34 = arith.constant 34 : index
    %185 = memref.load %arg2[%c34] : memref<169xf32, #tpu.memory_space<smem>>
    %186 = vector.extract_strided_slice %11 {offsets = [2, 0, 0], sizes = [4, 8, 2], strides = [1, 1, 1]} : vector<16x8x2xf32> to vector<4x8x2xf32>
    %187 = vector.broadcast %185 : f32 to vector<4x8x2xf32>
    %188 = arith.mulf %186, %187 : vector<4x8x2xf32>
    %189 = arith.addf %184, %188 : vector<4x8x2xf32>
    %c35 = arith.constant 35 : index
    %190 = memref.load %arg2[%c35] : memref<169xf32, #tpu.memory_space<smem>>
    %191 = vector.extract_strided_slice %12 {offsets = [2, 0, 0], sizes = [4, 8, 2], strides = [1, 1, 1]} : vector<16x8x2xf32> to vector<4x8x2xf32>
    %192 = vector.broadcast %190 : f32 to vector<4x8x2xf32>
    %193 = arith.mulf %191, %192 : vector<4x8x2xf32>
    %194 = arith.addf %189, %193 : vector<4x8x2xf32>
    %c36 = arith.constant 36 : index
    %195 = memref.load %arg2[%c36] : memref<169xf32, #tpu.memory_space<smem>>
    %196 = vector.extract_strided_slice %13 {offsets = [2, 0, 0], sizes = [4, 8, 2], strides = [1, 1, 1]} : vector<16x8x2xf32> to vector<4x8x2xf32>
    %197 = vector.broadcast %195 : f32 to vector<4x8x2xf32>
    %198 = arith.mulf %196, %197 : vector<4x8x2xf32>
    %199 = arith.addf %194, %198 : vector<4x8x2xf32>
    %c37 = arith.constant 37 : index
    %200 = memref.load %arg2[%c37] : memref<169xf32, #tpu.memory_space<smem>>
    %201 = vector.extract_strided_slice %14 {offsets = [2, 0, 0], sizes = [4, 8, 2], strides = [1, 1, 1]} : vector<16x8x2xf32> to vector<4x8x2xf32>
    %202 = vector.broadcast %200 : f32 to vector<4x8x2xf32>
    %203 = arith.mulf %201, %202 : vector<4x8x2xf32>
    %204 = arith.addf %199, %203 : vector<4x8x2xf32>
    %c38 = arith.constant 38 : index
    %205 = memref.load %arg2[%c38] : memref<169xf32, #tpu.memory_space<smem>>
    %206 = vector.extract_strided_slice %15 {offsets = [2, 0, 0], sizes = [4, 8, 2], strides = [1, 1, 1]} : vector<16x8x2xf32> to vector<4x8x2xf32>
    %207 = vector.broadcast %205 : f32 to vector<4x8x2xf32>
    %208 = arith.mulf %206, %207 : vector<4x8x2xf32>
    %209 = arith.addf %204, %208 : vector<4x8x2xf32>
    %c39 = arith.constant 39 : index
    %210 = memref.load %arg2[%c39] : memref<169xf32, #tpu.memory_space<smem>>
    %211 = vector.extract_strided_slice %3 {offsets = [3, 0, 0], sizes = [4, 8, 2], strides = [1, 1, 1]} : vector<16x8x2xf32> to vector<4x8x2xf32>
    %212 = vector.broadcast %210 : f32 to vector<4x8x2xf32>
    %213 = arith.mulf %211, %212 : vector<4x8x2xf32>
    %214 = arith.addf %209, %213 : vector<4x8x2xf32>
    %c40 = arith.constant 40 : index
    %215 = memref.load %arg2[%c40] : memref<169xf32, #tpu.memory_space<smem>>
    %216 = vector.extract_strided_slice %4 {offsets = [3, 0, 0], sizes = [4, 8, 2], strides = [1, 1, 1]} : vector<16x8x2xf32> to vector<4x8x2xf32>
    %217 = vector.broadcast %215 : f32 to vector<4x8x2xf32>
    %218 = arith.mulf %216, %217 : vector<4x8x2xf32>
    %219 = arith.addf %214, %218 : vector<4x8x2xf32>
    %c41 = arith.constant 41 : index
    %220 = memref.load %arg2[%c41] : memref<169xf32, #tpu.memory_space<smem>>
    %221 = vector.extract_strided_slice %5 {offsets = [3, 0, 0], sizes = [4, 8, 2], strides = [1, 1, 1]} : vector<16x8x2xf32> to vector<4x8x2xf32>
    %222 = vector.broadcast %220 : f32 to vector<4x8x2xf32>
    %223 = arith.mulf %221, %222 : vector<4x8x2xf32>
    %224 = arith.addf %219, %223 : vector<4x8x2xf32>
    %c42 = arith.constant 42 : index
    %225 = memref.load %arg2[%c42] : memref<169xf32, #tpu.memory_space<smem>>
    %226 = vector.extract_strided_slice %6 {offsets = [3, 0, 0], sizes = [4, 8, 2], strides = [1, 1, 1]} : vector<16x8x2xf32> to vector<4x8x2xf32>
    %227 = vector.broadcast %225 : f32 to vector<4x8x2xf32>
    %228 = arith.mulf %226, %227 : vector<4x8x2xf32>
    %229 = arith.addf %224, %228 : vector<4x8x2xf32>
    %c43 = arith.constant 43 : index
    %230 = memref.load %arg2[%c43] : memref<169xf32, #tpu.memory_space<smem>>
    %231 = vector.extract_strided_slice %7 {offsets = [3, 0, 0], sizes = [4, 8, 2], strides = [1, 1, 1]} : vector<16x8x2xf32> to vector<4x8x2xf32>
    %232 = vector.broadcast %230 : f32 to vector<4x8x2xf32>
    %233 = arith.mulf %231, %232 : vector<4x8x2xf32>
    %234 = arith.addf %229, %233 : vector<4x8x2xf32>
    %c44 = arith.constant 44 : index
    %235 = memref.load %arg2[%c44] : memref<169xf32, #tpu.memory_space<smem>>
    %236 = vector.extract_strided_slice %8 {offsets = [3, 0, 0], sizes = [4, 8, 2], strides = [1, 1, 1]} : vector<16x8x2xf32> to vector<4x8x2xf32>
    %237 = vector.broadcast %235 : f32 to vector<4x8x2xf32>
    %238 = arith.mulf %236, %237 : vector<4x8x2xf32>
    %239 = arith.addf %234, %238 : vector<4x8x2xf32>
    %c45 = arith.constant 45 : index
    %240 = memref.load %arg2[%c45] : memref<169xf32, #tpu.memory_space<smem>>
    %241 = vector.extract_strided_slice %9 {offsets = [3, 0, 0], sizes = [4, 8, 2], strides = [1, 1, 1]} : vector<16x8x2xf32> to vector<4x8x2xf32>
    %242 = vector.broadcast %240 : f32 to vector<4x8x2xf32>
    %243 = arith.mulf %241, %242 : vector<4x8x2xf32>
    %244 = arith.addf %239, %243 : vector<4x8x2xf32>
    %c46 = arith.constant 46 : index
    %245 = memref.load %arg2[%c46] : memref<169xf32, #tpu.memory_space<smem>>
    %246 = vector.extract_strided_slice %10 {offsets = [3, 0, 0], sizes = [4, 8, 2], strides = [1, 1, 1]} : vector<16x8x2xf32> to vector<4x8x2xf32>
    %247 = vector.broadcast %245 : f32 to vector<4x8x2xf32>
    %248 = arith.mulf %246, %247 : vector<4x8x2xf32>
    %249 = arith.addf %244, %248 : vector<4x8x2xf32>
    %c47 = arith.constant 47 : index
    %250 = memref.load %arg2[%c47] : memref<169xf32, #tpu.memory_space<smem>>
    %251 = vector.extract_strided_slice %11 {offsets = [3, 0, 0], sizes = [4, 8, 2], strides = [1, 1, 1]} : vector<16x8x2xf32> to vector<4x8x2xf32>
    %252 = vector.broadcast %250 : f32 to vector<4x8x2xf32>
    %253 = arith.mulf %251, %252 : vector<4x8x2xf32>
    %254 = arith.addf %249, %253 : vector<4x8x2xf32>
    %c48 = arith.constant 48 : index
    %255 = memref.load %arg2[%c48] : memref<169xf32, #tpu.memory_space<smem>>
    %256 = vector.extract_strided_slice %12 {offsets = [3, 0, 0], sizes = [4, 8, 2], strides = [1, 1, 1]} : vector<16x8x2xf32> to vector<4x8x2xf32>
    %257 = vector.broadcast %255 : f32 to vector<4x8x2xf32>
    %258 = arith.mulf %256, %257 : vector<4x8x2xf32>
    %259 = arith.addf %254, %258 : vector<4x8x2xf32>
    %c49 = arith.constant 49 : index
    %260 = memref.load %arg2[%c49] : memref<169xf32, #tpu.memory_space<smem>>
    %261 = vector.extract_strided_slice %13 {offsets = [3, 0, 0], sizes = [4, 8, 2], strides = [1, 1, 1]} : vector<16x8x2xf32> to vector<4x8x2xf32>
    %262 = vector.broadcast %260 : f32 to vector<4x8x2xf32>
    %263 = arith.mulf %261, %262 : vector<4x8x2xf32>
    %264 = arith.addf %259, %263 : vector<4x8x2xf32>
    %c50 = arith.constant 50 : index
    %265 = memref.load %arg2[%c50] : memref<169xf32, #tpu.memory_space<smem>>
    %266 = vector.extract_strided_slice %14 {offsets = [3, 0, 0], sizes = [4, 8, 2], strides = [1, 1, 1]} : vector<16x8x2xf32> to vector<4x8x2xf32>
    %267 = vector.broadcast %265 : f32 to vector<4x8x2xf32>
    %268 = arith.mulf %266, %267 : vector<4x8x2xf32>
    %269 = arith.addf %264, %268 : vector<4x8x2xf32>
    %c51 = arith.constant 51 : index
    %270 = memref.load %arg2[%c51] : memref<169xf32, #tpu.memory_space<smem>>
    %271 = vector.extract_strided_slice %15 {offsets = [3, 0, 0], sizes = [4, 8, 2], strides = [1, 1, 1]} : vector<16x8x2xf32> to vector<4x8x2xf32>
    %272 = vector.broadcast %270 : f32 to vector<4x8x2xf32>
    %273 = arith.mulf %271, %272 : vector<4x8x2xf32>
    %274 = arith.addf %269, %273 : vector<4x8x2xf32>
    %c52 = arith.constant 52 : index
    %275 = memref.load %arg2[%c52] : memref<169xf32, #tpu.memory_space<smem>>
    %276 = vector.extract_strided_slice %3 {offsets = [4, 0, 0], sizes = [4, 8, 2], strides = [1, 1, 1]} : vector<16x8x2xf32> to vector<4x8x2xf32>
    %277 = vector.broadcast %275 : f32 to vector<4x8x2xf32>
    %278 = arith.mulf %276, %277 : vector<4x8x2xf32>
    %279 = arith.addf %274, %278 : vector<4x8x2xf32>
    %c53 = arith.constant 53 : index
    %280 = memref.load %arg2[%c53] : memref<169xf32, #tpu.memory_space<smem>>
    %281 = vector.extract_strided_slice %4 {offsets = [4, 0, 0], sizes = [4, 8, 2], strides = [1, 1, 1]} : vector<16x8x2xf32> to vector<4x8x2xf32>
    %282 = vector.broadcast %280 : f32 to vector<4x8x2xf32>
    %283 = arith.mulf %281, %282 : vector<4x8x2xf32>
    %284 = arith.addf %279, %283 : vector<4x8x2xf32>
    %c54 = arith.constant 54 : index
    %285 = memref.load %arg2[%c54] : memref<169xf32, #tpu.memory_space<smem>>
    %286 = vector.extract_strided_slice %5 {offsets = [4, 0, 0], sizes = [4, 8, 2], strides = [1, 1, 1]} : vector<16x8x2xf32> to vector<4x8x2xf32>
    %287 = vector.broadcast %285 : f32 to vector<4x8x2xf32>
    %288 = arith.mulf %286, %287 : vector<4x8x2xf32>
    %289 = arith.addf %284, %288 : vector<4x8x2xf32>
    %c55 = arith.constant 55 : index
    %290 = memref.load %arg2[%c55] : memref<169xf32, #tpu.memory_space<smem>>
    %291 = vector.extract_strided_slice %6 {offsets = [4, 0, 0], sizes = [4, 8, 2], strides = [1, 1, 1]} : vector<16x8x2xf32> to vector<4x8x2xf32>
    %292 = vector.broadcast %290 : f32 to vector<4x8x2xf32>
    %293 = arith.mulf %291, %292 : vector<4x8x2xf32>
    %294 = arith.addf %289, %293 : vector<4x8x2xf32>
    %c56 = arith.constant 56 : index
    %295 = memref.load %arg2[%c56] : memref<169xf32, #tpu.memory_space<smem>>
    %296 = vector.extract_strided_slice %7 {offsets = [4, 0, 0], sizes = [4, 8, 2], strides = [1, 1, 1]} : vector<16x8x2xf32> to vector<4x8x2xf32>
    %297 = vector.broadcast %295 : f32 to vector<4x8x2xf32>
    %298 = arith.mulf %296, %297 : vector<4x8x2xf32>
    %299 = arith.addf %294, %298 : vector<4x8x2xf32>
    %c57 = arith.constant 57 : index
    %300 = memref.load %arg2[%c57] : memref<169xf32, #tpu.memory_space<smem>>
    %301 = vector.extract_strided_slice %8 {offsets = [4, 0, 0], sizes = [4, 8, 2], strides = [1, 1, 1]} : vector<16x8x2xf32> to vector<4x8x2xf32>
    %302 = vector.broadcast %300 : f32 to vector<4x8x2xf32>
    %303 = arith.mulf %301, %302 : vector<4x8x2xf32>
    %304 = arith.addf %299, %303 : vector<4x8x2xf32>
    %c58 = arith.constant 58 : index
    %305 = memref.load %arg2[%c58] : memref<169xf32, #tpu.memory_space<smem>>
    %306 = vector.extract_strided_slice %9 {offsets = [4, 0, 0], sizes = [4, 8, 2], strides = [1, 1, 1]} : vector<16x8x2xf32> to vector<4x8x2xf32>
    %307 = vector.broadcast %305 : f32 to vector<4x8x2xf32>
    %308 = arith.mulf %306, %307 : vector<4x8x2xf32>
    %309 = arith.addf %304, %308 : vector<4x8x2xf32>
    %c59 = arith.constant 59 : index
    %310 = memref.load %arg2[%c59] : memref<169xf32, #tpu.memory_space<smem>>
    %311 = vector.extract_strided_slice %10 {offsets = [4, 0, 0], sizes = [4, 8, 2], strides = [1, 1, 1]} : vector<16x8x2xf32> to vector<4x8x2xf32>
    %312 = vector.broadcast %310 : f32 to vector<4x8x2xf32>
    %313 = arith.mulf %311, %312 : vector<4x8x2xf32>
    %314 = arith.addf %309, %313 : vector<4x8x2xf32>
    %c60 = arith.constant 60 : index
    %315 = memref.load %arg2[%c60] : memref<169xf32, #tpu.memory_space<smem>>
    %316 = vector.extract_strided_slice %11 {offsets = [4, 0, 0], sizes = [4, 8, 2], strides = [1, 1, 1]} : vector<16x8x2xf32> to vector<4x8x2xf32>
    %317 = vector.broadcast %315 : f32 to vector<4x8x2xf32>
    %318 = arith.mulf %316, %317 : vector<4x8x2xf32>
    %319 = arith.addf %314, %318 : vector<4x8x2xf32>
    %c61 = arith.constant 61 : index
    %320 = memref.load %arg2[%c61] : memref<169xf32, #tpu.memory_space<smem>>
    %321 = vector.extract_strided_slice %12 {offsets = [4, 0, 0], sizes = [4, 8, 2], strides = [1, 1, 1]} : vector<16x8x2xf32> to vector<4x8x2xf32>
    %322 = vector.broadcast %320 : f32 to vector<4x8x2xf32>
    %323 = arith.mulf %321, %322 : vector<4x8x2xf32>
    %324 = arith.addf %319, %323 : vector<4x8x2xf32>
    %c62 = arith.constant 62 : index
    %325 = memref.load %arg2[%c62] : memref<169xf32, #tpu.memory_space<smem>>
    %326 = vector.extract_strided_slice %13 {offsets = [4, 0, 0], sizes = [4, 8, 2], strides = [1, 1, 1]} : vector<16x8x2xf32> to vector<4x8x2xf32>
    %327 = vector.broadcast %325 : f32 to vector<4x8x2xf32>
    %328 = arith.mulf %326, %327 : vector<4x8x2xf32>
    %329 = arith.addf %324, %328 : vector<4x8x2xf32>
    %c63 = arith.constant 63 : index
    %330 = memref.load %arg2[%c63] : memref<169xf32, #tpu.memory_space<smem>>
    %331 = vector.extract_strided_slice %14 {offsets = [4, 0, 0], sizes = [4, 8, 2], strides = [1, 1, 1]} : vector<16x8x2xf32> to vector<4x8x2xf32>
    %332 = vector.broadcast %330 : f32 to vector<4x8x2xf32>
    %333 = arith.mulf %331, %332 : vector<4x8x2xf32>
    %334 = arith.addf %329, %333 : vector<4x8x2xf32>
    %c64 = arith.constant 64 : index
    %335 = memref.load %arg2[%c64] : memref<169xf32, #tpu.memory_space<smem>>
    %336 = vector.extract_strided_slice %15 {offsets = [4, 0, 0], sizes = [4, 8, 2], strides = [1, 1, 1]} : vector<16x8x2xf32> to vector<4x8x2xf32>
    %337 = vector.broadcast %335 : f32 to vector<4x8x2xf32>
    %338 = arith.mulf %336, %337 : vector<4x8x2xf32>
    %339 = arith.addf %334, %338 : vector<4x8x2xf32>
    %c65 = arith.constant 65 : index
    %340 = memref.load %arg2[%c65] : memref<169xf32, #tpu.memory_space<smem>>
    %341 = vector.extract_strided_slice %3 {offsets = [5, 0, 0], sizes = [4, 8, 2], strides = [1, 1, 1]} : vector<16x8x2xf32> to vector<4x8x2xf32>
    %342 = vector.broadcast %340 : f32 to vector<4x8x2xf32>
    %343 = arith.mulf %341, %342 : vector<4x8x2xf32>
    %344 = arith.addf %339, %343 : vector<4x8x2xf32>
    %c66 = arith.constant 66 : index
    %345 = memref.load %arg2[%c66] : memref<169xf32, #tpu.memory_space<smem>>
    %346 = vector.extract_strided_slice %4 {offsets = [5, 0, 0], sizes = [4, 8, 2], strides = [1, 1, 1]} : vector<16x8x2xf32> to vector<4x8x2xf32>
    %347 = vector.broadcast %345 : f32 to vector<4x8x2xf32>
    %348 = arith.mulf %346, %347 : vector<4x8x2xf32>
    %349 = arith.addf %344, %348 : vector<4x8x2xf32>
    %c67 = arith.constant 67 : index
    %350 = memref.load %arg2[%c67] : memref<169xf32, #tpu.memory_space<smem>>
    %351 = vector.extract_strided_slice %5 {offsets = [5, 0, 0], sizes = [4, 8, 2], strides = [1, 1, 1]} : vector<16x8x2xf32> to vector<4x8x2xf32>
    %352 = vector.broadcast %350 : f32 to vector<4x8x2xf32>
    %353 = arith.mulf %351, %352 : vector<4x8x2xf32>
    %354 = arith.addf %349, %353 : vector<4x8x2xf32>
    %c68 = arith.constant 68 : index
    %355 = memref.load %arg2[%c68] : memref<169xf32, #tpu.memory_space<smem>>
    %356 = vector.extract_strided_slice %6 {offsets = [5, 0, 0], sizes = [4, 8, 2], strides = [1, 1, 1]} : vector<16x8x2xf32> to vector<4x8x2xf32>
    %357 = vector.broadcast %355 : f32 to vector<4x8x2xf32>
    %358 = arith.mulf %356, %357 : vector<4x8x2xf32>
    %359 = arith.addf %354, %358 : vector<4x8x2xf32>
    %c69 = arith.constant 69 : index
    %360 = memref.load %arg2[%c69] : memref<169xf32, #tpu.memory_space<smem>>
    %361 = vector.extract_strided_slice %7 {offsets = [5, 0, 0], sizes = [4, 8, 2], strides = [1, 1, 1]} : vector<16x8x2xf32> to vector<4x8x2xf32>
    %362 = vector.broadcast %360 : f32 to vector<4x8x2xf32>
    %363 = arith.mulf %361, %362 : vector<4x8x2xf32>
    %364 = arith.addf %359, %363 : vector<4x8x2xf32>
    %c70 = arith.constant 70 : index
    %365 = memref.load %arg2[%c70] : memref<169xf32, #tpu.memory_space<smem>>
    %366 = vector.extract_strided_slice %8 {offsets = [5, 0, 0], sizes = [4, 8, 2], strides = [1, 1, 1]} : vector<16x8x2xf32> to vector<4x8x2xf32>
    %367 = vector.broadcast %365 : f32 to vector<4x8x2xf32>
    %368 = arith.mulf %366, %367 : vector<4x8x2xf32>
    %369 = arith.addf %364, %368 : vector<4x8x2xf32>
    %c71 = arith.constant 71 : index
    %370 = memref.load %arg2[%c71] : memref<169xf32, #tpu.memory_space<smem>>
    %371 = vector.extract_strided_slice %9 {offsets = [5, 0, 0], sizes = [4, 8, 2], strides = [1, 1, 1]} : vector<16x8x2xf32> to vector<4x8x2xf32>
    %372 = vector.broadcast %370 : f32 to vector<4x8x2xf32>
    %373 = arith.mulf %371, %372 : vector<4x8x2xf32>
    %374 = arith.addf %369, %373 : vector<4x8x2xf32>
    %c72 = arith.constant 72 : index
    %375 = memref.load %arg2[%c72] : memref<169xf32, #tpu.memory_space<smem>>
    %376 = vector.extract_strided_slice %10 {offsets = [5, 0, 0], sizes = [4, 8, 2], strides = [1, 1, 1]} : vector<16x8x2xf32> to vector<4x8x2xf32>
    %377 = vector.broadcast %375 : f32 to vector<4x8x2xf32>
    %378 = arith.mulf %376, %377 : vector<4x8x2xf32>
    %379 = arith.addf %374, %378 : vector<4x8x2xf32>
    %c73 = arith.constant 73 : index
    %380 = memref.load %arg2[%c73] : memref<169xf32, #tpu.memory_space<smem>>
    %381 = vector.extract_strided_slice %11 {offsets = [5, 0, 0], sizes = [4, 8, 2], strides = [1, 1, 1]} : vector<16x8x2xf32> to vector<4x8x2xf32>
    %382 = vector.broadcast %380 : f32 to vector<4x8x2xf32>
    %383 = arith.mulf %381, %382 : vector<4x8x2xf32>
    %384 = arith.addf %379, %383 : vector<4x8x2xf32>
    %c74 = arith.constant 74 : index
    %385 = memref.load %arg2[%c74] : memref<169xf32, #tpu.memory_space<smem>>
    %386 = vector.extract_strided_slice %12 {offsets = [5, 0, 0], sizes = [4, 8, 2], strides = [1, 1, 1]} : vector<16x8x2xf32> to vector<4x8x2xf32>
    %387 = vector.broadcast %385 : f32 to vector<4x8x2xf32>
    %388 = arith.mulf %386, %387 : vector<4x8x2xf32>
    %389 = arith.addf %384, %388 : vector<4x8x2xf32>
    %c75 = arith.constant 75 : index
    %390 = memref.load %arg2[%c75] : memref<169xf32, #tpu.memory_space<smem>>
    %391 = vector.extract_strided_slice %13 {offsets = [5, 0, 0], sizes = [4, 8, 2], strides = [1, 1, 1]} : vector<16x8x2xf32> to vector<4x8x2xf32>
    %392 = vector.broadcast %390 : f32 to vector<4x8x2xf32>
    %393 = arith.mulf %391, %392 : vector<4x8x2xf32>
    %394 = arith.addf %389, %393 : vector<4x8x2xf32>
    %c76 = arith.constant 76 : index
    %395 = memref.load %arg2[%c76] : memref<169xf32, #tpu.memory_space<smem>>
    %396 = vector.extract_strided_slice %14 {offsets = [5, 0, 0], sizes = [4, 8, 2], strides = [1, 1, 1]} : vector<16x8x2xf32> to vector<4x8x2xf32>
    %397 = vector.broadcast %395 : f32 to vector<4x8x2xf32>
    %398 = arith.mulf %396, %397 : vector<4x8x2xf32>
    %399 = arith.addf %394, %398 : vector<4x8x2xf32>
    %c77 = arith.constant 77 : index
    %400 = memref.load %arg2[%c77] : memref<169xf32, #tpu.memory_space<smem>>
    %401 = vector.extract_strided_slice %15 {offsets = [5, 0, 0], sizes = [4, 8, 2], strides = [1, 1, 1]} : vector<16x8x2xf32> to vector<4x8x2xf32>
    %402 = vector.broadcast %400 : f32 to vector<4x8x2xf32>
    %403 = arith.mulf %401, %402 : vector<4x8x2xf32>
    %404 = arith.addf %399, %403 : vector<4x8x2xf32>
    %c78 = arith.constant 78 : index
    %405 = memref.load %arg2[%c78] : memref<169xf32, #tpu.memory_space<smem>>
    %406 = vector.extract_strided_slice %3 {offsets = [6, 0, 0], sizes = [4, 8, 2], strides = [1, 1, 1]} : vector<16x8x2xf32> to vector<4x8x2xf32>
    %407 = vector.broadcast %405 : f32 to vector<4x8x2xf32>
    %408 = arith.mulf %406, %407 : vector<4x8x2xf32>
    %409 = arith.addf %404, %408 : vector<4x8x2xf32>
    %c79 = arith.constant 79 : index
    %410 = memref.load %arg2[%c79] : memref<169xf32, #tpu.memory_space<smem>>
    %411 = vector.extract_strided_slice %4 {offsets = [6, 0, 0], sizes = [4, 8, 2], strides = [1, 1, 1]} : vector<16x8x2xf32> to vector<4x8x2xf32>
    %412 = vector.broadcast %410 : f32 to vector<4x8x2xf32>
    %413 = arith.mulf %411, %412 : vector<4x8x2xf32>
    %414 = arith.addf %409, %413 : vector<4x8x2xf32>
    %c80 = arith.constant 80 : index
    %415 = memref.load %arg2[%c80] : memref<169xf32, #tpu.memory_space<smem>>
    %416 = vector.extract_strided_slice %5 {offsets = [6, 0, 0], sizes = [4, 8, 2], strides = [1, 1, 1]} : vector<16x8x2xf32> to vector<4x8x2xf32>
    %417 = vector.broadcast %415 : f32 to vector<4x8x2xf32>
    %418 = arith.mulf %416, %417 : vector<4x8x2xf32>
    %419 = arith.addf %414, %418 : vector<4x8x2xf32>
    %c81 = arith.constant 81 : index
    %420 = memref.load %arg2[%c81] : memref<169xf32, #tpu.memory_space<smem>>
    %421 = vector.extract_strided_slice %6 {offsets = [6, 0, 0], sizes = [4, 8, 2], strides = [1, 1, 1]} : vector<16x8x2xf32> to vector<4x8x2xf32>
    %422 = vector.broadcast %420 : f32 to vector<4x8x2xf32>
    %423 = arith.mulf %421, %422 : vector<4x8x2xf32>
    %424 = arith.addf %419, %423 : vector<4x8x2xf32>
    %c82 = arith.constant 82 : index
    %425 = memref.load %arg2[%c82] : memref<169xf32, #tpu.memory_space<smem>>
    %426 = vector.extract_strided_slice %7 {offsets = [6, 0, 0], sizes = [4, 8, 2], strides = [1, 1, 1]} : vector<16x8x2xf32> to vector<4x8x2xf32>
    %427 = vector.broadcast %425 : f32 to vector<4x8x2xf32>
    %428 = arith.mulf %426, %427 : vector<4x8x2xf32>
    %429 = arith.addf %424, %428 : vector<4x8x2xf32>
    %c83 = arith.constant 83 : index
    %430 = memref.load %arg2[%c83] : memref<169xf32, #tpu.memory_space<smem>>
    %431 = vector.extract_strided_slice %8 {offsets = [6, 0, 0], sizes = [4, 8, 2], strides = [1, 1, 1]} : vector<16x8x2xf32> to vector<4x8x2xf32>
    %432 = vector.broadcast %430 : f32 to vector<4x8x2xf32>
    %433 = arith.mulf %431, %432 : vector<4x8x2xf32>
    %434 = arith.addf %429, %433 : vector<4x8x2xf32>
    %c84 = arith.constant 84 : index
    %435 = memref.load %arg2[%c84] : memref<169xf32, #tpu.memory_space<smem>>
    %436 = vector.extract_strided_slice %9 {offsets = [6, 0, 0], sizes = [4, 8, 2], strides = [1, 1, 1]} : vector<16x8x2xf32> to vector<4x8x2xf32>
    %437 = vector.broadcast %435 : f32 to vector<4x8x2xf32>
    %438 = arith.mulf %436, %437 : vector<4x8x2xf32>
    %439 = arith.addf %434, %438 : vector<4x8x2xf32>
    %c85 = arith.constant 85 : index
    %440 = memref.load %arg2[%c85] : memref<169xf32, #tpu.memory_space<smem>>
    %441 = vector.extract_strided_slice %10 {offsets = [6, 0, 0], sizes = [4, 8, 2], strides = [1, 1, 1]} : vector<16x8x2xf32> to vector<4x8x2xf32>
    %442 = vector.broadcast %440 : f32 to vector<4x8x2xf32>
    %443 = arith.mulf %441, %442 : vector<4x8x2xf32>
    %444 = arith.addf %439, %443 : vector<4x8x2xf32>
    %c86 = arith.constant 86 : index
    %445 = memref.load %arg2[%c86] : memref<169xf32, #tpu.memory_space<smem>>
    %446 = vector.extract_strided_slice %11 {offsets = [6, 0, 0], sizes = [4, 8, 2], strides = [1, 1, 1]} : vector<16x8x2xf32> to vector<4x8x2xf32>
    %447 = vector.broadcast %445 : f32 to vector<4x8x2xf32>
    %448 = arith.mulf %446, %447 : vector<4x8x2xf32>
    %449 = arith.addf %444, %448 : vector<4x8x2xf32>
    %c87 = arith.constant 87 : index
    %450 = memref.load %arg2[%c87] : memref<169xf32, #tpu.memory_space<smem>>
    %451 = vector.extract_strided_slice %12 {offsets = [6, 0, 0], sizes = [4, 8, 2], strides = [1, 1, 1]} : vector<16x8x2xf32> to vector<4x8x2xf32>
    %452 = vector.broadcast %450 : f32 to vector<4x8x2xf32>
    %453 = arith.mulf %451, %452 : vector<4x8x2xf32>
    %454 = arith.addf %449, %453 : vector<4x8x2xf32>
    %c88 = arith.constant 88 : index
    %455 = memref.load %arg2[%c88] : memref<169xf32, #tpu.memory_space<smem>>
    %456 = vector.extract_strided_slice %13 {offsets = [6, 0, 0], sizes = [4, 8, 2], strides = [1, 1, 1]} : vector<16x8x2xf32> to vector<4x8x2xf32>
    %457 = vector.broadcast %455 : f32 to vector<4x8x2xf32>
    %458 = arith.mulf %456, %457 : vector<4x8x2xf32>
    %459 = arith.addf %454, %458 : vector<4x8x2xf32>
    %c89 = arith.constant 89 : index
    %460 = memref.load %arg2[%c89] : memref<169xf32, #tpu.memory_space<smem>>
    %461 = vector.extract_strided_slice %14 {offsets = [6, 0, 0], sizes = [4, 8, 2], strides = [1, 1, 1]} : vector<16x8x2xf32> to vector<4x8x2xf32>
    %462 = vector.broadcast %460 : f32 to vector<4x8x2xf32>
    %463 = arith.mulf %461, %462 : vector<4x8x2xf32>
    %464 = arith.addf %459, %463 : vector<4x8x2xf32>
    %c90 = arith.constant 90 : index
    %465 = memref.load %arg2[%c90] : memref<169xf32, #tpu.memory_space<smem>>
    %466 = vector.extract_strided_slice %15 {offsets = [6, 0, 0], sizes = [4, 8, 2], strides = [1, 1, 1]} : vector<16x8x2xf32> to vector<4x8x2xf32>
    %467 = vector.broadcast %465 : f32 to vector<4x8x2xf32>
    %468 = arith.mulf %466, %467 : vector<4x8x2xf32>
    %469 = arith.addf %464, %468 : vector<4x8x2xf32>
    %c91 = arith.constant 91 : index
    %470 = memref.load %arg2[%c91] : memref<169xf32, #tpu.memory_space<smem>>
    %471 = vector.extract_strided_slice %3 {offsets = [7, 0, 0], sizes = [4, 8, 2], strides = [1, 1, 1]} : vector<16x8x2xf32> to vector<4x8x2xf32>
    %472 = vector.broadcast %470 : f32 to vector<4x8x2xf32>
    %473 = arith.mulf %471, %472 : vector<4x8x2xf32>
    %474 = arith.addf %469, %473 : vector<4x8x2xf32>
    %c92 = arith.constant 92 : index
    %475 = memref.load %arg2[%c92] : memref<169xf32, #tpu.memory_space<smem>>
    %476 = vector.extract_strided_slice %4 {offsets = [7, 0, 0], sizes = [4, 8, 2], strides = [1, 1, 1]} : vector<16x8x2xf32> to vector<4x8x2xf32>
    %477 = vector.broadcast %475 : f32 to vector<4x8x2xf32>
    %478 = arith.mulf %476, %477 : vector<4x8x2xf32>
    %479 = arith.addf %474, %478 : vector<4x8x2xf32>
    %c93 = arith.constant 93 : index
    %480 = memref.load %arg2[%c93] : memref<169xf32, #tpu.memory_space<smem>>
    %481 = vector.extract_strided_slice %5 {offsets = [7, 0, 0], sizes = [4, 8, 2], strides = [1, 1, 1]} : vector<16x8x2xf32> to vector<4x8x2xf32>
    %482 = vector.broadcast %480 : f32 to vector<4x8x2xf32>
    %483 = arith.mulf %481, %482 : vector<4x8x2xf32>
    %484 = arith.addf %479, %483 : vector<4x8x2xf32>
    %c94 = arith.constant 94 : index
    %485 = memref.load %arg2[%c94] : memref<169xf32, #tpu.memory_space<smem>>
    %486 = vector.extract_strided_slice %6 {offsets = [7, 0, 0], sizes = [4, 8, 2], strides = [1, 1, 1]} : vector<16x8x2xf32> to vector<4x8x2xf32>
    %487 = vector.broadcast %485 : f32 to vector<4x8x2xf32>
    %488 = arith.mulf %486, %487 : vector<4x8x2xf32>
    %489 = arith.addf %484, %488 : vector<4x8x2xf32>
    %c95 = arith.constant 95 : index
    %490 = memref.load %arg2[%c95] : memref<169xf32, #tpu.memory_space<smem>>
    %491 = vector.extract_strided_slice %7 {offsets = [7, 0, 0], sizes = [4, 8, 2], strides = [1, 1, 1]} : vector<16x8x2xf32> to vector<4x8x2xf32>
    %492 = vector.broadcast %490 : f32 to vector<4x8x2xf32>
    %493 = arith.mulf %491, %492 : vector<4x8x2xf32>
    %494 = arith.addf %489, %493 : vector<4x8x2xf32>
    %c96 = arith.constant 96 : index
    %495 = memref.load %arg2[%c96] : memref<169xf32, #tpu.memory_space<smem>>
    %496 = vector.extract_strided_slice %8 {offsets = [7, 0, 0], sizes = [4, 8, 2], strides = [1, 1, 1]} : vector<16x8x2xf32> to vector<4x8x2xf32>
    %497 = vector.broadcast %495 : f32 to vector<4x8x2xf32>
    %498 = arith.mulf %496, %497 : vector<4x8x2xf32>
    %499 = arith.addf %494, %498 : vector<4x8x2xf32>
    %c97 = arith.constant 97 : index
    %500 = memref.load %arg2[%c97] : memref<169xf32, #tpu.memory_space<smem>>
    %501 = vector.extract_strided_slice %9 {offsets = [7, 0, 0], sizes = [4, 8, 2], strides = [1, 1, 1]} : vector<16x8x2xf32> to vector<4x8x2xf32>
    %502 = vector.broadcast %500 : f32 to vector<4x8x2xf32>
    %503 = arith.mulf %501, %502 : vector<4x8x2xf32>
    %504 = arith.addf %499, %503 : vector<4x8x2xf32>
    %c98 = arith.constant 98 : index
    %505 = memref.load %arg2[%c98] : memref<169xf32, #tpu.memory_space<smem>>
    %506 = vector.extract_strided_slice %10 {offsets = [7, 0, 0], sizes = [4, 8, 2], strides = [1, 1, 1]} : vector<16x8x2xf32> to vector<4x8x2xf32>
    %507 = vector.broadcast %505 : f32 to vector<4x8x2xf32>
    %508 = arith.mulf %506, %507 : vector<4x8x2xf32>
    %509 = arith.addf %504, %508 : vector<4x8x2xf32>
    %c99 = arith.constant 99 : index
    %510 = memref.load %arg2[%c99] : memref<169xf32, #tpu.memory_space<smem>>
    %511 = vector.extract_strided_slice %11 {offsets = [7, 0, 0], sizes = [4, 8, 2], strides = [1, 1, 1]} : vector<16x8x2xf32> to vector<4x8x2xf32>
    %512 = vector.broadcast %510 : f32 to vector<4x8x2xf32>
    %513 = arith.mulf %511, %512 : vector<4x8x2xf32>
    %514 = arith.addf %509, %513 : vector<4x8x2xf32>
    %c100 = arith.constant 100 : index
    %515 = memref.load %arg2[%c100] : memref<169xf32, #tpu.memory_space<smem>>
    %516 = vector.extract_strided_slice %12 {offsets = [7, 0, 0], sizes = [4, 8, 2], strides = [1, 1, 1]} : vector<16x8x2xf32> to vector<4x8x2xf32>
    %517 = vector.broadcast %515 : f32 to vector<4x8x2xf32>
    %518 = arith.mulf %516, %517 : vector<4x8x2xf32>
    %519 = arith.addf %514, %518 : vector<4x8x2xf32>
    %c101 = arith.constant 101 : index
    %520 = memref.load %arg2[%c101] : memref<169xf32, #tpu.memory_space<smem>>
    %521 = vector.extract_strided_slice %13 {offsets = [7, 0, 0], sizes = [4, 8, 2], strides = [1, 1, 1]} : vector<16x8x2xf32> to vector<4x8x2xf32>
    %522 = vector.broadcast %520 : f32 to vector<4x8x2xf32>
    %523 = arith.mulf %521, %522 : vector<4x8x2xf32>
    %524 = arith.addf %519, %523 : vector<4x8x2xf32>
    %c102 = arith.constant 102 : index
    %525 = memref.load %arg2[%c102] : memref<169xf32, #tpu.memory_space<smem>>
    %526 = vector.extract_strided_slice %14 {offsets = [7, 0, 0], sizes = [4, 8, 2], strides = [1, 1, 1]} : vector<16x8x2xf32> to vector<4x8x2xf32>
    %527 = vector.broadcast %525 : f32 to vector<4x8x2xf32>
    %528 = arith.mulf %526, %527 : vector<4x8x2xf32>
    %529 = arith.addf %524, %528 : vector<4x8x2xf32>
    %c103 = arith.constant 103 : index
    %530 = memref.load %arg2[%c103] : memref<169xf32, #tpu.memory_space<smem>>
    %531 = vector.extract_strided_slice %15 {offsets = [7, 0, 0], sizes = [4, 8, 2], strides = [1, 1, 1]} : vector<16x8x2xf32> to vector<4x8x2xf32>
    %532 = vector.broadcast %530 : f32 to vector<4x8x2xf32>
    %533 = arith.mulf %531, %532 : vector<4x8x2xf32>
    %534 = arith.addf %529, %533 : vector<4x8x2xf32>
    %c104 = arith.constant 104 : index
    %535 = memref.load %arg2[%c104] : memref<169xf32, #tpu.memory_space<smem>>
    %536 = vector.extract_strided_slice %3 {offsets = [8, 0, 0], sizes = [4, 8, 2], strides = [1, 1, 1]} : vector<16x8x2xf32> to vector<4x8x2xf32>
    %537 = vector.broadcast %535 : f32 to vector<4x8x2xf32>
    %538 = arith.mulf %536, %537 : vector<4x8x2xf32>
    %539 = arith.addf %534, %538 : vector<4x8x2xf32>
    %c105 = arith.constant 105 : index
    %540 = memref.load %arg2[%c105] : memref<169xf32, #tpu.memory_space<smem>>
    %541 = vector.extract_strided_slice %4 {offsets = [8, 0, 0], sizes = [4, 8, 2], strides = [1, 1, 1]} : vector<16x8x2xf32> to vector<4x8x2xf32>
    %542 = vector.broadcast %540 : f32 to vector<4x8x2xf32>
    %543 = arith.mulf %541, %542 : vector<4x8x2xf32>
    %544 = arith.addf %539, %543 : vector<4x8x2xf32>
    %c106 = arith.constant 106 : index
    %545 = memref.load %arg2[%c106] : memref<169xf32, #tpu.memory_space<smem>>
    %546 = vector.extract_strided_slice %5 {offsets = [8, 0, 0], sizes = [4, 8, 2], strides = [1, 1, 1]} : vector<16x8x2xf32> to vector<4x8x2xf32>
    %547 = vector.broadcast %545 : f32 to vector<4x8x2xf32>
    %548 = arith.mulf %546, %547 : vector<4x8x2xf32>
    %549 = arith.addf %544, %548 : vector<4x8x2xf32>
    %c107 = arith.constant 107 : index
    %550 = memref.load %arg2[%c107] : memref<169xf32, #tpu.memory_space<smem>>
    %551 = vector.extract_strided_slice %6 {offsets = [8, 0, 0], sizes = [4, 8, 2], strides = [1, 1, 1]} : vector<16x8x2xf32> to vector<4x8x2xf32>
    %552 = vector.broadcast %550 : f32 to vector<4x8x2xf32>
    %553 = arith.mulf %551, %552 : vector<4x8x2xf32>
    %554 = arith.addf %549, %553 : vector<4x8x2xf32>
    %c108 = arith.constant 108 : index
    %555 = memref.load %arg2[%c108] : memref<169xf32, #tpu.memory_space<smem>>
    %556 = vector.extract_strided_slice %7 {offsets = [8, 0, 0], sizes = [4, 8, 2], strides = [1, 1, 1]} : vector<16x8x2xf32> to vector<4x8x2xf32>
    %557 = vector.broadcast %555 : f32 to vector<4x8x2xf32>
    %558 = arith.mulf %556, %557 : vector<4x8x2xf32>
    %559 = arith.addf %554, %558 : vector<4x8x2xf32>
    %c109 = arith.constant 109 : index
    %560 = memref.load %arg2[%c109] : memref<169xf32, #tpu.memory_space<smem>>
    %561 = vector.extract_strided_slice %8 {offsets = [8, 0, 0], sizes = [4, 8, 2], strides = [1, 1, 1]} : vector<16x8x2xf32> to vector<4x8x2xf32>
    %562 = vector.broadcast %560 : f32 to vector<4x8x2xf32>
    %563 = arith.mulf %561, %562 : vector<4x8x2xf32>
    %564 = arith.addf %559, %563 : vector<4x8x2xf32>
    %c110 = arith.constant 110 : index
    %565 = memref.load %arg2[%c110] : memref<169xf32, #tpu.memory_space<smem>>
    %566 = vector.extract_strided_slice %9 {offsets = [8, 0, 0], sizes = [4, 8, 2], strides = [1, 1, 1]} : vector<16x8x2xf32> to vector<4x8x2xf32>
    %567 = vector.broadcast %565 : f32 to vector<4x8x2xf32>
    %568 = arith.mulf %566, %567 : vector<4x8x2xf32>
    %569 = arith.addf %564, %568 : vector<4x8x2xf32>
    %c111 = arith.constant 111 : index
    %570 = memref.load %arg2[%c111] : memref<169xf32, #tpu.memory_space<smem>>
    %571 = vector.extract_strided_slice %10 {offsets = [8, 0, 0], sizes = [4, 8, 2], strides = [1, 1, 1]} : vector<16x8x2xf32> to vector<4x8x2xf32>
    %572 = vector.broadcast %570 : f32 to vector<4x8x2xf32>
    %573 = arith.mulf %571, %572 : vector<4x8x2xf32>
    %574 = arith.addf %569, %573 : vector<4x8x2xf32>
    %c112 = arith.constant 112 : index
    %575 = memref.load %arg2[%c112] : memref<169xf32, #tpu.memory_space<smem>>
    %576 = vector.extract_strided_slice %11 {offsets = [8, 0, 0], sizes = [4, 8, 2], strides = [1, 1, 1]} : vector<16x8x2xf32> to vector<4x8x2xf32>
    %577 = vector.broadcast %575 : f32 to vector<4x8x2xf32>
    %578 = arith.mulf %576, %577 : vector<4x8x2xf32>
    %579 = arith.addf %574, %578 : vector<4x8x2xf32>
    %c113 = arith.constant 113 : index
    %580 = memref.load %arg2[%c113] : memref<169xf32, #tpu.memory_space<smem>>
    %581 = vector.extract_strided_slice %12 {offsets = [8, 0, 0], sizes = [4, 8, 2], strides = [1, 1, 1]} : vector<16x8x2xf32> to vector<4x8x2xf32>
    %582 = vector.broadcast %580 : f32 to vector<4x8x2xf32>
    %583 = arith.mulf %581, %582 : vector<4x8x2xf32>
    %584 = arith.addf %579, %583 : vector<4x8x2xf32>
    %c114 = arith.constant 114 : index
    %585 = memref.load %arg2[%c114] : memref<169xf32, #tpu.memory_space<smem>>
    %586 = vector.extract_strided_slice %13 {offsets = [8, 0, 0], sizes = [4, 8, 2], strides = [1, 1, 1]} : vector<16x8x2xf32> to vector<4x8x2xf32>
    %587 = vector.broadcast %585 : f32 to vector<4x8x2xf32>
    %588 = arith.mulf %586, %587 : vector<4x8x2xf32>
    %589 = arith.addf %584, %588 : vector<4x8x2xf32>
    %c115 = arith.constant 115 : index
    %590 = memref.load %arg2[%c115] : memref<169xf32, #tpu.memory_space<smem>>
    %591 = vector.extract_strided_slice %14 {offsets = [8, 0, 0], sizes = [4, 8, 2], strides = [1, 1, 1]} : vector<16x8x2xf32> to vector<4x8x2xf32>
    %592 = vector.broadcast %590 : f32 to vector<4x8x2xf32>
    %593 = arith.mulf %591, %592 : vector<4x8x2xf32>
    %594 = arith.addf %589, %593 : vector<4x8x2xf32>
    %c116 = arith.constant 116 : index
    %595 = memref.load %arg2[%c116] : memref<169xf32, #tpu.memory_space<smem>>
    %596 = vector.extract_strided_slice %15 {offsets = [8, 0, 0], sizes = [4, 8, 2], strides = [1, 1, 1]} : vector<16x8x2xf32> to vector<4x8x2xf32>
    %597 = vector.broadcast %595 : f32 to vector<4x8x2xf32>
    %598 = arith.mulf %596, %597 : vector<4x8x2xf32>
    %599 = arith.addf %594, %598 : vector<4x8x2xf32>
    %c117 = arith.constant 117 : index
    %600 = memref.load %arg2[%c117] : memref<169xf32, #tpu.memory_space<smem>>
    %601 = vector.extract_strided_slice %3 {offsets = [9, 0, 0], sizes = [4, 8, 2], strides = [1, 1, 1]} : vector<16x8x2xf32> to vector<4x8x2xf32>
    %602 = vector.broadcast %600 : f32 to vector<4x8x2xf32>
    %603 = arith.mulf %601, %602 : vector<4x8x2xf32>
    %604 = arith.addf %599, %603 : vector<4x8x2xf32>
    %c118 = arith.constant 118 : index
    %605 = memref.load %arg2[%c118] : memref<169xf32, #tpu.memory_space<smem>>
    %606 = vector.extract_strided_slice %4 {offsets = [9, 0, 0], sizes = [4, 8, 2], strides = [1, 1, 1]} : vector<16x8x2xf32> to vector<4x8x2xf32>
    %607 = vector.broadcast %605 : f32 to vector<4x8x2xf32>
    %608 = arith.mulf %606, %607 : vector<4x8x2xf32>
    %609 = arith.addf %604, %608 : vector<4x8x2xf32>
    %c119 = arith.constant 119 : index
    %610 = memref.load %arg2[%c119] : memref<169xf32, #tpu.memory_space<smem>>
    %611 = vector.extract_strided_slice %5 {offsets = [9, 0, 0], sizes = [4, 8, 2], strides = [1, 1, 1]} : vector<16x8x2xf32> to vector<4x8x2xf32>
    %612 = vector.broadcast %610 : f32 to vector<4x8x2xf32>
    %613 = arith.mulf %611, %612 : vector<4x8x2xf32>
    %614 = arith.addf %609, %613 : vector<4x8x2xf32>
    %c120 = arith.constant 120 : index
    %615 = memref.load %arg2[%c120] : memref<169xf32, #tpu.memory_space<smem>>
    %616 = vector.extract_strided_slice %6 {offsets = [9, 0, 0], sizes = [4, 8, 2], strides = [1, 1, 1]} : vector<16x8x2xf32> to vector<4x8x2xf32>
    %617 = vector.broadcast %615 : f32 to vector<4x8x2xf32>
    %618 = arith.mulf %616, %617 : vector<4x8x2xf32>
    %619 = arith.addf %614, %618 : vector<4x8x2xf32>
    %c121 = arith.constant 121 : index
    %620 = memref.load %arg2[%c121] : memref<169xf32, #tpu.memory_space<smem>>
    %621 = vector.extract_strided_slice %7 {offsets = [9, 0, 0], sizes = [4, 8, 2], strides = [1, 1, 1]} : vector<16x8x2xf32> to vector<4x8x2xf32>
    %622 = vector.broadcast %620 : f32 to vector<4x8x2xf32>
    %623 = arith.mulf %621, %622 : vector<4x8x2xf32>
    %624 = arith.addf %619, %623 : vector<4x8x2xf32>
    %c122 = arith.constant 122 : index
    %625 = memref.load %arg2[%c122] : memref<169xf32, #tpu.memory_space<smem>>
    %626 = vector.extract_strided_slice %8 {offsets = [9, 0, 0], sizes = [4, 8, 2], strides = [1, 1, 1]} : vector<16x8x2xf32> to vector<4x8x2xf32>
    %627 = vector.broadcast %625 : f32 to vector<4x8x2xf32>
    %628 = arith.mulf %626, %627 : vector<4x8x2xf32>
    %629 = arith.addf %624, %628 : vector<4x8x2xf32>
    %c123 = arith.constant 123 : index
    %630 = memref.load %arg2[%c123] : memref<169xf32, #tpu.memory_space<smem>>
    %631 = vector.extract_strided_slice %9 {offsets = [9, 0, 0], sizes = [4, 8, 2], strides = [1, 1, 1]} : vector<16x8x2xf32> to vector<4x8x2xf32>
    %632 = vector.broadcast %630 : f32 to vector<4x8x2xf32>
    %633 = arith.mulf %631, %632 : vector<4x8x2xf32>
    %634 = arith.addf %629, %633 : vector<4x8x2xf32>
    %c124 = arith.constant 124 : index
    %635 = memref.load %arg2[%c124] : memref<169xf32, #tpu.memory_space<smem>>
    %636 = vector.extract_strided_slice %10 {offsets = [9, 0, 0], sizes = [4, 8, 2], strides = [1, 1, 1]} : vector<16x8x2xf32> to vector<4x8x2xf32>
    %637 = vector.broadcast %635 : f32 to vector<4x8x2xf32>
    %638 = arith.mulf %636, %637 : vector<4x8x2xf32>
    %639 = arith.addf %634, %638 : vector<4x8x2xf32>
    %c125 = arith.constant 125 : index
    %640 = memref.load %arg2[%c125] : memref<169xf32, #tpu.memory_space<smem>>
    %641 = vector.extract_strided_slice %11 {offsets = [9, 0, 0], sizes = [4, 8, 2], strides = [1, 1, 1]} : vector<16x8x2xf32> to vector<4x8x2xf32>
    %642 = vector.broadcast %640 : f32 to vector<4x8x2xf32>
    %643 = arith.mulf %641, %642 : vector<4x8x2xf32>
    %644 = arith.addf %639, %643 : vector<4x8x2xf32>
    %c126 = arith.constant 126 : index
    %645 = memref.load %arg2[%c126] : memref<169xf32, #tpu.memory_space<smem>>
    %646 = vector.extract_strided_slice %12 {offsets = [9, 0, 0], sizes = [4, 8, 2], strides = [1, 1, 1]} : vector<16x8x2xf32> to vector<4x8x2xf32>
    %647 = vector.broadcast %645 : f32 to vector<4x8x2xf32>
    %648 = arith.mulf %646, %647 : vector<4x8x2xf32>
    %649 = arith.addf %644, %648 : vector<4x8x2xf32>
    %c127 = arith.constant 127 : index
    %650 = memref.load %arg2[%c127] : memref<169xf32, #tpu.memory_space<smem>>
    %651 = vector.extract_strided_slice %13 {offsets = [9, 0, 0], sizes = [4, 8, 2], strides = [1, 1, 1]} : vector<16x8x2xf32> to vector<4x8x2xf32>
    %652 = vector.broadcast %650 : f32 to vector<4x8x2xf32>
    %653 = arith.mulf %651, %652 : vector<4x8x2xf32>
    %654 = arith.addf %649, %653 : vector<4x8x2xf32>
    %c128 = arith.constant 128 : index
    %655 = memref.load %arg2[%c128] : memref<169xf32, #tpu.memory_space<smem>>
    %656 = vector.extract_strided_slice %14 {offsets = [9, 0, 0], sizes = [4, 8, 2], strides = [1, 1, 1]} : vector<16x8x2xf32> to vector<4x8x2xf32>
    %657 = vector.broadcast %655 : f32 to vector<4x8x2xf32>
    %658 = arith.mulf %656, %657 : vector<4x8x2xf32>
    %659 = arith.addf %654, %658 : vector<4x8x2xf32>
    %c129 = arith.constant 129 : index
    %660 = memref.load %arg2[%c129] : memref<169xf32, #tpu.memory_space<smem>>
    %661 = vector.extract_strided_slice %15 {offsets = [9, 0, 0], sizes = [4, 8, 2], strides = [1, 1, 1]} : vector<16x8x2xf32> to vector<4x8x2xf32>
    %662 = vector.broadcast %660 : f32 to vector<4x8x2xf32>
    %663 = arith.mulf %661, %662 : vector<4x8x2xf32>
    %664 = arith.addf %659, %663 : vector<4x8x2xf32>
    %c130 = arith.constant 130 : index
    %665 = memref.load %arg2[%c130] : memref<169xf32, #tpu.memory_space<smem>>
    %666 = vector.extract_strided_slice %3 {offsets = [10, 0, 0], sizes = [4, 8, 2], strides = [1, 1, 1]} : vector<16x8x2xf32> to vector<4x8x2xf32>
    %667 = vector.broadcast %665 : f32 to vector<4x8x2xf32>
    %668 = arith.mulf %666, %667 : vector<4x8x2xf32>
    %669 = arith.addf %664, %668 : vector<4x8x2xf32>
    %c131 = arith.constant 131 : index
    %670 = memref.load %arg2[%c131] : memref<169xf32, #tpu.memory_space<smem>>
    %671 = vector.extract_strided_slice %4 {offsets = [10, 0, 0], sizes = [4, 8, 2], strides = [1, 1, 1]} : vector<16x8x2xf32> to vector<4x8x2xf32>
    %672 = vector.broadcast %670 : f32 to vector<4x8x2xf32>
    %673 = arith.mulf %671, %672 : vector<4x8x2xf32>
    %674 = arith.addf %669, %673 : vector<4x8x2xf32>
    %c132 = arith.constant 132 : index
    %675 = memref.load %arg2[%c132] : memref<169xf32, #tpu.memory_space<smem>>
    %676 = vector.extract_strided_slice %5 {offsets = [10, 0, 0], sizes = [4, 8, 2], strides = [1, 1, 1]} : vector<16x8x2xf32> to vector<4x8x2xf32>
    %677 = vector.broadcast %675 : f32 to vector<4x8x2xf32>
    %678 = arith.mulf %676, %677 : vector<4x8x2xf32>
    %679 = arith.addf %674, %678 : vector<4x8x2xf32>
    %c133 = arith.constant 133 : index
    %680 = memref.load %arg2[%c133] : memref<169xf32, #tpu.memory_space<smem>>
    %681 = vector.extract_strided_slice %6 {offsets = [10, 0, 0], sizes = [4, 8, 2], strides = [1, 1, 1]} : vector<16x8x2xf32> to vector<4x8x2xf32>
    %682 = vector.broadcast %680 : f32 to vector<4x8x2xf32>
    %683 = arith.mulf %681, %682 : vector<4x8x2xf32>
    %684 = arith.addf %679, %683 : vector<4x8x2xf32>
    %c134 = arith.constant 134 : index
    %685 = memref.load %arg2[%c134] : memref<169xf32, #tpu.memory_space<smem>>
    %686 = vector.extract_strided_slice %7 {offsets = [10, 0, 0], sizes = [4, 8, 2], strides = [1, 1, 1]} : vector<16x8x2xf32> to vector<4x8x2xf32>
    %687 = vector.broadcast %685 : f32 to vector<4x8x2xf32>
    %688 = arith.mulf %686, %687 : vector<4x8x2xf32>
    %689 = arith.addf %684, %688 : vector<4x8x2xf32>
    %c135 = arith.constant 135 : index
    %690 = memref.load %arg2[%c135] : memref<169xf32, #tpu.memory_space<smem>>
    %691 = vector.extract_strided_slice %8 {offsets = [10, 0, 0], sizes = [4, 8, 2], strides = [1, 1, 1]} : vector<16x8x2xf32> to vector<4x8x2xf32>
    %692 = vector.broadcast %690 : f32 to vector<4x8x2xf32>
    %693 = arith.mulf %691, %692 : vector<4x8x2xf32>
    %694 = arith.addf %689, %693 : vector<4x8x2xf32>
    %c136 = arith.constant 136 : index
    %695 = memref.load %arg2[%c136] : memref<169xf32, #tpu.memory_space<smem>>
    %696 = vector.extract_strided_slice %9 {offsets = [10, 0, 0], sizes = [4, 8, 2], strides = [1, 1, 1]} : vector<16x8x2xf32> to vector<4x8x2xf32>
    %697 = vector.broadcast %695 : f32 to vector<4x8x2xf32>
    %698 = arith.mulf %696, %697 : vector<4x8x2xf32>
    %699 = arith.addf %694, %698 : vector<4x8x2xf32>
    %c137 = arith.constant 137 : index
    %700 = memref.load %arg2[%c137] : memref<169xf32, #tpu.memory_space<smem>>
    %701 = vector.extract_strided_slice %10 {offsets = [10, 0, 0], sizes = [4, 8, 2], strides = [1, 1, 1]} : vector<16x8x2xf32> to vector<4x8x2xf32>
    %702 = vector.broadcast %700 : f32 to vector<4x8x2xf32>
    %703 = arith.mulf %701, %702 : vector<4x8x2xf32>
    %704 = arith.addf %699, %703 : vector<4x8x2xf32>
    %c138 = arith.constant 138 : index
    %705 = memref.load %arg2[%c138] : memref<169xf32, #tpu.memory_space<smem>>
    %706 = vector.extract_strided_slice %11 {offsets = [10, 0, 0], sizes = [4, 8, 2], strides = [1, 1, 1]} : vector<16x8x2xf32> to vector<4x8x2xf32>
    %707 = vector.broadcast %705 : f32 to vector<4x8x2xf32>
    %708 = arith.mulf %706, %707 : vector<4x8x2xf32>
    %709 = arith.addf %704, %708 : vector<4x8x2xf32>
    %c139 = arith.constant 139 : index
    %710 = memref.load %arg2[%c139] : memref<169xf32, #tpu.memory_space<smem>>
    %711 = vector.extract_strided_slice %12 {offsets = [10, 0, 0], sizes = [4, 8, 2], strides = [1, 1, 1]} : vector<16x8x2xf32> to vector<4x8x2xf32>
    %712 = vector.broadcast %710 : f32 to vector<4x8x2xf32>
    %713 = arith.mulf %711, %712 : vector<4x8x2xf32>
    %714 = arith.addf %709, %713 : vector<4x8x2xf32>
    %c140 = arith.constant 140 : index
    %715 = memref.load %arg2[%c140] : memref<169xf32, #tpu.memory_space<smem>>
    %716 = vector.extract_strided_slice %13 {offsets = [10, 0, 0], sizes = [4, 8, 2], strides = [1, 1, 1]} : vector<16x8x2xf32> to vector<4x8x2xf32>
    %717 = vector.broadcast %715 : f32 to vector<4x8x2xf32>
    %718 = arith.mulf %716, %717 : vector<4x8x2xf32>
    %719 = arith.addf %714, %718 : vector<4x8x2xf32>
    %c141 = arith.constant 141 : index
    %720 = memref.load %arg2[%c141] : memref<169xf32, #tpu.memory_space<smem>>
    %721 = vector.extract_strided_slice %14 {offsets = [10, 0, 0], sizes = [4, 8, 2], strides = [1, 1, 1]} : vector<16x8x2xf32> to vector<4x8x2xf32>
    %722 = vector.broadcast %720 : f32 to vector<4x8x2xf32>
    %723 = arith.mulf %721, %722 : vector<4x8x2xf32>
    %724 = arith.addf %719, %723 : vector<4x8x2xf32>
    %c142 = arith.constant 142 : index
    %725 = memref.load %arg2[%c142] : memref<169xf32, #tpu.memory_space<smem>>
    %726 = vector.extract_strided_slice %15 {offsets = [10, 0, 0], sizes = [4, 8, 2], strides = [1, 1, 1]} : vector<16x8x2xf32> to vector<4x8x2xf32>
    %727 = vector.broadcast %725 : f32 to vector<4x8x2xf32>
    %728 = arith.mulf %726, %727 : vector<4x8x2xf32>
    %729 = arith.addf %724, %728 : vector<4x8x2xf32>
    %c143 = arith.constant 143 : index
    %730 = memref.load %arg2[%c143] : memref<169xf32, #tpu.memory_space<smem>>
    %731 = vector.extract_strided_slice %3 {offsets = [11, 0, 0], sizes = [4, 8, 2], strides = [1, 1, 1]} : vector<16x8x2xf32> to vector<4x8x2xf32>
    %732 = vector.broadcast %730 : f32 to vector<4x8x2xf32>
    %733 = arith.mulf %731, %732 : vector<4x8x2xf32>
    %734 = arith.addf %729, %733 : vector<4x8x2xf32>
    %c144 = arith.constant 144 : index
    %735 = memref.load %arg2[%c144] : memref<169xf32, #tpu.memory_space<smem>>
    %736 = vector.extract_strided_slice %4 {offsets = [11, 0, 0], sizes = [4, 8, 2], strides = [1, 1, 1]} : vector<16x8x2xf32> to vector<4x8x2xf32>
    %737 = vector.broadcast %735 : f32 to vector<4x8x2xf32>
    %738 = arith.mulf %736, %737 : vector<4x8x2xf32>
    %739 = arith.addf %734, %738 : vector<4x8x2xf32>
    %c145 = arith.constant 145 : index
    %740 = memref.load %arg2[%c145] : memref<169xf32, #tpu.memory_space<smem>>
    %741 = vector.extract_strided_slice %5 {offsets = [11, 0, 0], sizes = [4, 8, 2], strides = [1, 1, 1]} : vector<16x8x2xf32> to vector<4x8x2xf32>
    %742 = vector.broadcast %740 : f32 to vector<4x8x2xf32>
    %743 = arith.mulf %741, %742 : vector<4x8x2xf32>
    %744 = arith.addf %739, %743 : vector<4x8x2xf32>
    %c146 = arith.constant 146 : index
    %745 = memref.load %arg2[%c146] : memref<169xf32, #tpu.memory_space<smem>>
    %746 = vector.extract_strided_slice %6 {offsets = [11, 0, 0], sizes = [4, 8, 2], strides = [1, 1, 1]} : vector<16x8x2xf32> to vector<4x8x2xf32>
    %747 = vector.broadcast %745 : f32 to vector<4x8x2xf32>
    %748 = arith.mulf %746, %747 : vector<4x8x2xf32>
    %749 = arith.addf %744, %748 : vector<4x8x2xf32>
    %c147 = arith.constant 147 : index
    %750 = memref.load %arg2[%c147] : memref<169xf32, #tpu.memory_space<smem>>
    %751 = vector.extract_strided_slice %7 {offsets = [11, 0, 0], sizes = [4, 8, 2], strides = [1, 1, 1]} : vector<16x8x2xf32> to vector<4x8x2xf32>
    %752 = vector.broadcast %750 : f32 to vector<4x8x2xf32>
    %753 = arith.mulf %751, %752 : vector<4x8x2xf32>
    %754 = arith.addf %749, %753 : vector<4x8x2xf32>
    %c148 = arith.constant 148 : index
    %755 = memref.load %arg2[%c148] : memref<169xf32, #tpu.memory_space<smem>>
    %756 = vector.extract_strided_slice %8 {offsets = [11, 0, 0], sizes = [4, 8, 2], strides = [1, 1, 1]} : vector<16x8x2xf32> to vector<4x8x2xf32>
    %757 = vector.broadcast %755 : f32 to vector<4x8x2xf32>
    %758 = arith.mulf %756, %757 : vector<4x8x2xf32>
    %759 = arith.addf %754, %758 : vector<4x8x2xf32>
    %c149 = arith.constant 149 : index
    %760 = memref.load %arg2[%c149] : memref<169xf32, #tpu.memory_space<smem>>
    %761 = vector.extract_strided_slice %9 {offsets = [11, 0, 0], sizes = [4, 8, 2], strides = [1, 1, 1]} : vector<16x8x2xf32> to vector<4x8x2xf32>
    %762 = vector.broadcast %760 : f32 to vector<4x8x2xf32>
    %763 = arith.mulf %761, %762 : vector<4x8x2xf32>
    %764 = arith.addf %759, %763 : vector<4x8x2xf32>
    %c150 = arith.constant 150 : index
    %765 = memref.load %arg2[%c150] : memref<169xf32, #tpu.memory_space<smem>>
    %766 = vector.extract_strided_slice %10 {offsets = [11, 0, 0], sizes = [4, 8, 2], strides = [1, 1, 1]} : vector<16x8x2xf32> to vector<4x8x2xf32>
    %767 = vector.broadcast %765 : f32 to vector<4x8x2xf32>
    %768 = arith.mulf %766, %767 : vector<4x8x2xf32>
    %769 = arith.addf %764, %768 : vector<4x8x2xf32>
    %c151 = arith.constant 151 : index
    %770 = memref.load %arg2[%c151] : memref<169xf32, #tpu.memory_space<smem>>
    %771 = vector.extract_strided_slice %11 {offsets = [11, 0, 0], sizes = [4, 8, 2], strides = [1, 1, 1]} : vector<16x8x2xf32> to vector<4x8x2xf32>
    %772 = vector.broadcast %770 : f32 to vector<4x8x2xf32>
    %773 = arith.mulf %771, %772 : vector<4x8x2xf32>
    %774 = arith.addf %769, %773 : vector<4x8x2xf32>
    %c152 = arith.constant 152 : index
    %775 = memref.load %arg2[%c152] : memref<169xf32, #tpu.memory_space<smem>>
    %776 = vector.extract_strided_slice %12 {offsets = [11, 0, 0], sizes = [4, 8, 2], strides = [1, 1, 1]} : vector<16x8x2xf32> to vector<4x8x2xf32>
    %777 = vector.broadcast %775 : f32 to vector<4x8x2xf32>
    %778 = arith.mulf %776, %777 : vector<4x8x2xf32>
    %779 = arith.addf %774, %778 : vector<4x8x2xf32>
    %c153 = arith.constant 153 : index
    %780 = memref.load %arg2[%c153] : memref<169xf32, #tpu.memory_space<smem>>
    %781 = vector.extract_strided_slice %13 {offsets = [11, 0, 0], sizes = [4, 8, 2], strides = [1, 1, 1]} : vector<16x8x2xf32> to vector<4x8x2xf32>
    %782 = vector.broadcast %780 : f32 to vector<4x8x2xf32>
    %783 = arith.mulf %781, %782 : vector<4x8x2xf32>
    %784 = arith.addf %779, %783 : vector<4x8x2xf32>
    %c154 = arith.constant 154 : index
    %785 = memref.load %arg2[%c154] : memref<169xf32, #tpu.memory_space<smem>>
    %786 = vector.extract_strided_slice %14 {offsets = [11, 0, 0], sizes = [4, 8, 2], strides = [1, 1, 1]} : vector<16x8x2xf32> to vector<4x8x2xf32>
    %787 = vector.broadcast %785 : f32 to vector<4x8x2xf32>
    %788 = arith.mulf %786, %787 : vector<4x8x2xf32>
    %789 = arith.addf %784, %788 : vector<4x8x2xf32>
    %c155 = arith.constant 155 : index
    %790 = memref.load %arg2[%c155] : memref<169xf32, #tpu.memory_space<smem>>
    %791 = vector.extract_strided_slice %15 {offsets = [11, 0, 0], sizes = [4, 8, 2], strides = [1, 1, 1]} : vector<16x8x2xf32> to vector<4x8x2xf32>
    %792 = vector.broadcast %790 : f32 to vector<4x8x2xf32>
    %793 = arith.mulf %791, %792 : vector<4x8x2xf32>
    %794 = arith.addf %789, %793 : vector<4x8x2xf32>
    %c156 = arith.constant 156 : index
    %795 = memref.load %arg2[%c156] : memref<169xf32, #tpu.memory_space<smem>>
    %796 = vector.extract_strided_slice %3 {offsets = [12, 0, 0], sizes = [4, 8, 2], strides = [1, 1, 1]} : vector<16x8x2xf32> to vector<4x8x2xf32>
    %797 = vector.broadcast %795 : f32 to vector<4x8x2xf32>
    %798 = arith.mulf %796, %797 : vector<4x8x2xf32>
    %799 = arith.addf %794, %798 : vector<4x8x2xf32>
    %c157 = arith.constant 157 : index
    %800 = memref.load %arg2[%c157] : memref<169xf32, #tpu.memory_space<smem>>
    %801 = vector.extract_strided_slice %4 {offsets = [12, 0, 0], sizes = [4, 8, 2], strides = [1, 1, 1]} : vector<16x8x2xf32> to vector<4x8x2xf32>
    %802 = vector.broadcast %800 : f32 to vector<4x8x2xf32>
    %803 = arith.mulf %801, %802 : vector<4x8x2xf32>
    %804 = arith.addf %799, %803 : vector<4x8x2xf32>
    %c158 = arith.constant 158 : index
    %805 = memref.load %arg2[%c158] : memref<169xf32, #tpu.memory_space<smem>>
    %806 = vector.extract_strided_slice %5 {offsets = [12, 0, 0], sizes = [4, 8, 2], strides = [1, 1, 1]} : vector<16x8x2xf32> to vector<4x8x2xf32>
    %807 = vector.broadcast %805 : f32 to vector<4x8x2xf32>
    %808 = arith.mulf %806, %807 : vector<4x8x2xf32>
    %809 = arith.addf %804, %808 : vector<4x8x2xf32>
    %c159 = arith.constant 159 : index
    %810 = memref.load %arg2[%c159] : memref<169xf32, #tpu.memory_space<smem>>
    %811 = vector.extract_strided_slice %6 {offsets = [12, 0, 0], sizes = [4, 8, 2], strides = [1, 1, 1]} : vector<16x8x2xf32> to vector<4x8x2xf32>
    %812 = vector.broadcast %810 : f32 to vector<4x8x2xf32>
    %813 = arith.mulf %811, %812 : vector<4x8x2xf32>
    %814 = arith.addf %809, %813 : vector<4x8x2xf32>
    %c160 = arith.constant 160 : index
    %815 = memref.load %arg2[%c160] : memref<169xf32, #tpu.memory_space<smem>>
    %816 = vector.extract_strided_slice %7 {offsets = [12, 0, 0], sizes = [4, 8, 2], strides = [1, 1, 1]} : vector<16x8x2xf32> to vector<4x8x2xf32>
    %817 = vector.broadcast %815 : f32 to vector<4x8x2xf32>
    %818 = arith.mulf %816, %817 : vector<4x8x2xf32>
    %819 = arith.addf %814, %818 : vector<4x8x2xf32>
    %c161 = arith.constant 161 : index
    %820 = memref.load %arg2[%c161] : memref<169xf32, #tpu.memory_space<smem>>
    %821 = vector.extract_strided_slice %8 {offsets = [12, 0, 0], sizes = [4, 8, 2], strides = [1, 1, 1]} : vector<16x8x2xf32> to vector<4x8x2xf32>
    %822 = vector.broadcast %820 : f32 to vector<4x8x2xf32>
    %823 = arith.mulf %821, %822 : vector<4x8x2xf32>
    %824 = arith.addf %819, %823 : vector<4x8x2xf32>
    %c162 = arith.constant 162 : index
    %825 = memref.load %arg2[%c162] : memref<169xf32, #tpu.memory_space<smem>>
    %826 = vector.extract_strided_slice %9 {offsets = [12, 0, 0], sizes = [4, 8, 2], strides = [1, 1, 1]} : vector<16x8x2xf32> to vector<4x8x2xf32>
    %827 = vector.broadcast %825 : f32 to vector<4x8x2xf32>
    %828 = arith.mulf %826, %827 : vector<4x8x2xf32>
    %829 = arith.addf %824, %828 : vector<4x8x2xf32>
    %c163 = arith.constant 163 : index
    %830 = memref.load %arg2[%c163] : memref<169xf32, #tpu.memory_space<smem>>
    %831 = vector.extract_strided_slice %10 {offsets = [12, 0, 0], sizes = [4, 8, 2], strides = [1, 1, 1]} : vector<16x8x2xf32> to vector<4x8x2xf32>
    %832 = vector.broadcast %830 : f32 to vector<4x8x2xf32>
    %833 = arith.mulf %831, %832 : vector<4x8x2xf32>
    %834 = arith.addf %829, %833 : vector<4x8x2xf32>
    %c164 = arith.constant 164 : index
    %835 = memref.load %arg2[%c164] : memref<169xf32, #tpu.memory_space<smem>>
    %836 = vector.extract_strided_slice %11 {offsets = [12, 0, 0], sizes = [4, 8, 2], strides = [1, 1, 1]} : vector<16x8x2xf32> to vector<4x8x2xf32>
    %837 = vector.broadcast %835 : f32 to vector<4x8x2xf32>
    %838 = arith.mulf %836, %837 : vector<4x8x2xf32>
    %839 = arith.addf %834, %838 : vector<4x8x2xf32>
    %c165 = arith.constant 165 : index
    %840 = memref.load %arg2[%c165] : memref<169xf32, #tpu.memory_space<smem>>
    %841 = vector.extract_strided_slice %12 {offsets = [12, 0, 0], sizes = [4, 8, 2], strides = [1, 1, 1]} : vector<16x8x2xf32> to vector<4x8x2xf32>
    %842 = vector.broadcast %840 : f32 to vector<4x8x2xf32>
    %843 = arith.mulf %841, %842 : vector<4x8x2xf32>
    %844 = arith.addf %839, %843 : vector<4x8x2xf32>
    %c166 = arith.constant 166 : index
    %845 = memref.load %arg2[%c166] : memref<169xf32, #tpu.memory_space<smem>>
    %846 = vector.extract_strided_slice %13 {offsets = [12, 0, 0], sizes = [4, 8, 2], strides = [1, 1, 1]} : vector<16x8x2xf32> to vector<4x8x2xf32>
    %847 = vector.broadcast %845 : f32 to vector<4x8x2xf32>
    %848 = arith.mulf %846, %847 : vector<4x8x2xf32>
    %849 = arith.addf %844, %848 : vector<4x8x2xf32>
    %c167 = arith.constant 167 : index
    %850 = memref.load %arg2[%c167] : memref<169xf32, #tpu.memory_space<smem>>
    %851 = vector.extract_strided_slice %14 {offsets = [12, 0, 0], sizes = [4, 8, 2], strides = [1, 1, 1]} : vector<16x8x2xf32> to vector<4x8x2xf32>
    %852 = vector.broadcast %850 : f32 to vector<4x8x2xf32>
    %853 = arith.mulf %851, %852 : vector<4x8x2xf32>
    %854 = arith.addf %849, %853 : vector<4x8x2xf32>
    %c168 = arith.constant 168 : index
    %855 = memref.load %arg2[%c168] : memref<169xf32, #tpu.memory_space<smem>>
    %856 = vector.extract_strided_slice %15 {offsets = [12, 0, 0], sizes = [4, 8, 2], strides = [1, 1, 1]} : vector<16x8x2xf32> to vector<4x8x2xf32>
    %857 = vector.broadcast %855 : f32 to vector<4x8x2xf32>
    %858 = arith.mulf %856, %857 : vector<4x8x2xf32>
    %859 = arith.addf %854, %858 : vector<4x8x2xf32>
    %c0_2 = arith.constant 0 : index
    %c0_3 = arith.constant 0 : index
    %c0_4 = arith.constant 0 : index
    %860 = vector.load %arg4[%c0_2, %c0_3, %c0_4] : memref<4x8x2xf32, #tpu.memory_space<vmem>>, vector<4x8x2xf32>
    tpu.vector_store %arg4[%c0_2, %c0_3, %c0_4], %859 {strides = array<i32>} : memref<4x8x2xf32, #tpu.memory_space<vmem>>, vector<4x8x2xf32>,
    return
  }
  func.func @transform_0(%arg0: i32, %arg1: i32) -> i32 {
    %c0_i32 = arith.constant 0 : i32
    %c0_i32_0 = arith.constant 0 : i32
    return %c0_i32 : i32
  }
  func.func @transform_1(%arg0: i32, %arg1: i32) -> (i32, i32, i32) {
    %c0_i32 = arith.constant 0 : i32
    %c0_i32_0 = arith.constant 0 : i32
    %c0_i32_1 = arith.constant 0 : i32
    return %c0_i32, %c0_i32_0, %arg0 : i32, i32, i32
  }
  func.func @transform_2(%arg0: i32, %arg1: i32) -> (i32, i32, i32) {
    %c0_i32 = arith.constant 0 : i32
    %c0_i32_0 = arith.constant 0 : i32
    return %arg1, %c0_i32, %arg0 : i32, i32, i32
  }
}

</mosaic_0001>

<llo_original>
// kernel: generator_forward.1
$region0: #{generator_forward.1}
  #allocation0 [shape = 'u32[]', space=smem, size = 0x4, offset = 0x4, fixed_abs, tag = 'smem constant byte address 0x4 - core index']
  #allocation1 [shape = 'u32[144,128]{1,0:T(1,128)}', space=vmem, size = 0x12000, scoped, tag = 'internal scratch']
  %s0 = inlined_call_operand.vmem [shape: f32[169], index: 0, kind: input, shape index: {}]
  %s1 = inlined_call_operand.vmem [shape: f32[20,20,2], index: 1, kind: input, shape index: {}]
  %s2 = inlined_call_operand.vmem [shape: f32[8,8,2], index: 2, kind: output, shape index: {}]
  %s3 = sld [smem:[#allocation0]]
  $region45: #{generator_forward.1} parent=0
    _
  %s5 = ssub.s32 1, %s3
  %s6 = scalar_select 0, %s5, %s3
  $region1: #{generator_forward.1} parent=0
    #allocation2 [shape = 'u8[1024]{0}', space=smem, size = 0x400, scoped, tag = 'input window, operand 0, single buffered']
    #allocation3 [shape = 's32[2]{0}', space=sflag, size = 0x8, scoped, tag = 'scoped memory for generator_forward.1']
    %7 = vsyncpa [#allocation3], 0
    loop: start=0, step=1, limit=4
    $region2: #{generator_forward.1} parent=1 // loop_pre_header
      _
    $region3: #{generator_forward.1} parent=1 // loop_header
      %s9 = sphi 0, %s13
      %p10 = scmp.ge.s32.totalorder %s9, 4
      %s16 = sphi 0, %s28
      %s17 = sphi 0, %s24
      %s18 = sphi 0, %s16
      %s19 = sphi 0, %s17
      %s20 = sphi 0, %s18
      %s21 = sphi 0, %s19
      %s29 = sphi 0, %s29
      %s31 = sphi 0, %s29
      %s32 = sphi 0, %s31
      %s46 = sphi 0, %s32
      %s52 = sphi 0, %s54
      %s55 = sphi 0, %s52
      %s56 = sphi 0, %s55
      %s72 = sphi 0, %s56
      %s80 = sphi 0, %s82
      %s83 = sphi 0, %s80
      %s84 = sphi 0, %s83
      %s100 = sphi 0, %s84
    $region4: #{generator_forward.1} parent=1 // loop_header_branch
      %12 = sbr.rel (%p10) target = $region8
    $region5: #{generator_forward.1} parent=1 // loop_body
      %s14 = ssub.s32 %s9, 1
      %s15 = ssub.s32 %s9, 2
      %s22 = sadd.s32 1, %s17
      %p23 = scmp.ge.s32.totalorder %s22, 2
      %s24 = scalar_select %p23, 0, %s22
      %s25 = sadd.s32 1, %s16
      %s26 = scalar_select %p23, %s25, %s16
      %p27 = scmp.ge.s32.totalorder %s26, 1
      %s28 = scalar_select %p27, 0, %s26
      %s30 = sadd.s32 %s29, 1
      %p33 = scmp.eq.s32.totalorder %s9, 1
      %p34 = scmp.ne.s32.totalorder %s29, %s31
      %p35 = scmp.eq.s32.totalorder %s9, 0
      %p36 = por %p34, %p35
      %p37 = scmp.ne.s32.totalorder %s29, %s31
      %p38 = scmp.eq.s32.totalorder %s14, 1
      %p39 = por %p37, %p38
      %p40 = scmp.ne.s32.totalorder %s31, %s32
      %p41 = scmp.eq.s32.totalorder %s14, 0
      %p42 = por %p40, %p41
      %p43 = scmp.ne.s32.totalorder %s31, %s32
      %p44 = scmp.eq.s32.totalorder %s15, 1
      %p45 = por %p43, %p44
      %p47 = scmp.ne.s32.totalorder %s32, %s46
      %p48 = scmp.eq.s32.totalorder %s15, 0
      %p49 = por %p47, %p48
      %s50 = ssub.s32 %s16, %s28
      %p51 = scmp.eq.s32.totalorder %s50, 0
      %s53 = sadd.s32 %s52, 1
      %s54 = scalar_select %p51, %s52, %s53
      %p57 = pneg %p51
      %p58 = scmp.eq.s32.totalorder %s9, 1
      %p59 = por %p57, %p58
      %p60 = scmp.ne.s32.totalorder %s52, %s55
      %p61 = scmp.eq.s32.totalorder %s9, 0
      %p62 = por %p60, %p61
      %p63 = scmp.ne.s32.totalorder %s52, %s55
      %p64 = scmp.eq.s32.totalorder %s14, 1
      %p65 = por %p63, %p64
      %p66 = scmp.ne.s32.totalorder %s55, %s56
      %p67 = scmp.eq.s32.totalorder %s14, 0
      %p68 = por %p66, %p67
      %p69 = scmp.ne.s32.totalorder %s55, %s56
      %p70 = scmp.eq.s32.totalorder %s15, 1
      %p71 = por %p69, %p70
      %p73 = scmp.ne.s32.totalorder %s56, %s72
      %p74 = scmp.eq.s32.totalorder %s15, 0
      %p75 = por %p73, %p74
      %s76 = ssub.s32 %s17, %s24
      %s77 = ssub.s32 %s16, %s28
      %s78 = sor.u32 %s76, %s77
      %p79 = scmp.eq.s32.totalorder %s78, 0
      %s81 = sadd.s32 %s80, 1
      %s82 = scalar_select %p79, %s80, %s81
      %p85 = pneg %p79
      %p86 = scmp.eq.s32.totalorder %s9, 1
      %p87 = por %p85, %p86
      %p88 = scmp.ne.s32.totalorder %s80, %s83
      %p89 = scmp.eq.s32.totalorder %s9, 0
      %p90 = por %p88, %p89
      %p91 = scmp.ne.s32.totalorder %s80, %s83
      %p92 = scmp.eq.s32.totalorder %s14, 1
      %p93 = por %p91, %p92
      %p94 = scmp.ne.s32.totalorder %s83, %s84
      %p95 = scmp.eq.s32.totalorder %s14, 0
      %p96 = por %p94, %p95
      %p97 = scmp.ne.s32.totalorder %s83, %s84
      %p98 = scmp.eq.s32.totalorder %s15, 1
      %p99 = por %p97, %p98
      %p101 = scmp.ne.s32.totalorder %s84, %s100
      %p102 = scmp.eq.s32.totalorder %s15, 0
      %p103 = por %p101, %p102
      %p104 = scmp.le.s32.totalorder 1, %s9
      %p105 = scmp.lt.s32.totalorder %s9, 3
      %p106 = pnand %p104, %p105
      %p107 = pneg %p106
      // Predicated region
      $region9: #{generator_forward.1} parent=5 // pred_check
        _
      $region10: #{generator_forward.1} parent=5 // pred_check_branch
        %109 = sbr.rel (%p106) target = $region12
      $region11: #{generator_forward.1} parent=5 // pred_region
        %s110 = ssub.s32 %s9, 1
        // Predicated region
        $region13: #{generator_forward.1} parent=11 // pred_check
          %p111 = pneg %p42
        $region14: #{generator_forward.1} parent=11 // pred_check_branch
          %113 = sbr.rel (%p111) target = $region16
        $region15: #{generator_forward.1} parent=11 // pred_region
          %s115 = ssub.s32 32, 32
          %116 = vsyncadd [#allocation3], %s115
          %s118 = sshll.u32 %s0, 4
          %s119 = int_to_ptr.vmem [resolvable:$true] %s118
          %121 = dma.vmem_to_smem %s119, 32, [#allocation2], [#allocation3]
        $region16: #{generator_forward.1} parent=11 // pred_fallthru
          _
        // Predicated region
        $region17: #{generator_forward.1} parent=11 // pred_check
          %p122 = pneg %p68
        $region18: #{generator_forward.1} parent=11 // pred_check_branch
          %124 = sbr.rel (%p122) target = $region20
        $region19: #{generator_forward.1} parent=11 // pred_region
          %p125 = scmp.lt.s32.totalorder %s18, 0
          %s126 = scalar_select %p125, %s18, 0
          %s127 = smul.addr %s126, 8
          %s128 = scalar_lea.vmem %s1, %s127
        $region20: #{generator_forward.1} parent=11 // pred_fallthru
          _
      $region12: #{generator_forward.1} parent=5 // pred_fallthru
        _
      %p129 = scmp.lt.s32.totalorder %s9, 2
      // Predicated region
      $region21: #{generator_forward.1} parent=5 // pred_check
        %p130 = pneg %p129
      $region22: #{generator_forward.1} parent=5 // pred_check_branch
        %132 = sbr.rel (%p130) target = $region24
      $region23: #{generator_forward.1} parent=5 // pred_region
        _
      $region24: #{generator_forward.1} parent=5 // pred_fallthru
        _
      %p133 = scmp.le.s32.totalorder 1, %s9
      %p134 = scmp.lt.s32.totalorder %s9, 3
      %p135 = pnand %p133, %p134
      %p136 = pneg %p135
      // Predicated region
      $region25: #{generator_forward.1} parent=5 // pred_check
        _
      $region26: #{generator_forward.1} parent=5 // pred_check_branch
        %138 = sbr.rel (%p135) target = $region28
      $region27: #{generator_forward.1} parent=5 // pred_region
        %s139 = ssub.s32 %s9, 1
        // Predicated region
        $region29: #{generator_forward.1} parent=27 // pred_check
          %p140 = pneg %p42
        $region30: #{generator_forward.1} parent=27 // pred_check_branch
          %142 = sbr.rel (%p140) target = $region32
        $region31: #{generator_forward.1} parent=27 // pred_region
          %143 = dma.done [#allocation3], 32
        $region32: #{generator_forward.1} parent=27 // pred_fallthru
          _
        %144 = sfence
        %p145 = pneg %p42
        %p146 = pneg %p39
        %p147 = scmp.lt.s32.totalorder %s18, 0
        %s148 = scalar_select %p147, %s18, 0
        %s149 = smul.addr %s148, 8
        %s150 = scalar_lea.vmem %s1, %s149
        %p151 = pneg %p68
        %p152 = pneg %p65
        %p153 = pneg %p96
        %p154 = pneg %p93
        %s155 = smul.u32 4, %s19
        %p156 = scmp.lt.s32.totalorder %s155, 7
        %s157 = scalar_select %p156, %s155, 7
        %p158 = scmp.lt.s32.totalorder %s18, 0
        %s159 = scalar_select %p158, %s18, 0
        %s160 = sadd.s32 %s159, %s157
        %s161 = smul.addr %s160, 8
        %s162 = scalar_lea.vmem %s2, %s161
        %p163 = scmp.lt.s32.totalorder %s18, 0
        %s164 = scalar_select %p163, %s18, 0
        %s165 = smul.addr %s164, 8
        %s166 = scalar_lea.vmem %s1, %s165
        %s167 = smul.u32 4, %s19
        %p168 = scmp.lt.s32.totalorder %s167, 7
        %s169 = scalar_select %p168, %s167, 7
        %p170 = scmp.lt.s32.totalorder %s18, 0
        %s171 = scalar_select %p170, %s18, 0
        %s172 = sadd.s32 %s171, %s169
        %s173 = smul.addr %s172, 8
        %s174 = scalar_lea.vmem %s2, %s173
        %s175 = smul.u32 4, %s19
        %s176 = smul.u32 %s19, 4
        %s177 = smul.u32 %s176, 24
        %s178 = scalar_lea.vmem %s166, %s177
        %v179 = vld [vmem:[%s178] sm:$0xff]
        %v180 = vld [vmem:[%s178 + $0x8] sm:$0xff]
        %v181 = vld [vmem:[%s178 + $0x10] sm:$0xf]
        %v182 = vld [vmem:[%s178 + $0x18] sm:$0xff]
        %v183 = vld [vmem:[%s178 + $0x20] sm:$0xff]
        %v184 = vld [vmem:[%s178 + $0x28] sm:$0xf]
        %v185 = vld [vmem:[%s178 + $0x30] sm:$0xff]
        %v186 = vld [vmem:[%s178 + $0x38] sm:$0xff]
        %v187 = vld [vmem:[%s178 + $0x40] sm:$0xf]
        %v188 = vld [vmem:[%s178 + $0x48] sm:$0xff]
        %v189 = vld [vmem:[%s178 + $0x50] sm:$0xff]
        %v190 = vld [vmem:[%s178 + $0x58] sm:$0xf]
        %v191 = vld [vmem:[%s178 + $0x60] sm:$0xff]
        %v192 = vld [vmem:[%s178 + $0x68] sm:$0xff]
        %v193 = vld [vmem:[%s178 + $0x70] sm:$0xf]
        %v194 = vld [vmem:[%s178 + $0x78] sm:$0xff]
        %v195 = vld [vmem:[%s178 + $0x80] sm:$0xff]
        %v196 = vld [vmem:[%s178 + $0x88] sm:$0xf]
        %v197 = vld [vmem:[%s178 + $0x90] sm:$0xff]
        %v198 = vld [vmem:[%s178 + $0x98] sm:$0xff]
        %v199 = vld [vmem:[%s178 + $0xa0] sm:$0xf]
        %v200 = vld [vmem:[%s178 + $0xa8] sm:$0xff]
        %v201 = vld [vmem:[%s178 + $0xb0] sm:$0xff]
        %v202 = vld [vmem:[%s178 + $0xb8] sm:$0xf]
        %v203 = vld [vmem:[%s178 + $0xc0] sm:$0xff]
        %v204 = vld [vmem:[%s178 + $0xc8] sm:$0xff]
        %v205 = vld [vmem:[%s178 + $0xd0] sm:$0xf]
        %v206 = vld [vmem:[%s178 + $0xd8] sm:$0xff]
        %v207 = vld [vmem:[%s178 + $0xe0] sm:$0xff]
        %v208 = vld [vmem:[%s178 + $0xe8] sm:$0xf]
        %v209 = vld [vmem:[%s178 + $0xf0] sm:$0xff]
        %v210 = vld [vmem:[%s178 + $0xf8] sm:$0xff]
        %v211 = vld [vmem:[%s178 + $0x100] sm:$0xf]
        %v212 = vld [vmem:[%s178 + $0x108] sm:$0xff]
        %v213 = vld [vmem:[%s178 + $0x110] sm:$0xff]
        %v214 = vld [vmem:[%s178 + $0x118] sm:$0xf]
        %v215 = vld [vmem:[%s178 + $0x120] sm:$0xff]
        %v216 = vld [vmem:[%s178 + $0x128] sm:$0xff]
        %v217 = vld [vmem:[%s178 + $0x130] sm:$0xf]
        %v218 = vld [vmem:[%s178 + $0x138] sm:$0xff]
        %v219 = vld [vmem:[%s178 + $0x140] sm:$0xff]
        %v220 = vld [vmem:[%s178 + $0x148] sm:$0xf]
        %v221 = vld [vmem:[%s178 + $0x150] sm:$0xff]
        %v222 = vld [vmem:[%s178 + $0x158] sm:$0xff]
        %v223 = vld [vmem:[%s178 + $0x160] sm:$0xf]
        %v224 = vld [vmem:[%s178 + $0x168] sm:$0xff]
        %v225 = vld [vmem:[%s178 + $0x170] sm:$0xff]
        %v226 = vld [vmem:[%s178 + $0x178] sm:$0xf]
        %s227 = sld [smem:[#allocation2]]
        %v228 = vstv %s227
        %v229 = vmul.f32 %v179, %v228
        %v230 = vmul.f32 %v182, %v228
        %v231 = vmul.f32 %v185, %v228
        %v232 = vmul.f32 %v188, %v228
        %s233 = sld [smem:[#allocation2 + $0x1]]
        %v234 = vstv %s233
        %v235 = vmul.f32 %v179, %v234
        %v236 = vmul.f32 %v180, %v234
        %v237 = vmul.f32 %v182, %v234
        %v238 = vmul.f32 %v183, %v234
        %v239 = vmul.f32 %v185, %v234
        %v240 = vmul.f32 %v186, %v234
        %v241 = vmul.f32 %v188, %v234
        %v242 = vmul.f32 %v189, %v234
        %vm251 = vcmask 1046528
        %v252 = vrot.slane %v235, 1
        %v253 = vrot.slane %v236, 1
        %v254 = vsel %vm251, %v252, %v253
        %v255 = vrot.slane %v237, 1
        %v256 = vrot.slane %v238, 1
        %v257 = vsel %vm251, %v255, %v256
        %v258 = vrot.slane %v239, 1
        %v259 = vrot.slane %v240, 1
        %v260 = vsel %vm251, %v258, %v259
        %v261 = vrot.slane %v241, 1
        %v262 = vrot.slane %v242, 1
        %v263 = vsel %vm251, %v261, %v262
        %v268 = vadd.f32 %v229, %v254
        %v269 = vadd.f32 %v230, %v257
        %v270 = vadd.f32 %v231, %v260
        %v271 = vadd.f32 %v232, %v263
        %s272 = sld [smem:[#allocation2 + $0x2]]
        %v273 = vstv %s272
        %v274 = vmul.f32 %v179, %v273
        %v275 = vmul.f32 %v180, %v273
        %v276 = vmul.f32 %v182, %v273
        %v277 = vmul.f32 %v183, %v273
        %v278 = vmul.f32 %v185, %v273
        %v279 = vmul.f32 %v186, %v273
        %v280 = vmul.f32 %v188, %v273
        %v281 = vmul.f32 %v189, %v273
        %vm290 = vcmask 1045504
        %v291 = vrot.slane %v274, 2
        %v292 = vrot.slane %v275, 2
        %v293 = vsel %vm290, %v291, %v292
        %v294 = vrot.slane %v276, 2
        %v295 = vrot.slane %v277, 2
        %v296 = vsel %vm290, %v294, %v295
        %v297 = vrot.slane %v278, 2
        %v298 = vrot.slane %v279, 2
        %v299 = vsel %vm290, %v297, %v298
        %v300 = vrot.slane %v280, 2
        %v301 = vrot.slane %v281, 2
        %v302 = vsel %vm290, %v300, %v301
        %v307 = vadd.f32 %v268, %v293
        %v308 = vadd.f32 %v269, %v296
        %v309 = vadd.f32 %v270, %v299
        %v310 = vadd.f32 %v271, %v302
        %s311 = sld [smem:[#allocation2 + $0x3]]
        %v312 = vstv %s311
        %v313 = vmul.f32 %v179, %v312
        %v314 = vmul.f32 %v180, %v312
        %v315 = vmul.f32 %v182, %v312
        %v316 = vmul.f32 %v183, %v312
        %v317 = vmul.f32 %v185, %v312
        %v318 = vmul.f32 %v186, %v312
        %v319 = vmul.f32 %v188, %v312
        %v320 = vmul.f32 %v189, %v312
        %vm329 = vcmask 1044480
        %v330 = vrot.slane %v313, 3
        %v331 = vrot.slane %v314, 3
        %v332 = vsel %vm329, %v330, %v331
        %v333 = vrot.slane %v315, 3
        %v334 = vrot.slane %v316, 3
        %v335 = vsel %vm329, %v333, %v334
        %v336 = vrot.slane %v317, 3
        %v337 = vrot.slane %v318, 3
        %v338 = vsel %vm329, %v336, %v337
        %v339 = vrot.slane %v319, 3
        %v340 = vrot.slane %v320, 3
        %v341 = vsel %vm329, %v339, %v340
        %v346 = vadd.f32 %v307, %v332
        %v347 = vadd.f32 %v308, %v335
        %v348 = vadd.f32 %v309, %v338
        %v349 = vadd.f32 %v310, %v341
        %s350 = sld [smem:[#allocation2 + $0x4]]
        %v351 = vstv %s350
        %v352 = vmul.f32 %v179, %v351
        %v353 = vmul.f32 %v180, %v351
        %v354 = vmul.f32 %v182, %v351
        %v355 = vmul.f32 %v183, %v351
        %v356 = vmul.f32 %v185, %v351
        %v357 = vmul.f32 %v186, %v351
        %v358 = vmul.f32 %v188, %v351
        %v359 = vmul.f32 %v189, %v351
        %vm368 = vcmask 1043456
        %v369 = vrot.slane %v352, 4
        %v370 = vrot.slane %v353, 4
        %v371 = vsel %vm368, %v369, %v370
        %v372 = vrot.slane %v354, 4
        %v373 = vrot.slane %v355, 4
        %v374 = vsel %vm368, %v372, %v373
        %v375 = vrot.slane %v356, 4
        %v376 = vrot.slane %v357, 4
        %v377 = vsel %vm368, %v375, %v376
        %v378 = vrot.slane %v358, 4
        %v379 = vrot.slane %v359, 4
        %v380 = vsel %vm368, %v378, %v379
        %v385 = vadd.f32 %v346, %v371
        %v386 = vadd.f32 %v347, %v374
        %v387 = vadd.f32 %v348, %v377
        %v388 = vadd.f32 %v349, %v380
        %s389 = sld [smem:[#allocation2 + $0x5]]
        %v390 = vstv %s389
        %v391 = vmul.f32 %v179, %v390
        %v392 = vmul.f32 %v180, %v390
        %v393 = vmul.f32 %v182, %v390
        %v394 = vmul.f32 %v183, %v390
        %v395 = vmul.f32 %v185, %v390
        %v396 = vmul.f32 %v186, %v390
        %v397 = vmul.f32 %v188, %v390
        %v398 = vmul.f32 %v189, %v390
        %vm407 = vcmask 1042432
        %v408 = vrot.slane %v391, 5
        %v409 = vrot.slane %v392, 5
        %v410 = vsel %vm407, %v408, %v409
        %v411 = vrot.slane %v393, 5
        %v412 = vrot.slane %v394, 5
        %v413 = vsel %vm407, %v411, %v412
        %v414 = vrot.slane %v395, 5
        %v415 = vrot.slane %v396, 5
        %v416 = vsel %vm407, %v414, %v415
        %v417 = vrot.slane %v397, 5
        %v418 = vrot.slane %v398, 5
        %v419 = vsel %vm407, %v417, %v418
        %v424 = vadd.f32 %v385, %v410
        %v425 = vadd.f32 %v386, %v413
        %v426 = vadd.f32 %v387, %v416
        %v427 = vadd.f32 %v388, %v419
        %s428 = sld [smem:[#allocation2 + $0x6]]
        %v429 = vstv %s428
        %v430 = vmul.f32 %v179, %v429
        %v431 = vmul.f32 %v180, %v429
        %v432 = vmul.f32 %v182, %v429
        %v433 = vmul.f32 %v183, %v429
        %v434 = vmul.f32 %v185, %v429
        %v435 = vmul.f32 %v186, %v429
        %v436 = vmul.f32 %v188, %v429
        %v437 = vmul.f32 %v189, %v429
        %vm446 = vcmask 1041408
        %v447 = vrot.slane %v430, 6
        %v448 = vrot.slane %v431, 6
        %v449 = vsel %vm446, %v447, %v448
        %v450 = vrot.slane %v432, 6
        %v451 = vrot.slane %v433, 6
        %v452 = vsel %vm446, %v450, %v451
        %v453 = vrot.slane %v434, 6
        %v454 = vrot.slane %v435, 6
        %v455 = vsel %vm446, %v453, %v454
        %v456 = vrot.slane %v436, 6
        %v457 = vrot.slane %v437, 6
        %v458 = vsel %vm446, %v456, %v457
        %v463 = vadd.f32 %v424, %v449
        %v464 = vadd.f32 %v425, %v452
        %v465 = vadd.f32 %v426, %v455
        %v466 = vadd.f32 %v427, %v458
        %s467 = sld [smem:[#allocation2 + $0x7]]
        %v468 = vstv %s467
        %v469 = vmul.f32 %v179, %v468
        %v470 = vmul.f32 %v180, %v468
        %v471 = vmul.f32 %v182, %v468
        %v472 = vmul.f32 %v183, %v468
        %v473 = vmul.f32 %v185, %v468
        %v474 = vmul.f32 %v186, %v468
        %v475 = vmul.f32 %v188, %v468
        %v476 = vmul.f32 %v189, %v468
        %vm485 = vcmask 1040384
        %v486 = vrot.slane %v469, 7
        %v487 = vrot.slane %v470, 7
        %v488 = vsel %vm485, %v486, %v487
        %v489 = vrot.slane %v471, 7
        %v490 = vrot.slane %v472, 7
        %v491 = vsel %vm485, %v489, %v490
        %v492 = vrot.slane %v473, 7
        %v493 = vrot.slane %v474, 7
        %v494 = vsel %vm485, %v492, %v493
        %v495 = vrot.slane %v475, 7
        %v496 = vrot.slane %v476, 7
        %v497 = vsel %vm485, %v495, %v496
        %v502 = vadd.f32 %v463, %v488
        %v503 = vadd.f32 %v464, %v491
        %v504 = vadd.f32 %v465, %v494
        %v505 = vadd.f32 %v466, %v497
        %s506 = sld [smem:[#allocation2 + $0x8]]
        %v507 = vstv %s506
        %v508 = vmul.f32 %v180, %v507
        %v509 = vmul.f32 %v183, %v507
        %v510 = vmul.f32 %v186, %v507
        %v511 = vmul.f32 %v189, %v507
        %v512 = vadd.f32 %v502, %v508
        %v513 = vadd.f32 %v503, %v509
        %v514 = vadd.f32 %v504, %v510
        %v515 = vadd.f32 %v505, %v511
        %s516 = sld [smem:[#allocation2 + $0x9]]
        %v517 = vstv %s516
        %v518 = vmul.f32 %v180, %v517
        %v519 = vmul.f32 %v181, %v517
        %v520 = vmul.f32 %v183, %v517
        %v521 = vmul.f32 %v184, %v517
        %v522 = vmul.f32 %v186, %v517
        %v523 = vmul.f32 %v187, %v517
        %v524 = vmul.f32 %v189, %v517
        %v525 = vmul.f32 %v190, %v517
        %v534 = vrot.slane %v518, 1
        %v535 = vrot.slane %v519, 1
        %v536 = vsel %vm251, %v534, %v535
        %v537 = vrot.slane %v520, 1
        %v538 = vrot.slane %v521, 1
        %v539 = vsel %vm251, %v537, %v538
        %v540 = vrot.slane %v522, 1
        %v541 = vrot.slane %v523, 1
        %v542 = vsel %vm251, %v540, %v541
        %v543 = vrot.slane %v524, 1
        %v544 = vrot.slane %v525, 1
        %v545 = vsel %vm251, %v543, %v544
        %v550 = vadd.f32 %v512, %v536
        %v551 = vadd.f32 %v513, %v539
        %v552 = vadd.f32 %v514, %v542
        %v553 = vadd.f32 %v515, %v545
        %s554 = sld [smem:[#allocation2 + $0xa]]
        %v555 = vstv %s554
        %v556 = vmul.f32 %v180, %v555
        %v557 = vmul.f32 %v181, %v555
        %v558 = vmul.f32 %v183, %v555
        %v559 = vmul.f32 %v184, %v555
        %v560 = vmul.f32 %v186, %v555
        %v561 = vmul.f32 %v187, %v555
        %v562 = vmul.f32 %v189, %v555
        %v563 = vmul.f32 %v190, %v555
        %v572 = vrot.slane %v556, 2
        %v573 = vrot.slane %v557, 2
        %v574 = vsel %vm290, %v572, %v573
        %v575 = vrot.slane %v558, 2
        %v576 = vrot.slane %v559, 2
        %v577 = vsel %vm290, %v575, %v576
        %v578 = vrot.slane %v560, 2
        %v579 = vrot.slane %v561, 2
        %v580 = vsel %vm290, %v578, %v579
        %v581 = vrot.slane %v562, 2
        %v582 = vrot.slane %v563, 2
        %v583 = vsel %vm290, %v581, %v582
        %v588 = vadd.f32 %v550, %v574
        %v589 = vadd.f32 %v551, %v577
        %v590 = vadd.f32 %v552, %v580
        %v591 = vadd.f32 %v553, %v583
        %s592 = sld [smem:[#allocation2 + $0xb]]
        %v593 = vstv %s592
        %v594 = vmul.f32 %v180, %v593
        %v595 = vmul.f32 %v181, %v593
        %v596 = vmul.f32 %v183, %v593
        %v597 = vmul.f32 %v184, %v593
        %v598 = vmul.f32 %v186, %v593
        %v599 = vmul.f32 %v187, %v593
        %v600 = vmul.f32 %v189, %v593
        %v601 = vmul.f32 %v190, %v593
        %v610 = vrot.slane %v594, 3
        %v611 = vrot.slane %v595, 3
        %v612 = vsel %vm329, %v610, %v611
        %v613 = vrot.slane %v596, 3
        %v614 = vrot.slane %v597, 3
        %v615 = vsel %vm329, %v613, %v614
        %v616 = vrot.slane %v598, 3
        %v617 = vrot.slane %v599, 3
        %v618 = vsel %vm329, %v616, %v617
        %v619 = vrot.slane %v600, 3
        %v620 = vrot.slane %v601, 3
        %v621 = vsel %vm329, %v619, %v620
        %v626 = vadd.f32 %v588, %v612
        %v627 = vadd.f32 %v589, %v615
        %v628 = vadd.f32 %v590, %v618
        %v629 = vadd.f32 %v591, %v621
        %s630 = sld [smem:[#allocation2 + $0xc]]
        %v631 = vstv %s630
        %v632 = vmul.f32 %v180, %v631
        %v633 = vmul.f32 %v181, %v631
        %v634 = vmul.f32 %v183, %v631
        %v635 = vmul.f32 %v184, %v631
        %v636 = vmul.f32 %v186, %v631
        %v637 = vmul.f32 %v187, %v631
        %v638 = vmul.f32 %v189, %v631
        %v639 = vmul.f32 %v190, %v631
        %v648 = vrot.slane %v632, 4
        %v649 = vrot.slane %v633, 4
        %v650 = vsel %vm368, %v648, %v649
        %v651 = vrot.slane %v634, 4
        %v652 = vrot.slane %v635, 4
        %v653 = vsel %vm368, %v651, %v652
        %v654 = vrot.slane %v636, 4
        %v655 = vrot.slane %v637, 4
        %v656 = vsel %vm368, %v654, %v655
        %v657 = vrot.slane %v638, 4
        %v658 = vrot.slane %v639, 4
        %v659 = vsel %vm368, %v657, %v658
        %v664 = vadd.f32 %v626, %v650
        %v665 = vadd.f32 %v627, %v653
        %v666 = vadd.f32 %v628, %v656
        %v667 = vadd.f32 %v629, %v659
        %s668 = sld [smem:[#allocation2 + $0xd]]
        %v669 = vstv %s668
        %v670 = vmul.f32 %v182, %v669
        %v671 = vmul.f32 %v185, %v669
        %v672 = vmul.f32 %v188, %v669
        %v673 = vmul.f32 %v191, %v669
        %v674 = vadd.f32 %v664, %v670
        %v675 = vadd.f32 %v665, %v671
        %v676 = vadd.f32 %v666, %v672
        %v677 = vadd.f32 %v667, %v673
        %s678 = sld [smem:[#allocation2 + $0xe]]
        %v679 = vstv %s678
        %v680 = vmul.f32 %v182, %v679
        %v681 = vmul.f32 %v183, %v679
        %v682 = vmul.f32 %v185, %v679
        %v683 = vmul.f32 %v186, %v679
        %v684 = vmul.f32 %v188, %v679
        %v685 = vmul.f32 %v189, %v679
        %v686 = vmul.f32 %v191, %v679
        %v687 = vmul.f32 %v192, %v679
        %v696 = vrot.slane %v680, 1
        %v697 = vrot.slane %v681, 1
        %v698 = vsel %vm251, %v696, %v697
        %v699 = vrot.slane %v682, 1
        %v700 = vrot.slane %v683, 1
        %v701 = vsel %vm251, %v699, %v700
        %v702 = vrot.slane %v684, 1
        %v703 = vrot.slane %v685, 1
        %v704 = vsel %vm251, %v702, %v703
        %v705 = vrot.slane %v686, 1
        %v706 = vrot.slane %v687, 1
        %v707 = vsel %vm251, %v705, %v706
        %v712 = vadd.f32 %v674, %v698
        %v713 = vadd.f32 %v675, %v701
        %v714 = vadd.f32 %v676, %v704
        %v715 = vadd.f32 %v677, %v707
        %s716 = sld [smem:[#allocation2 + $0xf]]
        %v717 = vstv %s716
        %v718 = vmul.f32 %v182, %v717
        %v719 = vmul.f32 %v183, %v717
        %v720 = vmul.f32 %v185, %v717
        %v721 = vmul.f32 %v186, %v717
        %v722 = vmul.f32 %v188, %v717
        %v723 = vmul.f32 %v189, %v717
        %v724 = vmul.f32 %v191, %v717
        %v725 = vmul.f32 %v192, %v717
        %v734 = vrot.slane %v718, 2
        %v735 = vrot.slane %v719, 2
        %v736 = vsel %vm290, %v734, %v735
        %v737 = vrot.slane %v720, 2
        %v738 = vrot.slane %v721, 2
        %v739 = vsel %vm290, %v737, %v738
        %v740 = vrot.slane %v722, 2
        %v741 = vrot.slane %v723, 2
        %v742 = vsel %vm290, %v740, %v741
        %v743 = vrot.slane %v724, 2
        %v744 = vrot.slane %v725, 2
        %v745 = vsel %vm290, %v743, %v744
        %v750 = vadd.f32 %v712, %v736
        %v751 = vadd.f32 %v713, %v739
        %v752 = vadd.f32 %v714, %v742
        %v753 = vadd.f32 %v715, %v745
        %s754 = sld [smem:[#allocation2 + $0x10]]
        %v755 = vstv %s754
        %v756 = vmul.f32 %v182, %v755
        %v757 = vmul.f32 %v183, %v755
        %v758 = vmul.f32 %v185, %v755
        %v759 = vmul.f32 %v186, %v755
        %v760 = vmul.f32 %v188, %v755
        %v761 = vmul.f32 %v189, %v755
        %v762 = vmul.f32 %v191, %v755
        %v763 = vmul.f32 %v192, %v755
        %v772 = vrot.slane %v756, 3
        %v773 = vrot.slane %v757, 3
        %v774 = vsel %vm329, %v772, %v773
        %v775 = vrot.slane %v758, 3
        %v776 = vrot.slane %v759, 3
        %v777 = vsel %vm329, %v775, %v776
        %v778 = vrot.slane %v760, 3
        %v779 = vrot.slane %v761, 3
        %v780 = vsel %vm329, %v778, %v779
        %v781 = vrot.slane %v762, 3
        %v782 = vrot.slane %v763, 3
        %v783 = vsel %vm329, %v781, %v782
        %v788 = vadd.f32 %v750, %v774
        %v789 = vadd.f32 %v751, %v777
        %v790 = vadd.f32 %v752, %v780
        %v791 = vadd.f32 %v753, %v783
        %s792 = sld [smem:[#allocation2 + $0x11]]
        %v793 = vstv %s792
        %v794 = vmul.f32 %v182, %v793
        %v795 = vmul.f32 %v183, %v793
        %v796 = vmul.f32 %v185, %v793
        %v797 = vmul.f32 %v186, %v793
        %v798 = vmul.f32 %v188, %v793
        %v799 = vmul.f32 %v189, %v793
        %v800 = vmul.f32 %v191, %v793
        %v801 = vmul.f32 %v192, %v793
        %v810 = vrot.slane %v794, 4
        %v811 = vrot.slane %v795, 4
        %v812 = vsel %vm368, %v810, %v811
        %v813 = vrot.slane %v796, 4
        %v814 = vrot.slane %v797, 4
        %v815 = vsel %vm368, %v813, %v814
        %v816 = vrot.slane %v798, 4
        %v817 = vrot.slane %v799, 4
        %v818 = vsel %vm368, %v816, %v817
        %v819 = vrot.slane %v800, 4
        %v820 = vrot.slane %v801, 4
        %v821 = vsel %vm368, %v819, %v820
        %v826 = vadd.f32 %v788, %v812
        %v827 = vadd.f32 %v789, %v815
        %v828 = vadd.f32 %v790, %v818
        %v829 = vadd.f32 %v791, %v821
        %s830 = sld [smem:[#allocation2 + $0x12]]
        %v831 = vstv %s830
        %v832 = vmul.f32 %v182, %v831
        %v833 = vmul.f32 %v183, %v831
        %v834 = vmul.f32 %v185, %v831
        %v835 = vmul.f32 %v186, %v831
        %v836 = vmul.f32 %v188, %v831
        %v837 = vmul.f32 %v189, %v831
        %v838 = vmul.f32 %v191, %v831
        %v839 = vmul.f32 %v192, %v831
        %v848 = vrot.slane %v832, 5
        %v849 = vrot.slane %v833, 5
        %v850 = vsel %vm407, %v848, %v849
        %v851 = vrot.slane %v834, 5
        %v852 = vrot.slane %v835, 5
        %v853 = vsel %vm407, %v851, %v852
        %v854 = vrot.slane %v836, 5
        %v855 = vrot.slane %v837, 5
        %v856 = vsel %vm407, %v854, %v855
        %v857 = vrot.slane %v838, 5
        %v858 = vrot.slane %v839, 5
        %v859 = vsel %vm407, %v857, %v858
        %v864 = vadd.f32 %v826, %v850
        %v865 = vadd.f32 %v827, %v853
        %v866 = vadd.f32 %v828, %v856
        %v867 = vadd.f32 %v829, %v859
        %s868 = sld [smem:[#allocation2 + $0x13]]
        %v869 = vstv %s868
        %v870 = vmul.f32 %v182, %v869
        %v871 = vmul.f32 %v183, %v869
        %v872 = vmul.f32 %v185, %v869
        %v873 = vmul.f32 %v186, %v869
        %v874 = vmul.f32 %v188, %v869
        %v875 = vmul.f32 %v189, %v869
        %v876 = vmul.f32 %v191, %v869
        %v877 = vmul.f32 %v192, %v869
        %v886 = vrot.slane %v870, 6
        %v887 = vrot.slane %v871, 6
        %v888 = vsel %vm446, %v886, %v887
        %v889 = vrot.slane %v872, 6
        %v890 = vrot.slane %v873, 6
        %v891 = vsel %vm446, %v889, %v890
        %v892 = vrot.slane %v874, 6
        %v893 = vrot.slane %v875, 6
        %v894 = vsel %vm446, %v892, %v893
        %v895 = vrot.slane %v876, 6
        %v896 = vrot.slane %v877, 6
        %v897 = vsel %vm446, %v895, %v896
        %v902 = vadd.f32 %v864, %v888
        %v903 = vadd.f32 %v865, %v891
        %v904 = vadd.f32 %v866, %v894
        %v905 = vadd.f32 %v867, %v897
        %s906 = sld [smem:[#allocation2 + $0x14]]
        %v907 = vstv %s906
        %v908 = vmul.f32 %v182, %v907
        %v909 = vmul.f32 %v183, %v907
        %v910 = vmul.f32 %v185, %v907
        %v911 = vmul.f32 %v186, %v907
        %v912 = vmul.f32 %v188, %v907
        %v913 = vmul.f32 %v189, %v907
        %v914 = vmul.f32 %v191, %v907
        %v915 = vmul.f32 %v192, %v907
        %v924 = vrot.slane %v908, 7
        %v925 = vrot.slane %v909, 7
        %v926 = vsel %vm485, %v924, %v925
        %v927 = vrot.slane %v910, 7
        %v928 = vrot.slane %v911, 7
        %v929 = vsel %vm485, %v927, %v928
        %v930 = vrot.slane %v912, 7
        %v931 = vrot.slane %v913, 7
        %v932 = vsel %vm485, %v930, %v931
        %v933 = vrot.slane %v914, 7
        %v934 = vrot.slane %v915, 7
        %v935 = vsel %vm485, %v933, %v934
        %v940 = vadd.f32 %v902, %v926
        %v941 = vadd.f32 %v903, %v929
        %v942 = vadd.f32 %v904, %v932
        %v943 = vadd.f32 %v905, %v935
        %s944 = sld [smem:[#allocation2 + $0x15]]
        %v945 = vstv %s944
        %v946 = vmul.f32 %v183, %v945
        %v947 = vmul.f32 %v186, %v945
        %v948 = vmul.f32 %v189, %v945
        %v949 = vmul.f32 %v192, %v945
        %v950 = vadd.f32 %v940, %v946
        %v951 = vadd.f32 %v941, %v947
        %v952 = vadd.f32 %v942, %v948
        %v953 = vadd.f32 %v943, %v949
        %s954 = sld [smem:[#allocation2 + $0x16]]
        %v955 = vstv %s954
        %v956 = vmul.f32 %v183, %v955
        %v957 = vmul.f32 %v184, %v955
        %v958 = vmul.f32 %v186, %v955
        %v959 = vmul.f32 %v187, %v955
        %v960 = vmul.f32 %v189, %v955
        %v961 = vmul.f32 %v190, %v955
        %v962 = vmul.f32 %v192, %v955
        %v963 = vmul.f32 %v193, %v955
        %v972 = vrot.slane %v956, 1
        %v973 = vrot.slane %v957, 1
        %v974 = vsel %vm251, %v972, %v973
        %v975 = vrot.slane %v958, 1
        %v976 = vrot.slane %v959, 1
        %v977 = vsel %vm251, %v975, %v976
        %v978 = vrot.slane %v960, 1
        %v979 = vrot.slane %v961, 1
        %v980 = vsel %vm251, %v978, %v979
        %v981 = vrot.slane %v962, 1
        %v982 = vrot.slane %v963, 1
        %v983 = vsel %vm251, %v981, %v982
        %v988 = vadd.f32 %v950, %v974
        %v989 = vadd.f32 %v951, %v977
        %v990 = vadd.f32 %v952, %v980
        %v991 = vadd.f32 %v953, %v983
        %s992 = sld [smem:[#allocation2 + $0x17]]
        %v993 = vstv %s992
        %v994 = vmul.f32 %v183, %v993
        %v995 = vmul.f32 %v184, %v993
        %v996 = vmul.f32 %v186, %v993
        %v997 = vmul.f32 %v187, %v993
        %v998 = vmul.f32 %v189, %v993
        %v999 = vmul.f32 %v190, %v993
        %v1000 = vmul.f32 %v192, %v993
        %v1001 = vmul.f32 %v193, %v993
        %v1010 = vrot.slane %v994, 2
        %v1011 = vrot.slane %v995, 2
        %v1012 = vsel %vm290, %v1010, %v1011
        %v1013 = vrot.slane %v996, 2
        %v1014 = vrot.slane %v997, 2
        %v1015 = vsel %vm290, %v1013, %v1014
        %v1016 = vrot.slane %v998, 2
        %v1017 = vrot.slane %v999, 2
        %v1018 = vsel %vm290, %v1016, %v1017
        %v1019 = vrot.slane %v1000, 2
        %v1020 = vrot.slane %v1001, 2
        %v1021 = vsel %vm290, %v1019, %v1020
        %v1026 = vadd.f32 %v988, %v1012
        %v1027 = vadd.f32 %v989, %v1015
        %v1028 = vadd.f32 %v990, %v1018
        %v1029 = vadd.f32 %v991, %v1021
        %s1030 = sld [smem:[#allocation2 + $0x18]]
        %v1031 = vstv %s1030
        %v1032 = vmul.f32 %v183, %v1031
        %v1033 = vmul.f32 %v184, %v1031
        %v1034 = vmul.f32 %v186, %v1031
        %v1035 = vmul.f32 %v187, %v1031
        %v1036 = vmul.f32 %v189, %v1031
        %v1037 = vmul.f32 %v190, %v1031
        %v1038 = vmul.f32 %v192, %v1031
        %v1039 = vmul.f32 %v193, %v1031
        %v1048 = vrot.slane %v1032, 3
        %v1049 = vrot.slane %v1033, 3
        %v1050 = vsel %vm329, %v1048, %v1049
        %v1051 = vrot.slane %v1034, 3
        %v1052 = vrot.slane %v1035, 3
        %v1053 = vsel %vm329, %v1051, %v1052
        %v1054 = vrot.slane %v1036, 3
        %v1055 = vrot.slane %v1037, 3
        %v1056 = vsel %vm329, %v1054, %v1055
        %v1057 = vrot.slane %v1038, 3
        %v1058 = vrot.slane %v1039, 3
        %v1059 = vsel %vm329, %v1057, %v1058
        %v1064 = vadd.f32 %v1026, %v1050
        %v1065 = vadd.f32 %v1027, %v1053
        %v1066 = vadd.f32 %v1028, %v1056
        %v1067 = vadd.f32 %v1029, %v1059
        %s1068 = sld [smem:[#allocation2 + $0x19]]
        %v1069 = vstv %s1068
        %v1070 = vmul.f32 %v183, %v1069
        %v1071 = vmul.f32 %v184, %v1069
        %v1072 = vmul.f32 %v186, %v1069
        %v1073 = vmul.f32 %v187, %v1069
        %v1074 = vmul.f32 %v189, %v1069
        %v1075 = vmul.f32 %v190, %v1069
        %v1076 = vmul.f32 %v192, %v1069
        %v1077 = vmul.f32 %v193, %v1069
        %v1086 = vrot.slane %v1070, 4
        %v1087 = vrot.slane %v1071, 4
        %v1088 = vsel %vm368, %v1086, %v1087
        %v1089 = vrot.slane %v1072, 4
        %v1090 = vrot.slane %v1073, 4
        %v1091 = vsel %vm368, %v1089, %v1090
        %v1092 = vrot.slane %v1074, 4
        %v1093 = vrot.slane %v1075, 4
        %v1094 = vsel %vm368, %v1092, %v1093
        %v1095 = vrot.slane %v1076, 4
        %v1096 = vrot.slane %v1077, 4
        %v1097 = vsel %vm368, %v1095, %v1096
        %v1102 = vadd.f32 %v1064, %v1088
        %v1103 = vadd.f32 %v1065, %v1091
        %v1104 = vadd.f32 %v1066, %v1094
        %v1105 = vadd.f32 %v1067, %v1097
        %s1106 = sld [smem:[#allocation2 + $0x1a]]
        %v1107 = vstv %s1106
        %v1108 = vmul.f32 %v185, %v1107
        %v1109 = vmul.f32 %v188, %v1107
        %v1110 = vmul.f32 %v191, %v1107
        %v1111 = vmul.f32 %v194, %v1107
        %v1112 = vadd.f32 %v1102, %v1108
        %v1113 = vadd.f32 %v1103, %v1109
        %v1114 = vadd.f32 %v1104, %v1110
        %v1115 = vadd.f32 %v1105, %v1111
        %s1116 = sld [smem:[#allocation2 + $0x1b]]
        %v1117 = vstv %s1116
        %v1118 = vmul.f32 %v185, %v1117
        %v1119 = vmul.f32 %v186, %v1117
        %v1120 = vmul.f32 %v188, %v1117
        %v1121 = vmul.f32 %v189, %v1117
        %v1122 = vmul.f32 %v191, %v1117
        %v1123 = vmul.f32 %v192, %v1117
        %v1124 = vmul.f32 %v194, %v1117
        %v1125 = vmul.f32 %v195, %v1117
        %v1134 = vrot.slane %v1118, 1
        %v1135 = vrot.slane %v1119, 1
        %v1136 = vsel %vm251, %v1134, %v1135
        %v1137 = vrot.slane %v1120, 1
        %v1138 = vrot.slane %v1121, 1
        %v1139 = vsel %vm251, %v1137, %v1138
        %v1140 = vrot.slane %v1122, 1
        %v1141 = vrot.slane %v1123, 1
        %v1142 = vsel %vm251, %v1140, %v1141
        %v1143 = vrot.slane %v1124, 1
        %v1144 = vrot.slane %v1125, 1
        %v1145 = vsel %vm251, %v1143, %v1144
        %v1150 = vadd.f32 %v1112, %v1136
        %v1151 = vadd.f32 %v1113, %v1139
        %v1152 = vadd.f32 %v1114, %v1142
        %v1153 = vadd.f32 %v1115, %v1145
        %s1154 = sld [smem:[#allocation2 + $0x1c]]
        %v1155 = vstv %s1154
        %v1156 = vmul.f32 %v185, %v1155
        %v1157 = vmul.f32 %v186, %v1155
        %v1158 = vmul.f32 %v188, %v1155
        %v1159 = vmul.f32 %v189, %v1155
        %v1160 = vmul.f32 %v191, %v1155
        %v1161 = vmul.f32 %v192, %v1155
        %v1162 = vmul.f32 %v194, %v1155
        %v1163 = vmul.f32 %v195, %v1155
        %v1172 = vrot.slane %v1156, 2
        %v1173 = vrot.slane %v1157, 2
        %v1174 = vsel %vm290, %v1172, %v1173
        %v1175 = vrot.slane %v1158, 2
        %v1176 = vrot.slane %v1159, 2
        %v1177 = vsel %vm290, %v1175, %v1176
        %v1178 = vrot.slane %v1160, 2
        %v1179 = vrot.slane %v1161, 2
        %v1180 = vsel %vm290, %v1178, %v1179
        %v1181 = vrot.slane %v1162, 2
        %v1182 = vrot.slane %v1163, 2
        %v1183 = vsel %vm290, %v1181, %v1182
        %v1188 = vadd.f32 %v1150, %v1174
        %v1189 = vadd.f32 %v1151, %v1177
        %v1190 = vadd.f32 %v1152, %v1180
        %v1191 = vadd.f32 %v1153, %v1183
        %s1192 = sld [smem:[#allocation2 + $0x1d]]
        %v1193 = vstv %s1192
        %v1194 = vmul.f32 %v185, %v1193
        %v1195 = vmul.f32 %v186, %v1193
        %v1196 = vmul.f32 %v188, %v1193
        %v1197 = vmul.f32 %v189, %v1193
        %v1198 = vmul.f32 %v191, %v1193
        %v1199 = vmul.f32 %v192, %v1193
        %v1200 = vmul.f32 %v194, %v1193
        %v1201 = vmul.f32 %v195, %v1193
        %v1210 = vrot.slane %v1194, 3
        %v1211 = vrot.slane %v1195, 3
        %v1212 = vsel %vm329, %v1210, %v1211
        %v1213 = vrot.slane %v1196, 3
        %v1214 = vrot.slane %v1197, 3
        %v1215 = vsel %vm329, %v1213, %v1214
        %v1216 = vrot.slane %v1198, 3
        %v1217 = vrot.slane %v1199, 3
        %v1218 = vsel %vm329, %v1216, %v1217
        %v1219 = vrot.slane %v1200, 3
        %v1220 = vrot.slane %v1201, 3
        %v1221 = vsel %vm329, %v1219, %v1220
        %v1226 = vadd.f32 %v1188, %v1212
        %v1227 = vadd.f32 %v1189, %v1215
        %v1228 = vadd.f32 %v1190, %v1218
        %v1229 = vadd.f32 %v1191, %v1221
        %s1230 = sld [smem:[#allocation2 + $0x1e]]
        %v1231 = vstv %s1230
        %v1232 = vmul.f32 %v185, %v1231
        %v1233 = vmul.f32 %v186, %v1231
        %v1234 = vmul.f32 %v188, %v1231
        %v1235 = vmul.f32 %v189, %v1231
        %v1236 = vmul.f32 %v191, %v1231
        %v1237 = vmul.f32 %v192, %v1231
        %v1238 = vmul.f32 %v194, %v1231
        %v1239 = vmul.f32 %v195, %v1231
        %v1248 = vrot.slane %v1232, 4
        %v1249 = vrot.slane %v1233, 4
        %v1250 = vsel %vm368, %v1248, %v1249
        %v1251 = vrot.slane %v1234, 4
        %v1252 = vrot.slane %v1235, 4
        %v1253 = vsel %vm368, %v1251, %v1252
        %v1254 = vrot.slane %v1236, 4
        %v1255 = vrot.slane %v1237, 4
        %v1256 = vsel %vm368, %v1254, %v1255
        %v1257 = vrot.slane %v1238, 4
        %v1258 = vrot.slane %v1239, 4
        %v1259 = vsel %vm368, %v1257, %v1258
        %v1264 = vadd.f32 %v1226, %v1250
        %v1265 = vadd.f32 %v1227, %v1253
        %v1266 = vadd.f32 %v1228, %v1256
        %v1267 = vadd.f32 %v1229, %v1259
        %s1268 = sld [smem:[#allocation2 + $0x1f]]
        %v1269 = vstv %s1268
        %v1270 = vmul.f32 %v185, %v1269
        %v1271 = vmul.f32 %v186, %v1269
        %v1272 = vmul.f32 %v188, %v1269
        %v1273 = vmul.f32 %v189, %v1269
        %v1274 = vmul.f32 %v191, %v1269
        %v1275 = vmul.f32 %v192, %v1269
        %v1276 = vmul.f32 %v194, %v1269
        %v1277 = vmul.f32 %v195, %v1269
        %v1286 = vrot.slane %v1270, 5
        %v1287 = vrot.slane %v1271, 5
        %v1288 = vsel %vm407, %v1286, %v1287
        %v1289 = vrot.slane %v1272, 5
        %v1290 = vrot.slane %v1273, 5
        %v1291 = vsel %vm407, %v1289, %v1290
        %v1292 = vrot.slane %v1274, 5
        %v1293 = vrot.slane %v1275, 5
        %v1294 = vsel %vm407, %v1292, %v1293
        %v1295 = vrot.slane %v1276, 5
        %v1296 = vrot.slane %v1277, 5
        %v1297 = vsel %vm407, %v1295, %v1296
        %v1302 = vadd.f32 %v1264, %v1288
        %v1303 = vadd.f32 %v1265, %v1291
        %v1304 = vadd.f32 %v1266, %v1294
        %v1305 = vadd.f32 %v1267, %v1297
        %s1306 = sld [smem:[#allocation2 + $0x20]]
        %v1307 = vstv %s1306
        %v1308 = vmul.f32 %v185, %v1307
        %v1309 = vmul.f32 %v186, %v1307
        %v1310 = vmul.f32 %v188, %v1307
        %v1311 = vmul.f32 %v189, %v1307
        %v1312 = vmul.f32 %v191, %v1307
        %v1313 = vmul.f32 %v192, %v1307
        %v1314 = vmul.f32 %v194, %v1307
        %v1315 = vmul.f32 %v195, %v1307
        %v1324 = vrot.slane %v1308, 6
        %v1325 = vrot.slane %v1309, 6
        %v1326 = vsel %vm446, %v1324, %v1325
        %v1327 = vrot.slane %v1310, 6
        %v1328 = vrot.slane %v1311, 6
        %v1329 = vsel %vm446, %v1327, %v1328
        %v1330 = vrot.slane %v1312, 6
        %v1331 = vrot.slane %v1313, 6
        %v1332 = vsel %vm446, %v1330, %v1331
        %v1333 = vrot.slane %v1314, 6
        %v1334 = vrot.slane %v1315, 6
        %v1335 = vsel %vm446, %v1333, %v1334
        %v1340 = vadd.f32 %v1302, %v1326
        %v1341 = vadd.f32 %v1303, %v1329
        %v1342 = vadd.f32 %v1304, %v1332
        %v1343 = vadd.f32 %v1305, %v1335
        %s1344 = sld [smem:[#allocation2 + $0x21]]
        %v1345 = vstv %s1344
        %v1346 = vmul.f32 %v185, %v1345
        %v1347 = vmul.f32 %v186, %v1345
        %v1348 = vmul.f32 %v188, %v1345
        %v1349 = vmul.f32 %v189, %v1345
        %v1350 = vmul.f32 %v191, %v1345
        %v1351 = vmul.f32 %v192, %v1345
        %v1352 = vmul.f32 %v194, %v1345
        %v1353 = vmul.f32 %v195, %v1345
        %v1362 = vrot.slane %v1346, 7
        %v1363 = vrot.slane %v1347, 7
        %v1364 = vsel %vm485, %v1362, %v1363
        %v1365 = vrot.slane %v1348, 7
        %v1366 = vrot.slane %v1349, 7
        %v1367 = vsel %vm485, %v1365, %v1366
        %v1368 = vrot.slane %v1350, 7
        %v1369 = vrot.slane %v1351, 7
        %v1370 = vsel %vm485, %v1368, %v1369
        %v1371 = vrot.slane %v1352, 7
        %v1372 = vrot.slane %v1353, 7
        %v1373 = vsel %vm485, %v1371, %v1372
        %v1378 = vadd.f32 %v1340, %v1364
        %v1379 = vadd.f32 %v1341, %v1367
        %v1380 = vadd.f32 %v1342, %v1370
        %v1381 = vadd.f32 %v1343, %v1373
        %s1382 = sld [smem:[#allocation2 + $0x22]]
        %v1383 = vstv %s1382
        %v1384 = vmul.f32 %v186, %v1383
        %v1385 = vmul.f32 %v189, %v1383
        %v1386 = vmul.f32 %v192, %v1383
        %v1387 = vmul.f32 %v195, %v1383
        %v1388 = vadd.f32 %v1378, %v1384
        %v1389 = vadd.f32 %v1379, %v1385
        %v1390 = vadd.f32 %v1380, %v1386
        %v1391 = vadd.f32 %v1381, %v1387
        %s1392 = sld [smem:[#allocation2 + $0x23]]
        %v1393 = vstv %s1392
        %v1394 = vmul.f32 %v186, %v1393
        %v1395 = vmul.f32 %v187, %v1393
        %v1396 = vmul.f32 %v189, %v1393
        %v1397 = vmul.f32 %v190, %v1393
        %v1398 = vmul.f32 %v192, %v1393
        %v1399 = vmul.f32 %v193, %v1393
        %v1400 = vmul.f32 %v195, %v1393
        %v1401 = vmul.f32 %v196, %v1393
        %v1410 = vrot.slane %v1394, 1
        %v1411 = vrot.slane %v1395, 1
        %v1412 = vsel %vm251, %v1410, %v1411
        %v1413 = vrot.slane %v1396, 1
        %v1414 = vrot.slane %v1397, 1
        %v1415 = vsel %vm251, %v1413, %v1414
        %v1416 = vrot.slane %v1398, 1
        %v1417 = vrot.slane %v1399, 1
        %v1418 = vsel %vm251, %v1416, %v1417
        %v1419 = vrot.slane %v1400, 1
        %v1420 = vrot.slane %v1401, 1
        %v1421 = vsel %vm251, %v1419, %v1420
        %v1426 = vadd.f32 %v1388, %v1412
        %v1427 = vadd.f32 %v1389, %v1415
        %v1428 = vadd.f32 %v1390, %v1418
        %v1429 = vadd.f32 %v1391, %v1421
        %s1430 = sld [smem:[#allocation2 + $0x24]]
        %v1431 = vstv %s1430
        %v1432 = vmul.f32 %v186, %v1431
        %v1433 = vmul.f32 %v187, %v1431
        %v1434 = vmul.f32 %v189, %v1431
        %v1435 = vmul.f32 %v190, %v1431
        %v1436 = vmul.f32 %v192, %v1431
        %v1437 = vmul.f32 %v193, %v1431
        %v1438 = vmul.f32 %v195, %v1431
        %v1439 = vmul.f32 %v196, %v1431
        %v1448 = vrot.slane %v1432, 2
        %v1449 = vrot.slane %v1433, 2
        %v1450 = vsel %vm290, %v1448, %v1449
        %v1451 = vrot.slane %v1434, 2
        %v1452 = vrot.slane %v1435, 2
        %v1453 = vsel %vm290, %v1451, %v1452
        %v1454 = vrot.slane %v1436, 2
        %v1455 = vrot.slane %v1437, 2
        %v1456 = vsel %vm290, %v1454, %v1455
        %v1457 = vrot.slane %v1438, 2
        %v1458 = vrot.slane %v1439, 2
        %v1459 = vsel %vm290, %v1457, %v1458
        %v1464 = vadd.f32 %v1426, %v1450
        %v1465 = vadd.f32 %v1427, %v1453
        %v1466 = vadd.f32 %v1428, %v1456
        %v1467 = vadd.f32 %v1429, %v1459
        %s1468 = sld [smem:[#allocation2 + $0x25]]
        %v1469 = vstv %s1468
        %v1470 = vmul.f32 %v186, %v1469
        %v1471 = vmul.f32 %v187, %v1469
        %v1472 = vmul.f32 %v189, %v1469
        %v1473 = vmul.f32 %v190, %v1469
        %v1474 = vmul.f32 %v192, %v1469
        %v1475 = vmul.f32 %v193, %v1469
        %v1476 = vmul.f32 %v195, %v1469
        %v1477 = vmul.f32 %v196, %v1469
        %v1486 = vrot.slane %v1470, 3
        %v1487 = vrot.slane %v1471, 3
        %v1488 = vsel %vm329, %v1486, %v1487
        %v1489 = vrot.slane %v1472, 3
        %v1490 = vrot.slane %v1473, 3
        %v1491 = vsel %vm329, %v1489, %v1490
        %v1492 = vrot.slane %v1474, 3
        %v1493 = vrot.slane %v1475, 3
        %v1494 = vsel %vm329, %v1492, %v1493
        %v1495 = vrot.slane %v1476, 3
        %v1496 = vrot.slane %v1477, 3
        %v1497 = vsel %vm329, %v1495, %v1496
        %v1502 = vadd.f32 %v1464, %v1488
        %v1503 = vadd.f32 %v1465, %v1491
        %v1504 = vadd.f32 %v1466, %v1494
        %v1505 = vadd.f32 %v1467, %v1497
        %s1506 = sld [smem:[#allocation2 + $0x26]]
        %v1507 = vstv %s1506
        %v1508 = vmul.f32 %v186, %v1507
        %v1509 = vmul.f32 %v187, %v1507
        %v1510 = vmul.f32 %v189, %v1507
        %v1511 = vmul.f32 %v190, %v1507
        %v1512 = vmul.f32 %v192, %v1507
        %v1513 = vmul.f32 %v193, %v1507
        %v1514 = vmul.f32 %v195, %v1507
        %v1515 = vmul.f32 %v196, %v1507
        %v1524 = vrot.slane %v1508, 4
        %v1525 = vrot.slane %v1509, 4
        %v1526 = vsel %vm368, %v1524, %v1525
        %v1527 = vrot.slane %v1510, 4
        %v1528 = vrot.slane %v1511, 4
        %v1529 = vsel %vm368, %v1527, %v1528
        %v1530 = vrot.slane %v1512, 4
        %v1531 = vrot.slane %v1513, 4
        %v1532 = vsel %vm368, %v1530, %v1531
        %v1533 = vrot.slane %v1514, 4
        %v1534 = vrot.slane %v1515, 4
        %v1535 = vsel %vm368, %v1533, %v1534
        %v1540 = vadd.f32 %v1502, %v1526
        %v1541 = vadd.f32 %v1503, %v1529
        %v1542 = vadd.f32 %v1504, %v1532
        %v1543 = vadd.f32 %v1505, %v1535
        %s1544 = sld [smem:[#allocation2 + $0x27]]
        %v1545 = vstv %s1544
        %v1546 = vmul.f32 %v188, %v1545
        %v1547 = vmul.f32 %v191, %v1545
        %v1548 = vmul.f32 %v194, %v1545
        %v1549 = vmul.f32 %v197, %v1545
        %v1550 = vadd.f32 %v1540, %v1546
        %v1551 = vadd.f32 %v1541, %v1547
        %v1552 = vadd.f32 %v1542, %v1548
        %v1553 = vadd.f32 %v1543, %v1549
        %s1554 = sld [smem:[#allocation2 + $0x28]]
        %v1555 = vstv %s1554
        %v1556 = vmul.f32 %v188, %v1555
        %v1557 = vmul.f32 %v189, %v1555
        %v1558 = vmul.f32 %v191, %v1555
        %v1559 = vmul.f32 %v192, %v1555
        %v1560 = vmul.f32 %v194, %v1555
        %v1561 = vmul.f32 %v195, %v1555
        %v1562 = vmul.f32 %v197, %v1555
        %v1563 = vmul.f32 %v198, %v1555
        %v1572 = vrot.slane %v1556, 1
        %v1573 = vrot.slane %v1557, 1
        %v1574 = vsel %vm251, %v1572, %v1573
        %v1575 = vrot.slane %v1558, 1
        %v1576 = vrot.slane %v1559, 1
        %v1577 = vsel %vm251, %v1575, %v1576
        %v1578 = vrot.slane %v1560, 1
        %v1579 = vrot.slane %v1561, 1
        %v1580 = vsel %vm251, %v1578, %v1579
        %v1581 = vrot.slane %v1562, 1
        %v1582 = vrot.slane %v1563, 1
        %v1583 = vsel %vm251, %v1581, %v1582
        %v1588 = vadd.f32 %v1550, %v1574
        %v1589 = vadd.f32 %v1551, %v1577
        %v1590 = vadd.f32 %v1552, %v1580
        %v1591 = vadd.f32 %v1553, %v1583
        %s1592 = sld [smem:[#allocation2 + $0x29]]
        %v1593 = vstv %s1592
        %v1594 = vmul.f32 %v188, %v1593
        %v1595 = vmul.f32 %v189, %v1593
        %v1596 = vmul.f32 %v191, %v1593
        %v1597 = vmul.f32 %v192, %v1593
        %v1598 = vmul.f32 %v194, %v1593
        %v1599 = vmul.f32 %v195, %v1593
        %v1600 = vmul.f32 %v197, %v1593
        %v1601 = vmul.f32 %v198, %v1593
        %v1610 = vrot.slane %v1594, 2
        %v1611 = vrot.slane %v1595, 2
        %v1612 = vsel %vm290, %v1610, %v1611
        %v1613 = vrot.slane %v1596, 2
        %v1614 = vrot.slane %v1597, 2
        %v1615 = vsel %vm290, %v1613, %v1614
        %v1616 = vrot.slane %v1598, 2
        %v1617 = vrot.slane %v1599, 2
        %v1618 = vsel %vm290, %v1616, %v1617
        %v1619 = vrot.slane %v1600, 2
        %v1620 = vrot.slane %v1601, 2
        %v1621 = vsel %vm290, %v1619, %v1620
        %v1626 = vadd.f32 %v1588, %v1612
        %v1627 = vadd.f32 %v1589, %v1615
        %v1628 = vadd.f32 %v1590, %v1618
        %v1629 = vadd.f32 %v1591, %v1621
        %s1630 = sld [smem:[#allocation2 + $0x2a]]
        %v1631 = vstv %s1630
        %v1632 = vmul.f32 %v188, %v1631
        %v1633 = vmul.f32 %v189, %v1631
        %v1634 = vmul.f32 %v191, %v1631
        %v1635 = vmul.f32 %v192, %v1631
        %v1636 = vmul.f32 %v194, %v1631
        %v1637 = vmul.f32 %v195, %v1631
        %v1638 = vmul.f32 %v197, %v1631
        %v1639 = vmul.f32 %v198, %v1631
        %v1648 = vrot.slane %v1632, 3
        %v1649 = vrot.slane %v1633, 3
        %v1650 = vsel %vm329, %v1648, %v1649
        %v1651 = vrot.slane %v1634, 3
        %v1652 = vrot.slane %v1635, 3
        %v1653 = vsel %vm329, %v1651, %v1652
        %v1654 = vrot.slane %v1636, 3
        %v1655 = vrot.slane %v1637, 3
        %v1656 = vsel %vm329, %v1654, %v1655
        %v1657 = vrot.slane %v1638, 3
        %v1658 = vrot.slane %v1639, 3
        %v1659 = vsel %vm329, %v1657, %v1658
        %v1664 = vadd.f32 %v1626, %v1650
        %v1665 = vadd.f32 %v1627, %v1653
        %v1666 = vadd.f32 %v1628, %v1656
        %v1667 = vadd.f32 %v1629, %v1659
        %s1668 = sld [smem:[#allocation2 + $0x2b]]
        %v1669 = vstv %s1668
        %v1670 = vmul.f32 %v188, %v1669
        %v1671 = vmul.f32 %v189, %v1669
        %v1672 = vmul.f32 %v191, %v1669
        %v1673 = vmul.f32 %v192, %v1669
        %v1674 = vmul.f32 %v194, %v1669
        %v1675 = vmul.f32 %v195, %v1669
        %v1676 = vmul.f32 %v197, %v1669
        %v1677 = vmul.f32 %v198, %v1669
        %v1686 = vrot.slane %v1670, 4
        %v1687 = vrot.slane %v1671, 4
        %v1688 = vsel %vm368, %v1686, %v1687
        %v1689 = vrot.slane %v1672, 4
        %v1690 = vrot.slane %v1673, 4
        %v1691 = vsel %vm368, %v1689, %v1690
        %v1692 = vrot.slane %v1674, 4
        %v1693 = vrot.slane %v1675, 4
        %v1694 = vsel %vm368, %v1692, %v1693
        %v1695 = vrot.slane %v1676, 4
        %v1696 = vrot.slane %v1677, 4
        %v1697 = vsel %vm368, %v1695, %v1696
        %v1702 = vadd.f32 %v1664, %v1688
        %v1703 = vadd.f32 %v1665, %v1691
        %v1704 = vadd.f32 %v1666, %v1694
        %v1705 = vadd.f32 %v1667, %v1697
        %s1706 = sld [smem:[#allocation2 + $0x2c]]
        %v1707 = vstv %s1706
        %v1708 = vmul.f32 %v188, %v1707
        %v1709 = vmul.f32 %v189, %v1707
        %v1710 = vmul.f32 %v191, %v1707
        %v1711 = vmul.f32 %v192, %v1707
        %v1712 = vmul.f32 %v194, %v1707
        %v1713 = vmul.f32 %v195, %v1707
        %v1714 = vmul.f32 %v197, %v1707
        %v1715 = vmul.f32 %v198, %v1707
        %v1724 = vrot.slane %v1708, 5
        %v1725 = vrot.slane %v1709, 5
        %v1726 = vsel %vm407, %v1724, %v1725
        %v1727 = vrot.slane %v1710, 5
        %v1728 = vrot.slane %v1711, 5
        %v1729 = vsel %vm407, %v1727, %v1728
        %v1730 = vrot.slane %v1712, 5
        %v1731 = vrot.slane %v1713, 5
        %v1732 = vsel %vm407, %v1730, %v1731
        %v1733 = vrot.slane %v1714, 5
        %v1734 = vrot.slane %v1715, 5
        %v1735 = vsel %vm407, %v1733, %v1734
        %v1740 = vadd.f32 %v1702, %v1726
        %v1741 = vadd.f32 %v1703, %v1729
        %v1742 = vadd.f32 %v1704, %v1732
        %v1743 = vadd.f32 %v1705, %v1735
        %s1744 = sld [smem:[#allocation2 + $0x2d]]
        %v1745 = vstv %s1744
        %v1746 = vmul.f32 %v188, %v1745
        %v1747 = vmul.f32 %v189, %v1745
        %v1748 = vmul.f32 %v191, %v1745
        %v1749 = vmul.f32 %v192, %v1745
        %v1750 = vmul.f32 %v194, %v1745
        %v1751 = vmul.f32 %v195, %v1745
        %v1752 = vmul.f32 %v197, %v1745
        %v1753 = vmul.f32 %v198, %v1745
        %v1762 = vrot.slane %v1746, 6
        %v1763 = vrot.slane %v1747, 6
        %v1764 = vsel %vm446, %v1762, %v1763
        %v1765 = vrot.slane %v1748, 6
        %v1766 = vrot.slane %v1749, 6
        %v1767 = vsel %vm446, %v1765, %v1766
        %v1768 = vrot.slane %v1750, 6
        %v1769 = vrot.slane %v1751, 6
        %v1770 = vsel %vm446, %v1768, %v1769
        %v1771 = vrot.slane %v1752, 6
        %v1772 = vrot.slane %v1753, 6
        %v1773 = vsel %vm446, %v1771, %v1772
        %v1778 = vadd.f32 %v1740, %v1764
        %v1779 = vadd.f32 %v1741, %v1767
        %v1780 = vadd.f32 %v1742, %v1770
        %v1781 = vadd.f32 %v1743, %v1773
        %s1782 = sld [smem:[#allocation2 + $0x2e]]
        %v1783 = vstv %s1782
        %v1784 = vmul.f32 %v188, %v1783
        %v1785 = vmul.f32 %v189, %v1783
        %v1786 = vmul.f32 %v191, %v1783
        %v1787 = vmul.f32 %v192, %v1783
        %v1788 = vmul.f32 %v194, %v1783
        %v1789 = vmul.f32 %v195, %v1783
        %v1790 = vmul.f32 %v197, %v1783
        %v1791 = vmul.f32 %v198, %v1783
        %v1800 = vrot.slane %v1784, 7
        %v1801 = vrot.slane %v1785, 7
        %v1802 = vsel %vm485, %v1800, %v1801
        %v1803 = vrot.slane %v1786, 7
        %v1804 = vrot.slane %v1787, 7
        %v1805 = vsel %vm485, %v1803, %v1804
        %v1806 = vrot.slane %v1788, 7
        %v1807 = vrot.slane %v1789, 7
        %v1808 = vsel %vm485, %v1806, %v1807
        %v1809 = vrot.slane %v1790, 7
        %v1810 = vrot.slane %v1791, 7
        %v1811 = vsel %vm485, %v1809, %v1810
        %v1816 = vadd.f32 %v1778, %v1802
        %v1817 = vadd.f32 %v1779, %v1805
        %v1818 = vadd.f32 %v1780, %v1808
        %v1819 = vadd.f32 %v1781, %v1811
        %s1820 = sld [smem:[#allocation2 + $0x2f]]
        %v1821 = vstv %s1820
        %v1822 = vmul.f32 %v189, %v1821
        %v1823 = vmul.f32 %v192, %v1821
        %v1824 = vmul.f32 %v195, %v1821
        %v1825 = vmul.f32 %v198, %v1821
        %v1826 = vadd.f32 %v1816, %v1822
        %v1827 = vadd.f32 %v1817, %v1823
        %v1828 = vadd.f32 %v1818, %v1824
        %v1829 = vadd.f32 %v1819, %v1825
        %s1830 = sld [smem:[#allocation2 + $0x30]]
        %v1831 = vstv %s1830
        %v1832 = vmul.f32 %v189, %v1831
        %v1833 = vmul.f32 %v190, %v1831
        %v1834 = vmul.f32 %v192, %v1831
        %v1835 = vmul.f32 %v193, %v1831
        %v1836 = vmul.f32 %v195, %v1831
        %v1837 = vmul.f32 %v196, %v1831
        %v1838 = vmul.f32 %v198, %v1831
        %v1839 = vmul.f32 %v199, %v1831
        %v1848 = vrot.slane %v1832, 1
        %v1849 = vrot.slane %v1833, 1
        %v1850 = vsel %vm251, %v1848, %v1849
        %v1851 = vrot.slane %v1834, 1
        %v1852 = vrot.slane %v1835, 1
        %v1853 = vsel %vm251, %v1851, %v1852
        %v1854 = vrot.slane %v1836, 1
        %v1855 = vrot.slane %v1837, 1
        %v1856 = vsel %vm251, %v1854, %v1855
        %v1857 = vrot.slane %v1838, 1
        %v1858 = vrot.slane %v1839, 1
        %v1859 = vsel %vm251, %v1857, %v1858
        %v1864 = vadd.f32 %v1826, %v1850
        %v1865 = vadd.f32 %v1827, %v1853
        %v1866 = vadd.f32 %v1828, %v1856
        %v1867 = vadd.f32 %v1829, %v1859
        %s1868 = sld [smem:[#allocation2 + $0x31]]
        %v1869 = vstv %s1868
        %v1870 = vmul.f32 %v189, %v1869
        %v1871 = vmul.f32 %v190, %v1869
        %v1872 = vmul.f32 %v192, %v1869
        %v1873 = vmul.f32 %v193, %v1869
        %v1874 = vmul.f32 %v195, %v1869
        %v1875 = vmul.f32 %v196, %v1869
        %v1876 = vmul.f32 %v198, %v1869
        %v1877 = vmul.f32 %v199, %v1869
        %v1886 = vrot.slane %v1870, 2
        %v1887 = vrot.slane %v1871, 2
        %v1888 = vsel %vm290, %v1886, %v1887
        %v1889 = vrot.slane %v1872, 2
        %v1890 = vrot.slane %v1873, 2
        %v1891 = vsel %vm290, %v1889, %v1890
        %v1892 = vrot.slane %v1874, 2
        %v1893 = vrot.slane %v1875, 2
        %v1894 = vsel %vm290, %v1892, %v1893
        %v1895 = vrot.slane %v1876, 2
        %v1896 = vrot.slane %v1877, 2
        %v1897 = vsel %vm290, %v1895, %v1896
        %v1902 = vadd.f32 %v1864, %v1888
        %v1903 = vadd.f32 %v1865, %v1891
        %v1904 = vadd.f32 %v1866, %v1894
        %v1905 = vadd.f32 %v1867, %v1897
        %s1906 = sld [smem:[#allocation2 + $0x32]]
        %v1907 = vstv %s1906
        %v1908 = vmul.f32 %v189, %v1907
        %v1909 = vmul.f32 %v190, %v1907
        %v1910 = vmul.f32 %v192, %v1907
        %v1911 = vmul.f32 %v193, %v1907
        %v1912 = vmul.f32 %v195, %v1907
        %v1913 = vmul.f32 %v196, %v1907
        %v1914 = vmul.f32 %v198, %v1907
        %v1915 = vmul.f32 %v199, %v1907
        %v1924 = vrot.slane %v1908, 3
        %v1925 = vrot.slane %v1909, 3
        %v1926 = vsel %vm329, %v1924, %v1925
        %v1927 = vrot.slane %v1910, 3
        %v1928 = vrot.slane %v1911, 3
        %v1929 = vsel %vm329, %v1927, %v1928
        %v1930 = vrot.slane %v1912, 3
        %v1931 = vrot.slane %v1913, 3
        %v1932 = vsel %vm329, %v1930, %v1931
        %v1933 = vrot.slane %v1914, 3
        %v1934 = vrot.slane %v1915, 3
        %v1935 = vsel %vm329, %v1933, %v1934
        %v1940 = vadd.f32 %v1902, %v1926
        %v1941 = vadd.f32 %v1903, %v1929
        %v1942 = vadd.f32 %v1904, %v1932
        %v1943 = vadd.f32 %v1905, %v1935
        %s1944 = sld [smem:[#allocation2 + $0x33]]
        %v1945 = vstv %s1944
        %v1946 = vmul.f32 %v189, %v1945
        %v1947 = vmul.f32 %v190, %v1945
        %v1948 = vmul.f32 %v192, %v1945
        %v1949 = vmul.f32 %v193, %v1945
        %v1950 = vmul.f32 %v195, %v1945
        %v1951 = vmul.f32 %v196, %v1945
        %v1952 = vmul.f32 %v198, %v1945
        %v1953 = vmul.f32 %v199, %v1945
        %v1962 = vrot.slane %v1946, 4
        %v1963 = vrot.slane %v1947, 4
        %v1964 = vsel %vm368, %v1962, %v1963
        %v1965 = vrot.slane %v1948, 4
        %v1966 = vrot.slane %v1949, 4
        %v1967 = vsel %vm368, %v1965, %v1966
        %v1968 = vrot.slane %v1950, 4
        %v1969 = vrot.slane %v1951, 4
        %v1970 = vsel %vm368, %v1968, %v1969
        %v1971 = vrot.slane %v1952, 4
        %v1972 = vrot.slane %v1953, 4
        %v1973 = vsel %vm368, %v1971, %v1972
        %v1978 = vadd.f32 %v1940, %v1964
        %v1979 = vadd.f32 %v1941, %v1967
        %v1980 = vadd.f32 %v1942, %v1970
        %v1981 = vadd.f32 %v1943, %v1973
        %s1982 = sld [smem:[#allocation2 + $0x34]]
        %v1983 = vstv %s1982
        %v1984 = vmul.f32 %v191, %v1983
        %v1985 = vmul.f32 %v194, %v1983
        %v1986 = vmul.f32 %v197, %v1983
        %v1987 = vmul.f32 %v200, %v1983
        %v1988 = vadd.f32 %v1978, %v1984
        %v1989 = vadd.f32 %v1979, %v1985
        %v1990 = vadd.f32 %v1980, %v1986
        %v1991 = vadd.f32 %v1981, %v1987
        %s1992 = sld [smem:[#allocation2 + $0x35]]
        %v1993 = vstv %s1992
        %v1994 = vmul.f32 %v191, %v1993
        %v1995 = vmul.f32 %v192, %v1993
        %v1996 = vmul.f32 %v194, %v1993
        %v1997 = vmul.f32 %v195, %v1993
        %v1998 = vmul.f32 %v197, %v1993
        %v1999 = vmul.f32 %v198, %v1993
        %v2000 = vmul.f32 %v200, %v1993
        %v2001 = vmul.f32 %v201, %v1993
        %v2010 = vrot.slane %v1994, 1
        %v2011 = vrot.slane %v1995, 1
        %v2012 = vsel %vm251, %v2010, %v2011
        %v2013 = vrot.slane %v1996, 1
        %v2014 = vrot.slane %v1997, 1
        %v2015 = vsel %vm251, %v2013, %v2014
        %v2016 = vrot.slane %v1998, 1
        %v2017 = vrot.slane %v1999, 1
        %v2018 = vsel %vm251, %v2016, %v2017
        %v2019 = vrot.slane %v2000, 1
        %v2020 = vrot.slane %v2001, 1
        %v2021 = vsel %vm251, %v2019, %v2020
        %v2026 = vadd.f32 %v1988, %v2012
        %v2027 = vadd.f32 %v1989, %v2015
        %v2028 = vadd.f32 %v1990, %v2018
        %v2029 = vadd.f32 %v1991, %v2021
        %s2030 = sld [smem:[#allocation2 + $0x36]]
        %v2031 = vstv %s2030
        %v2032 = vmul.f32 %v191, %v2031
        %v2033 = vmul.f32 %v192, %v2031
        %v2034 = vmul.f32 %v194, %v2031
        %v2035 = vmul.f32 %v195, %v2031
        %v2036 = vmul.f32 %v197, %v2031
        %v2037 = vmul.f32 %v198, %v2031
        %v2038 = vmul.f32 %v200, %v2031
        %v2039 = vmul.f32 %v201, %v2031
        %v2048 = vrot.slane %v2032, 2
        %v2049 = vrot.slane %v2033, 2
        %v2050 = vsel %vm290, %v2048, %v2049
        %v2051 = vrot.slane %v2034, 2
        %v2052 = vrot.slane %v2035, 2
        %v2053 = vsel %vm290, %v2051, %v2052
        %v2054 = vrot.slane %v2036, 2
        %v2055 = vrot.slane %v2037, 2
        %v2056 = vsel %vm290, %v2054, %v2055
        %v2057 = vrot.slane %v2038, 2
        %v2058 = vrot.slane %v2039, 2
        %v2059 = vsel %vm290, %v2057, %v2058
        %v2064 = vadd.f32 %v2026, %v2050
        %v2065 = vadd.f32 %v2027, %v2053
        %v2066 = vadd.f32 %v2028, %v2056
        %v2067 = vadd.f32 %v2029, %v2059
        %s2068 = sld [smem:[#allocation2 + $0x37]]
        %v2069 = vstv %s2068
        %v2070 = vmul.f32 %v191, %v2069
        %v2071 = vmul.f32 %v192, %v2069
        %v2072 = vmul.f32 %v194, %v2069
        %v2073 = vmul.f32 %v195, %v2069
        %v2074 = vmul.f32 %v197, %v2069
        %v2075 = vmul.f32 %v198, %v2069
        %v2076 = vmul.f32 %v200, %v2069
        %v2077 = vmul.f32 %v201, %v2069
        %v2086 = vrot.slane %v2070, 3
        %v2087 = vrot.slane %v2071, 3
        %v2088 = vsel %vm329, %v2086, %v2087
        %v2089 = vrot.slane %v2072, 3
        %v2090 = vrot.slane %v2073, 3
        %v2091 = vsel %vm329, %v2089, %v2090
        %v2092 = vrot.slane %v2074, 3
        %v2093 = vrot.slane %v2075, 3
        %v2094 = vsel %vm329, %v2092, %v2093
        %v2095 = vrot.slane %v2076, 3
        %v2096 = vrot.slane %v2077, 3
        %v2097 = vsel %vm329, %v2095, %v2096
        %v2102 = vadd.f32 %v2064, %v2088
        %v2103 = vadd.f32 %v2065, %v2091
        %v2104 = vadd.f32 %v2066, %v2094
        %v2105 = vadd.f32 %v2067, %v2097
        %s2106 = sld [smem:[#allocation2 + $0x38]]
        %v2107 = vstv %s2106
        %v2108 = vmul.f32 %v191, %v2107
        %v2109 = vmul.f32 %v192, %v2107
        %v2110 = vmul.f32 %v194, %v2107
        %v2111 = vmul.f32 %v195, %v2107
        %v2112 = vmul.f32 %v197, %v2107
        %v2113 = vmul.f32 %v198, %v2107
        %v2114 = vmul.f32 %v200, %v2107
        %v2115 = vmul.f32 %v201, %v2107
        %v2124 = vrot.slane %v2108, 4
        %v2125 = vrot.slane %v2109, 4
        %v2126 = vsel %vm368, %v2124, %v2125
        %v2127 = vrot.slane %v2110, 4
        %v2128 = vrot.slane %v2111, 4
        %v2129 = vsel %vm368, %v2127, %v2128
        %v2130 = vrot.slane %v2112, 4
        %v2131 = vrot.slane %v2113, 4
        %v2132 = vsel %vm368, %v2130, %v2131
        %v2133 = vrot.slane %v2114, 4
        %v2134 = vrot.slane %v2115, 4
        %v2135 = vsel %vm368, %v2133, %v2134
        %v2140 = vadd.f32 %v2102, %v2126
        %v2141 = vadd.f32 %v2103, %v2129
        %v2142 = vadd.f32 %v2104, %v2132
        %v2143 = vadd.f32 %v2105, %v2135
        %s2144 = sld [smem:[#allocation2 + $0x39]]
        %v2145 = vstv %s2144
        %v2146 = vmul.f32 %v191, %v2145
        %v2147 = vmul.f32 %v192, %v2145
        %v2148 = vmul.f32 %v194, %v2145
        %v2149 = vmul.f32 %v195, %v2145
        %v2150 = vmul.f32 %v197, %v2145
        %v2151 = vmul.f32 %v198, %v2145
        %v2152 = vmul.f32 %v200, %v2145
        %v2153 = vmul.f32 %v201, %v2145
        %v2162 = vrot.slane %v2146, 5
        %v2163 = vrot.slane %v2147, 5
        %v2164 = vsel %vm407, %v2162, %v2163
        %v2165 = vrot.slane %v2148, 5
        %v2166 = vrot.slane %v2149, 5
        %v2167 = vsel %vm407, %v2165, %v2166
        %v2168 = vrot.slane %v2150, 5
        %v2169 = vrot.slane %v2151, 5
        %v2170 = vsel %vm407, %v2168, %v2169
        %v2171 = vrot.slane %v2152, 5
        %v2172 = vrot.slane %v2153, 5
        %v2173 = vsel %vm407, %v2171, %v2172
        %v2178 = vadd.f32 %v2140, %v2164
        %v2179 = vadd.f32 %v2141, %v2167
        %v2180 = vadd.f32 %v2142, %v2170
        %v2181 = vadd.f32 %v2143, %v2173
        %s2182 = sld [smem:[#allocation2 + $0x3a]]
        %v2183 = vstv %s2182
        %v2184 = vmul.f32 %v191, %v2183
        %v2185 = vmul.f32 %v192, %v2183
        %v2186 = vmul.f32 %v194, %v2183
        %v2187 = vmul.f32 %v195, %v2183
        %v2188 = vmul.f32 %v197, %v2183
        %v2189 = vmul.f32 %v198, %v2183
        %v2190 = vmul.f32 %v200, %v2183
        %v2191 = vmul.f32 %v201, %v2183
        %v2200 = vrot.slane %v2184, 6
        %v2201 = vrot.slane %v2185, 6
        %v2202 = vsel %vm446, %v2200, %v2201
        %v2203 = vrot.slane %v2186, 6
        %v2204 = vrot.slane %v2187, 6
        %v2205 = vsel %vm446, %v2203, %v2204
        %v2206 = vrot.slane %v2188, 6
        %v2207 = vrot.slane %v2189, 6
        %v2208 = vsel %vm446, %v2206, %v2207
        %v2209 = vrot.slane %v2190, 6
        %v2210 = vrot.slane %v2191, 6
        %v2211 = vsel %vm446, %v2209, %v2210
        %v2216 = vadd.f32 %v2178, %v2202
        %v2217 = vadd.f32 %v2179, %v2205
        %v2218 = vadd.f32 %v2180, %v2208
        %v2219 = vadd.f32 %v2181, %v2211
        %s2220 = sld [smem:[#allocation2 + $0x3b]]
        %v2221 = vstv %s2220
        %v2222 = vmul.f32 %v191, %v2221
        %v2223 = vmul.f32 %v192, %v2221
        %v2224 = vmul.f32 %v194, %v2221
        %v2225 = vmul.f32 %v195, %v2221
        %v2226 = vmul.f32 %v197, %v2221
        %v2227 = vmul.f32 %v198, %v2221
        %v2228 = vmul.f32 %v200, %v2221
        %v2229 = vmul.f32 %v201, %v2221
        %v2238 = vrot.slane %v2222, 7
        %v2239 = vrot.slane %v2223, 7
        %v2240 = vsel %vm485, %v2238, %v2239
        %v2241 = vrot.slane %v2224, 7
        %v2242 = vrot.slane %v2225, 7
        %v2243 = vsel %vm485, %v2241, %v2242
        %v2244 = vrot.slane %v2226, 7
        %v2245 = vrot.slane %v2227, 7
        %v2246 = vsel %vm485, %v2244, %v2245
        %v2247 = vrot.slane %v2228, 7
        %v2248 = vrot.slane %v2229, 7
        %v2249 = vsel %vm485, %v2247, %v2248
        %v2254 = vadd.f32 %v2216, %v2240
        %v2255 = vadd.f32 %v2217, %v2243
        %v2256 = vadd.f32 %v2218, %v2246
        %v2257 = vadd.f32 %v2219, %v2249
        %s2258 = sld [smem:[#allocation2 + $0x3c]]
        %v2259 = vstv %s2258
        %v2260 = vmul.f32 %v192, %v2259
        %v2261 = vmul.f32 %v195, %v2259
        %v2262 = vmul.f32 %v198, %v2259
        %v2263 = vmul.f32 %v201, %v2259
        %v2264 = vadd.f32 %v2254, %v2260
        %v2265 = vadd.f32 %v2255, %v2261
        %v2266 = vadd.f32 %v2256, %v2262
        %v2267 = vadd.f32 %v2257, %v2263
        %s2268 = sld [smem:[#allocation2 + $0x3d]]
        %v2269 = vstv %s2268
        %v2270 = vmul.f32 %v192, %v2269
        %v2271 = vmul.f32 %v193, %v2269
        %v2272 = vmul.f32 %v195, %v2269
        %v2273 = vmul.f32 %v196, %v2269
        %v2274 = vmul.f32 %v198, %v2269
        %v2275 = vmul.f32 %v199, %v2269
        %v2276 = vmul.f32 %v201, %v2269
        %v2277 = vmul.f32 %v202, %v2269
        %v2286 = vrot.slane %v2270, 1
        %v2287 = vrot.slane %v2271, 1
        %v2288 = vsel %vm251, %v2286, %v2287
        %v2289 = vrot.slane %v2272, 1
        %v2290 = vrot.slane %v2273, 1
        %v2291 = vsel %vm251, %v2289, %v2290
        %v2292 = vrot.slane %v2274, 1
        %v2293 = vrot.slane %v2275, 1
        %v2294 = vsel %vm251, %v2292, %v2293
        %v2295 = vrot.slane %v2276, 1
        %v2296 = vrot.slane %v2277, 1
        %v2297 = vsel %vm251, %v2295, %v2296
        %v2302 = vadd.f32 %v2264, %v2288
        %v2303 = vadd.f32 %v2265, %v2291
        %v2304 = vadd.f32 %v2266, %v2294
        %v2305 = vadd.f32 %v2267, %v2297
        %s2306 = sld [smem:[#allocation2 + $0x3e]]
        %v2307 = vstv %s2306
        %v2308 = vmul.f32 %v192, %v2307
        %v2309 = vmul.f32 %v193, %v2307
        %v2310 = vmul.f32 %v195, %v2307
        %v2311 = vmul.f32 %v196, %v2307
        %v2312 = vmul.f32 %v198, %v2307
        %v2313 = vmul.f32 %v199, %v2307
        %v2314 = vmul.f32 %v201, %v2307
        %v2315 = vmul.f32 %v202, %v2307
        %v2324 = vrot.slane %v2308, 2
        %v2325 = vrot.slane %v2309, 2
        %v2326 = vsel %vm290, %v2324, %v2325
        %v2327 = vrot.slane %v2310, 2
        %v2328 = vrot.slane %v2311, 2
        %v2329 = vsel %vm290, %v2327, %v2328
        %v2330 = vrot.slane %v2312, 2
        %v2331 = vrot.slane %v2313, 2
        %v2332 = vsel %vm290, %v2330, %v2331
        %v2333 = vrot.slane %v2314, 2
        %v2334 = vrot.slane %v2315, 2
        %v2335 = vsel %vm290, %v2333, %v2334
        %v2340 = vadd.f32 %v2302, %v2326
        %v2341 = vadd.f32 %v2303, %v2329
        %v2342 = vadd.f32 %v2304, %v2332
        %v2343 = vadd.f32 %v2305, %v2335
        %s2344 = sld [smem:[#allocation2 + $0x3f]]
        %v2345 = vstv %s2344
        %v2346 = vmul.f32 %v192, %v2345
        %v2347 = vmul.f32 %v193, %v2345
        %v2348 = vmul.f32 %v195, %v2345
        %v2349 = vmul.f32 %v196, %v2345
        %v2350 = vmul.f32 %v198, %v2345
        %v2351 = vmul.f32 %v199, %v2345
        %v2352 = vmul.f32 %v201, %v2345
        %v2353 = vmul.f32 %v202, %v2345
        %v2362 = vrot.slane %v2346, 3
        %v2363 = vrot.slane %v2347, 3
        %v2364 = vsel %vm329, %v2362, %v2363
        %v2365 = vrot.slane %v2348, 3
        %v2366 = vrot.slane %v2349, 3
        %v2367 = vsel %vm329, %v2365, %v2366
        %v2368 = vrot.slane %v2350, 3
        %v2369 = vrot.slane %v2351, 3
        %v2370 = vsel %vm329, %v2368, %v2369
        %v2371 = vrot.slane %v2352, 3
        %v2372 = vrot.slane %v2353, 3
        %v2373 = vsel %vm329, %v2371, %v2372
        %v2378 = vadd.f32 %v2340, %v2364
        %v2379 = vadd.f32 %v2341, %v2367
        %v2380 = vadd.f32 %v2342, %v2370
        %v2381 = vadd.f32 %v2343, %v2373
        %s2382 = sld [smem:[#allocation2 + $0x40]]
        %v2383 = vstv %s2382
        %v2384 = vmul.f32 %v192, %v2383
        %v2385 = vmul.f32 %v193, %v2383
        %v2386 = vmul.f32 %v195, %v2383
        %v2387 = vmul.f32 %v196, %v2383
        %v2388 = vmul.f32 %v198, %v2383
        %v2389 = vmul.f32 %v199, %v2383
        %v2390 = vmul.f32 %v201, %v2383
        %v2391 = vmul.f32 %v202, %v2383
        %v2400 = vrot.slane %v2384, 4
        %v2401 = vrot.slane %v2385, 4
        %v2402 = vsel %vm368, %v2400, %v2401
        %v2403 = vrot.slane %v2386, 4
        %v2404 = vrot.slane %v2387, 4
        %v2405 = vsel %vm368, %v2403, %v2404
        %v2406 = vrot.slane %v2388, 4
        %v2407 = vrot.slane %v2389, 4
        %v2408 = vsel %vm368, %v2406, %v2407
        %v2409 = vrot.slane %v2390, 4
        %v2410 = vrot.slane %v2391, 4
        %v2411 = vsel %vm368, %v2409, %v2410
        %v2416 = vadd.f32 %v2378, %v2402
        %v2417 = vadd.f32 %v2379, %v2405
        %v2418 = vadd.f32 %v2380, %v2408
        %v2419 = vadd.f32 %v2381, %v2411
        %s2420 = sld [smem:[#allocation2 + $0x41]]
        %v2421 = vstv %s2420
        %v2422 = vmul.f32 %v194, %v2421
        %v2423 = vmul.f32 %v197, %v2421
        %v2424 = vmul.f32 %v200, %v2421
        %v2425 = vmul.f32 %v203, %v2421
        %v2426 = vadd.f32 %v2416, %v2422
        %v2427 = vadd.f32 %v2417, %v2423
        %v2428 = vadd.f32 %v2418, %v2424
        %v2429 = vadd.f32 %v2419, %v2425
        %s2430 = sld [smem:[#allocation2 + $0x42]]
        %v2431 = vstv %s2430
        %v2432 = vmul.f32 %v194, %v2431
        %v2433 = vmul.f32 %v195, %v2431
        %v2434 = vmul.f32 %v197, %v2431
        %v2435 = vmul.f32 %v198, %v2431
        %v2436 = vmul.f32 %v200, %v2431
        %v2437 = vmul.f32 %v201, %v2431
        %v2438 = vmul.f32 %v203, %v2431
        %v2439 = vmul.f32 %v204, %v2431
        %v2448 = vrot.slane %v2432, 1
        %v2449 = vrot.slane %v2433, 1
        %v2450 = vsel %vm251, %v2448, %v2449
        %v2451 = vrot.slane %v2434, 1
        %v2452 = vrot.slane %v2435, 1
        %v2453 = vsel %vm251, %v2451, %v2452
        %v2454 = vrot.slane %v2436, 1
        %v2455 = vrot.slane %v2437, 1
        %v2456 = vsel %vm251, %v2454, %v2455
        %v2457 = vrot.slane %v2438, 1
        %v2458 = vrot.slane %v2439, 1
        %v2459 = vsel %vm251, %v2457, %v2458
        %v2464 = vadd.f32 %v2426, %v2450
        %v2465 = vadd.f32 %v2427, %v2453
        %v2466 = vadd.f32 %v2428, %v2456
        %v2467 = vadd.f32 %v2429, %v2459
        %s2468 = sld [smem:[#allocation2 + $0x43]]
        %v2469 = vstv %s2468
        %v2470 = vmul.f32 %v194, %v2469
        %v2471 = vmul.f32 %v195, %v2469
        %v2472 = vmul.f32 %v197, %v2469
        %v2473 = vmul.f32 %v198, %v2469
        %v2474 = vmul.f32 %v200, %v2469
        %v2475 = vmul.f32 %v201, %v2469
        %v2476 = vmul.f32 %v203, %v2469
        %v2477 = vmul.f32 %v204, %v2469
        %v2486 = vrot.slane %v2470, 2
        %v2487 = vrot.slane %v2471, 2
        %v2488 = vsel %vm290, %v2486, %v2487
        %v2489 = vrot.slane %v2472, 2
        %v2490 = vrot.slane %v2473, 2
        %v2491 = vsel %vm290, %v2489, %v2490
        %v2492 = vrot.slane %v2474, 2
        %v2493 = vrot.slane %v2475, 2
        %v2494 = vsel %vm290, %v2492, %v2493
        %v2495 = vrot.slane %v2476, 2
        %v2496 = vrot.slane %v2477, 2
        %v2497 = vsel %vm290, %v2495, %v2496
        %v2502 = vadd.f32 %v2464, %v2488
        %v2503 = vadd.f32 %v2465, %v2491
        %v2504 = vadd.f32 %v2466, %v2494
        %v2505 = vadd.f32 %v2467, %v2497
        %s2506 = sld [smem:[#allocation2 + $0x44]]
        %v2507 = vstv %s2506
        %v2508 = vmul.f32 %v194, %v2507
        %v2509 = vmul.f32 %v195, %v2507
        %v2510 = vmul.f32 %v197, %v2507
        %v2511 = vmul.f32 %v198, %v2507
        %v2512 = vmul.f32 %v200, %v2507
        %v2513 = vmul.f32 %v201, %v2507
        %v2514 = vmul.f32 %v203, %v2507
        %v2515 = vmul.f32 %v204, %v2507
        %v2524 = vrot.slane %v2508, 3
        %v2525 = vrot.slane %v2509, 3
        %v2526 = vsel %vm329, %v2524, %v2525
        %v2527 = vrot.slane %v2510, 3
        %v2528 = vrot.slane %v2511, 3
        %v2529 = vsel %vm329, %v2527, %v2528
        %v2530 = vrot.slane %v2512, 3
        %v2531 = vrot.slane %v2513, 3
        %v2532 = vsel %vm329, %v2530, %v2531
        %v2533 = vrot.slane %v2514, 3
        %v2534 = vrot.slane %v2515, 3
        %v2535 = vsel %vm329, %v2533, %v2534
        %v2540 = vadd.f32 %v2502, %v2526
        %v2541 = vadd.f32 %v2503, %v2529
        %v2542 = vadd.f32 %v2504, %v2532
        %v2543 = vadd.f32 %v2505, %v2535
        %s2544 = sld [smem:[#allocation2 + $0x45]]
        %v2545 = vstv %s2544
        %v2546 = vmul.f32 %v194, %v2545
        %v2547 = vmul.f32 %v195, %v2545
        %v2548 = vmul.f32 %v197, %v2545
        %v2549 = vmul.f32 %v198, %v2545
        %v2550 = vmul.f32 %v200, %v2545
        %v2551 = vmul.f32 %v201, %v2545
        %v2552 = vmul.f32 %v203, %v2545
        %v2553 = vmul.f32 %v204, %v2545
        %v2562 = vrot.slane %v2546, 4
        %v2563 = vrot.slane %v2547, 4
        %v2564 = vsel %vm368, %v2562, %v2563
        %v2565 = vrot.slane %v2548, 4
        %v2566 = vrot.slane %v2549, 4
        %v2567 = vsel %vm368, %v2565, %v2566
        %v2568 = vrot.slane %v2550, 4
        %v2569 = vrot.slane %v2551, 4
        %v2570 = vsel %vm368, %v2568, %v2569
        %v2571 = vrot.slane %v2552, 4
        %v2572 = vrot.slane %v2553, 4
        %v2573 = vsel %vm368, %v2571, %v2572
        %v2578 = vadd.f32 %v2540, %v2564
        %v2579 = vadd.f32 %v2541, %v2567
        %v2580 = vadd.f32 %v2542, %v2570
        %v2581 = vadd.f32 %v2543, %v2573
        %s2582 = sld [smem:[#allocation2 + $0x46]]
        %v2583 = vstv %s2582
        %v2584 = vmul.f32 %v194, %v2583
        %v2585 = vmul.f32 %v195, %v2583
        %v2586 = vmul.f32 %v197, %v2583
        %v2587 = vmul.f32 %v198, %v2583
        %v2588 = vmul.f32 %v200, %v2583
        %v2589 = vmul.f32 %v201, %v2583
        %v2590 = vmul.f32 %v203, %v2583
        %v2591 = vmul.f32 %v204, %v2583
        %v2600 = vrot.slane %v2584, 5
        %v2601 = vrot.slane %v2585, 5
        %v2602 = vsel %vm407, %v2600, %v2601
        %v2603 = vrot.slane %v2586, 5
        %v2604 = vrot.slane %v2587, 5
        %v2605 = vsel %vm407, %v2603, %v2604
        %v2606 = vrot.slane %v2588, 5
        %v2607 = vrot.slane %v2589, 5
        %v2608 = vsel %vm407, %v2606, %v2607
        %v2609 = vrot.slane %v2590, 5
        %v2610 = vrot.slane %v2591, 5
        %v2611 = vsel %vm407, %v2609, %v2610
        %v2616 = vadd.f32 %v2578, %v2602
        %v2617 = vadd.f32 %v2579, %v2605
        %v2618 = vadd.f32 %v2580, %v2608
        %v2619 = vadd.f32 %v2581, %v2611
        %s2620 = sld [smem:[#allocation2 + $0x47]]
        %v2621 = vstv %s2620
        %v2622 = vmul.f32 %v194, %v2621
        %v2623 = vmul.f32 %v195, %v2621
        %v2624 = vmul.f32 %v197, %v2621
        %v2625 = vmul.f32 %v198, %v2621
        %v2626 = vmul.f32 %v200, %v2621
        %v2627 = vmul.f32 %v201, %v2621
        %v2628 = vmul.f32 %v203, %v2621
        %v2629 = vmul.f32 %v204, %v2621
        %v2638 = vrot.slane %v2622, 6
        %v2639 = vrot.slane %v2623, 6
        %v2640 = vsel %vm446, %v2638, %v2639
        %v2641 = vrot.slane %v2624, 6
        %v2642 = vrot.slane %v2625, 6
        %v2643 = vsel %vm446, %v2641, %v2642
        %v2644 = vrot.slane %v2626, 6
        %v2645 = vrot.slane %v2627, 6
        %v2646 = vsel %vm446, %v2644, %v2645
        %v2647 = vrot.slane %v2628, 6
        %v2648 = vrot.slane %v2629, 6
        %v2649 = vsel %vm446, %v2647, %v2648
        %v2654 = vadd.f32 %v2616, %v2640
        %v2655 = vadd.f32 %v2617, %v2643
        %v2656 = vadd.f32 %v2618, %v2646
        %v2657 = vadd.f32 %v2619, %v2649
        %s2658 = sld [smem:[#allocation2 + $0x48]]
        %v2659 = vstv %s2658
        %v2660 = vmul.f32 %v194, %v2659
        %v2661 = vmul.f32 %v195, %v2659
        %v2662 = vmul.f32 %v197, %v2659
        %v2663 = vmul.f32 %v198, %v2659
        %v2664 = vmul.f32 %v200, %v2659
        %v2665 = vmul.f32 %v201, %v2659
        %v2666 = vmul.f32 %v203, %v2659
        %v2667 = vmul.f32 %v204, %v2659
        %v2676 = vrot.slane %v2660, 7
        %v2677 = vrot.slane %v2661, 7
        %v2678 = vsel %vm485, %v2676, %v2677
        %v2679 = vrot.slane %v2662, 7
        %v2680 = vrot.slane %v2663, 7
        %v2681 = vsel %vm485, %v2679, %v2680
        %v2682 = vrot.slane %v2664, 7
        %v2683 = vrot.slane %v2665, 7
        %v2684 = vsel %vm485, %v2682, %v2683
        %v2685 = vrot.slane %v2666, 7
        %v2686 = vrot.slane %v2667, 7
        %v2687 = vsel %vm485, %v2685, %v2686
        %v2692 = vadd.f32 %v2654, %v2678
        %v2693 = vadd.f32 %v2655, %v2681
        %v2694 = vadd.f32 %v2656, %v2684
        %v2695 = vadd.f32 %v2657, %v2687
        %s2696 = sld [smem:[#allocation2 + $0x49]]
        %v2697 = vstv %s2696
        %v2698 = vmul.f32 %v195, %v2697
        %v2699 = vmul.f32 %v198, %v2697
        %v2700 = vmul.f32 %v201, %v2697
        %v2701 = vmul.f32 %v204, %v2697
        %v2702 = vadd.f32 %v2692, %v2698
        %v2703 = vadd.f32 %v2693, %v2699
        %v2704 = vadd.f32 %v2694, %v2700
        %v2705 = vadd.f32 %v2695, %v2701
        %s2706 = sld [smem:[#allocation2 + $0x4a]]
        %v2707 = vstv %s2706
        %v2708 = vmul.f32 %v195, %v2707
        %v2709 = vmul.f32 %v196, %v2707
        %v2710 = vmul.f32 %v198, %v2707
        %v2711 = vmul.f32 %v199, %v2707
        %v2712 = vmul.f32 %v201, %v2707
        %v2713 = vmul.f32 %v202, %v2707
        %v2714 = vmul.f32 %v204, %v2707
        %v2715 = vmul.f32 %v205, %v2707
        %v2724 = vrot.slane %v2708, 1
        %v2725 = vrot.slane %v2709, 1
        %v2726 = vsel %vm251, %v2724, %v2725
        %v2727 = vrot.slane %v2710, 1
        %v2728 = vrot.slane %v2711, 1
        %v2729 = vsel %vm251, %v2727, %v2728
        %v2730 = vrot.slane %v2712, 1
        %v2731 = vrot.slane %v2713, 1
        %v2732 = vsel %vm251, %v2730, %v2731
        %v2733 = vrot.slane %v2714, 1
        %v2734 = vrot.slane %v2715, 1
        %v2735 = vsel %vm251, %v2733, %v2734
        %v2740 = vadd.f32 %v2702, %v2726
        %v2741 = vadd.f32 %v2703, %v2729
        %v2742 = vadd.f32 %v2704, %v2732
        %v2743 = vadd.f32 %v2705, %v2735
        %s2744 = sld [smem:[#allocation2 + $0x4b]]
        %v2745 = vstv %s2744
        %v2746 = vmul.f32 %v195, %v2745
        %v2747 = vmul.f32 %v196, %v2745
        %v2748 = vmul.f32 %v198, %v2745
        %v2749 = vmul.f32 %v199, %v2745
        %v2750 = vmul.f32 %v201, %v2745
        %v2751 = vmul.f32 %v202, %v2745
        %v2752 = vmul.f32 %v204, %v2745
        %v2753 = vmul.f32 %v205, %v2745
        %v2762 = vrot.slane %v2746, 2
        %v2763 = vrot.slane %v2747, 2
        %v2764 = vsel %vm290, %v2762, %v2763
        %v2765 = vrot.slane %v2748, 2
        %v2766 = vrot.slane %v2749, 2
        %v2767 = vsel %vm290, %v2765, %v2766
        %v2768 = vrot.slane %v2750, 2
        %v2769 = vrot.slane %v2751, 2
        %v2770 = vsel %vm290, %v2768, %v2769
        %v2771 = vrot.slane %v2752, 2
        %v2772 = vrot.slane %v2753, 2
        %v2773 = vsel %vm290, %v2771, %v2772
        %v2778 = vadd.f32 %v2740, %v2764
        %v2779 = vadd.f32 %v2741, %v2767
        %v2780 = vadd.f32 %v2742, %v2770
        %v2781 = vadd.f32 %v2743, %v2773
        %s2782 = sld [smem:[#allocation2 + $0x4c]]
        %v2783 = vstv %s2782
        %v2784 = vmul.f32 %v195, %v2783
        %v2785 = vmul.f32 %v196, %v2783
        %v2786 = vmul.f32 %v198, %v2783
        %v2787 = vmul.f32 %v199, %v2783
        %v2788 = vmul.f32 %v201, %v2783
        %v2789 = vmul.f32 %v202, %v2783
        %v2790 = vmul.f32 %v204, %v2783
        %v2791 = vmul.f32 %v205, %v2783
        %v2800 = vrot.slane %v2784, 3
        %v2801 = vrot.slane %v2785, 3
        %v2802 = vsel %vm329, %v2800, %v2801
        %v2803 = vrot.slane %v2786, 3
        %v2804 = vrot.slane %v2787, 3
        %v2805 = vsel %vm329, %v2803, %v2804
        %v2806 = vrot.slane %v2788, 3
        %v2807 = vrot.slane %v2789, 3
        %v2808 = vsel %vm329, %v2806, %v2807
        %v2809 = vrot.slane %v2790, 3
        %v2810 = vrot.slane %v2791, 3
        %v2811 = vsel %vm329, %v2809, %v2810
        %v2816 = vadd.f32 %v2778, %v2802
        %v2817 = vadd.f32 %v2779, %v2805
        %v2818 = vadd.f32 %v2780, %v2808
        %v2819 = vadd.f32 %v2781, %v2811
        %s2820 = sld [smem:[#allocation2 + $0x4d]]
        %v2821 = vstv %s2820
        %v2822 = vmul.f32 %v195, %v2821
        %v2823 = vmul.f32 %v196, %v2821
        %v2824 = vmul.f32 %v198, %v2821
        %v2825 = vmul.f32 %v199, %v2821
        %v2826 = vmul.f32 %v201, %v2821
        %v2827 = vmul.f32 %v202, %v2821
        %v2828 = vmul.f32 %v204, %v2821
        %v2829 = vmul.f32 %v205, %v2821
        %v2838 = vrot.slane %v2822, 4
        %v2839 = vrot.slane %v2823, 4
        %v2840 = vsel %vm368, %v2838, %v2839
        %v2841 = vrot.slane %v2824, 4
        %v2842 = vrot.slane %v2825, 4
        %v2843 = vsel %vm368, %v2841, %v2842
        %v2844 = vrot.slane %v2826, 4
        %v2845 = vrot.slane %v2827, 4
        %v2846 = vsel %vm368, %v2844, %v2845
        %v2847 = vrot.slane %v2828, 4
        %v2848 = vrot.slane %v2829, 4
        %v2849 = vsel %vm368, %v2847, %v2848
        %v2854 = vadd.f32 %v2816, %v2840
        %v2855 = vadd.f32 %v2817, %v2843
        %v2856 = vadd.f32 %v2818, %v2846
        %v2857 = vadd.f32 %v2819, %v2849
        %s2858 = sld [smem:[#allocation2 + $0x4e]]
        %v2859 = vstv %s2858
        %v2860 = vmul.f32 %v197, %v2859
        %v2861 = vmul.f32 %v200, %v2859
        %v2862 = vmul.f32 %v203, %v2859
        %v2863 = vmul.f32 %v206, %v2859
        %v2864 = vadd.f32 %v2854, %v2860
        %v2865 = vadd.f32 %v2855, %v2861
        %v2866 = vadd.f32 %v2856, %v2862
        %v2867 = vadd.f32 %v2857, %v2863
        %s2868 = sld [smem:[#allocation2 + $0x4f]]
        %v2869 = vstv %s2868
        %v2870 = vmul.f32 %v197, %v2869
        %v2871 = vmul.f32 %v198, %v2869
        %v2872 = vmul.f32 %v200, %v2869
        %v2873 = vmul.f32 %v201, %v2869
        %v2874 = vmul.f32 %v203, %v2869
        %v2875 = vmul.f32 %v204, %v2869
        %v2876 = vmul.f32 %v206, %v2869
        %v2877 = vmul.f32 %v207, %v2869
        %v2886 = vrot.slane %v2870, 1
        %v2887 = vrot.slane %v2871, 1
        %v2888 = vsel %vm251, %v2886, %v2887
        %v2889 = vrot.slane %v2872, 1
        %v2890 = vrot.slane %v2873, 1
        %v2891 = vsel %vm251, %v2889, %v2890
        %v2892 = vrot.slane %v2874, 1
        %v2893 = vrot.slane %v2875, 1
        %v2894 = vsel %vm251, %v2892, %v2893
        %v2895 = vrot.slane %v2876, 1
        %v2896 = vrot.slane %v2877, 1
        %v2897 = vsel %vm251, %v2895, %v2896
        %v2902 = vadd.f32 %v2864, %v2888
        %v2903 = vadd.f32 %v2865, %v2891
        %v2904 = vadd.f32 %v2866, %v2894
        %v2905 = vadd.f32 %v2867, %v2897
        %s2906 = sld [smem:[#allocation2 + $0x50]]
        %v2907 = vstv %s2906
        %v2908 = vmul.f32 %v197, %v2907
        %v2909 = vmul.f32 %v198, %v2907
        %v2910 = vmul.f32 %v200, %v2907
        %v2911 = vmul.f32 %v201, %v2907
        %v2912 = vmul.f32 %v203, %v2907
        %v2913 = vmul.f32 %v204, %v2907
        %v2914 = vmul.f32 %v206, %v2907
        %v2915 = vmul.f32 %v207, %v2907
        %v2924 = vrot.slane %v2908, 2
        %v2925 = vrot.slane %v2909, 2
        %v2926 = vsel %vm290, %v2924, %v2925
        %v2927 = vrot.slane %v2910, 2
        %v2928 = vrot.slane %v2911, 2
        %v2929 = vsel %vm290, %v2927, %v2928
        %v2930 = vrot.slane %v2912, 2
        %v2931 = vrot.slane %v2913, 2
        %v2932 = vsel %vm290, %v2930, %v2931
        %v2933 = vrot.slane %v2914, 2
        %v2934 = vrot.slane %v2915, 2
        %v2935 = vsel %vm290, %v2933, %v2934
        %v2940 = vadd.f32 %v2902, %v2926
        %v2941 = vadd.f32 %v2903, %v2929
        %v2942 = vadd.f32 %v2904, %v2932
        %v2943 = vadd.f32 %v2905, %v2935
        %s2944 = sld [smem:[#allocation2 + $0x51]]
        %v2945 = vstv %s2944
        %v2946 = vmul.f32 %v197, %v2945
        %v2947 = vmul.f32 %v198, %v2945
        %v2948 = vmul.f32 %v200, %v2945
        %v2949 = vmul.f32 %v201, %v2945
        %v2950 = vmul.f32 %v203, %v2945
        %v2951 = vmul.f32 %v204, %v2945
        %v2952 = vmul.f32 %v206, %v2945
        %v2953 = vmul.f32 %v207, %v2945
        %v2962 = vrot.slane %v2946, 3
        %v2963 = vrot.slane %v2947, 3
        %v2964 = vsel %vm329, %v2962, %v2963
        %v2965 = vrot.slane %v2948, 3
        %v2966 = vrot.slane %v2949, 3
        %v2967 = vsel %vm329, %v2965, %v2966
        %v2968 = vrot.slane %v2950, 3
        %v2969 = vrot.slane %v2951, 3
        %v2970 = vsel %vm329, %v2968, %v2969
        %v2971 = vrot.slane %v2952, 3
        %v2972 = vrot.slane %v2953, 3
        %v2973 = vsel %vm329, %v2971, %v2972
        %v2978 = vadd.f32 %v2940, %v2964
        %v2979 = vadd.f32 %v2941, %v2967
        %v2980 = vadd.f32 %v2942, %v2970
        %v2981 = vadd.f32 %v2943, %v2973
        %s2982 = sld [smem:[#allocation2 + $0x52]]
        %v2983 = vstv %s2982
        %v2984 = vmul.f32 %v197, %v2983
        %v2985 = vmul.f32 %v198, %v2983
        %v2986 = vmul.f32 %v200, %v2983
        %v2987 = vmul.f32 %v201, %v2983
        %v2988 = vmul.f32 %v203, %v2983
        %v2989 = vmul.f32 %v204, %v2983
        %v2990 = vmul.f32 %v206, %v2983
        %v2991 = vmul.f32 %v207, %v2983
        %v3000 = vrot.slane %v2984, 4
        %v3001 = vrot.slane %v2985, 4
        %v3002 = vsel %vm368, %v3000, %v3001
        %v3003 = vrot.slane %v2986, 4
        %v3004 = vrot.slane %v2987, 4
        %v3005 = vsel %vm368, %v3003, %v3004
        %v3006 = vrot.slane %v2988, 4
        %v3007 = vrot.slane %v2989, 4
        %v3008 = vsel %vm368, %v3006, %v3007
        %v3009 = vrot.slane %v2990, 4
        %v3010 = vrot.slane %v2991, 4
        %v3011 = vsel %vm368, %v3009, %v3010
        %v3016 = vadd.f32 %v2978, %v3002
        %v3017 = vadd.f32 %v2979, %v3005
        %v3018 = vadd.f32 %v2980, %v3008
        %v3019 = vadd.f32 %v2981, %v3011
        %s3020 = sld [smem:[#allocation2 + $0x53]]
        %v3021 = vstv %s3020
        %v3022 = vmul.f32 %v197, %v3021
        %v3023 = vmul.f32 %v198, %v3021
        %v3024 = vmul.f32 %v200, %v3021
        %v3025 = vmul.f32 %v201, %v3021
        %v3026 = vmul.f32 %v203, %v3021
        %v3027 = vmul.f32 %v204, %v3021
        %v3028 = vmul.f32 %v206, %v3021
        %v3029 = vmul.f32 %v207, %v3021
        %v3038 = vrot.slane %v3022, 5
        %v3039 = vrot.slane %v3023, 5
        %v3040 = vsel %vm407, %v3038, %v3039
        %v3041 = vrot.slane %v3024, 5
        %v3042 = vrot.slane %v3025, 5
        %v3043 = vsel %vm407, %v3041, %v3042
        %v3044 = vrot.slane %v3026, 5
        %v3045 = vrot.slane %v3027, 5
        %v3046 = vsel %vm407, %v3044, %v3045
        %v3047 = vrot.slane %v3028, 5
        %v3048 = vrot.slane %v3029, 5
        %v3049 = vsel %vm407, %v3047, %v3048
        %v3054 = vadd.f32 %v3016, %v3040
        %v3055 = vadd.f32 %v3017, %v3043
        %v3056 = vadd.f32 %v3018, %v3046
        %v3057 = vadd.f32 %v3019, %v3049
        %s3058 = sld [smem:[#allocation2 + $0x54]]
        %v3059 = vstv %s3058
        %v3060 = vmul.f32 %v197, %v3059
        %v3061 = vmul.f32 %v198, %v3059
        %v3062 = vmul.f32 %v200, %v3059
        %v3063 = vmul.f32 %v201, %v3059
        %v3064 = vmul.f32 %v203, %v3059
        %v3065 = vmul.f32 %v204, %v3059
        %v3066 = vmul.f32 %v206, %v3059
        %v3067 = vmul.f32 %v207, %v3059
        %v3076 = vrot.slane %v3060, 6
        %v3077 = vrot.slane %v3061, 6
        %v3078 = vsel %vm446, %v3076, %v3077
        %v3079 = vrot.slane %v3062, 6
        %v3080 = vrot.slane %v3063, 6
        %v3081 = vsel %vm446, %v3079, %v3080
        %v3082 = vrot.slane %v3064, 6
        %v3083 = vrot.slane %v3065, 6
        %v3084 = vsel %vm446, %v3082, %v3083
        %v3085 = vrot.slane %v3066, 6
        %v3086 = vrot.slane %v3067, 6
        %v3087 = vsel %vm446, %v3085, %v3086
        %v3092 = vadd.f32 %v3054, %v3078
        %v3093 = vadd.f32 %v3055, %v3081
        %v3094 = vadd.f32 %v3056, %v3084
        %v3095 = vadd.f32 %v3057, %v3087
        %s3096 = sld [smem:[#allocation2 + $0x55]]
        %v3097 = vstv %s3096
        %v3098 = vmul.f32 %v197, %v3097
        %v3099 = vmul.f32 %v198, %v3097
        %v3100 = vmul.f32 %v200, %v3097
        %v3101 = vmul.f32 %v201, %v3097
        %v3102 = vmul.f32 %v203, %v3097
        %v3103 = vmul.f32 %v204, %v3097
        %v3104 = vmul.f32 %v206, %v3097
        %v3105 = vmul.f32 %v207, %v3097
        %v3114 = vrot.slane %v3098, 7
        %v3115 = vrot.slane %v3099, 7
        %v3116 = vsel %vm485, %v3114, %v3115
        %v3117 = vrot.slane %v3100, 7
        %v3118 = vrot.slane %v3101, 7
        %v3119 = vsel %vm485, %v3117, %v3118
        %v3120 = vrot.slane %v3102, 7
        %v3121 = vrot.slane %v3103, 7
        %v3122 = vsel %vm485, %v3120, %v3121
        %v3123 = vrot.slane %v3104, 7
        %v3124 = vrot.slane %v3105, 7
        %v3125 = vsel %vm485, %v3123, %v3124
        %v3130 = vadd.f32 %v3092, %v3116
        %v3131 = vadd.f32 %v3093, %v3119
        %v3132 = vadd.f32 %v3094, %v3122
        %v3133 = vadd.f32 %v3095, %v3125
        %s3134 = sld [smem:[#allocation2 + $0x56]]
        %v3135 = vstv %s3134
        %v3136 = vmul.f32 %v198, %v3135
        %v3137 = vmul.f32 %v201, %v3135
        %v3138 = vmul.f32 %v204, %v3135
        %v3139 = vmul.f32 %v207, %v3135
        %v3140 = vadd.f32 %v3130, %v3136
        %v3141 = vadd.f32 %v3131, %v3137
        %v3142 = vadd.f32 %v3132, %v3138
        %v3143 = vadd.f32 %v3133, %v3139
        %s3144 = sld [smem:[#allocation2 + $0x57]]
        %v3145 = vstv %s3144
        %v3146 = vmul.f32 %v198, %v3145
        %v3147 = vmul.f32 %v199, %v3145
        %v3148 = vmul.f32 %v201, %v3145
        %v3149 = vmul.f32 %v202, %v3145
        %v3150 = vmul.f32 %v204, %v3145
        %v3151 = vmul.f32 %v205, %v3145
        %v3152 = vmul.f32 %v207, %v3145
        %v3153 = vmul.f32 %v208, %v3145
        %v3162 = vrot.slane %v3146, 1
        %v3163 = vrot.slane %v3147, 1
        %v3164 = vsel %vm251, %v3162, %v3163
        %v3165 = vrot.slane %v3148, 1
        %v3166 = vrot.slane %v3149, 1
        %v3167 = vsel %vm251, %v3165, %v3166
        %v3168 = vrot.slane %v3150, 1
        %v3169 = vrot.slane %v3151, 1
        %v3170 = vsel %vm251, %v3168, %v3169
        %v3171 = vrot.slane %v3152, 1
        %v3172 = vrot.slane %v3153, 1
        %v3173 = vsel %vm251, %v3171, %v3172
        %v3178 = vadd.f32 %v3140, %v3164
        %v3179 = vadd.f32 %v3141, %v3167
        %v3180 = vadd.f32 %v3142, %v3170
        %v3181 = vadd.f32 %v3143, %v3173
        %s3182 = sld [smem:[#allocation2 + $0x58]]
        %v3183 = vstv %s3182
        %v3184 = vmul.f32 %v198, %v3183
        %v3185 = vmul.f32 %v199, %v3183
        %v3186 = vmul.f32 %v201, %v3183
        %v3187 = vmul.f32 %v202, %v3183
        %v3188 = vmul.f32 %v204, %v3183
        %v3189 = vmul.f32 %v205, %v3183
        %v3190 = vmul.f32 %v207, %v3183
        %v3191 = vmul.f32 %v208, %v3183
        %v3200 = vrot.slane %v3184, 2
        %v3201 = vrot.slane %v3185, 2
        %v3202 = vsel %vm290, %v3200, %v3201
        %v3203 = vrot.slane %v3186, 2
        %v3204 = vrot.slane %v3187, 2
        %v3205 = vsel %vm290, %v3203, %v3204
        %v3206 = vrot.slane %v3188, 2
        %v3207 = vrot.slane %v3189, 2
        %v3208 = vsel %vm290, %v3206, %v3207
        %v3209 = vrot.slane %v3190, 2
        %v3210 = vrot.slane %v3191, 2
        %v3211 = vsel %vm290, %v3209, %v3210
        %v3216 = vadd.f32 %v3178, %v3202
        %v3217 = vadd.f32 %v3179, %v3205
        %v3218 = vadd.f32 %v3180, %v3208
        %v3219 = vadd.f32 %v3181, %v3211
        %s3220 = sld [smem:[#allocation2 + $0x59]]
        %v3221 = vstv %s3220
        %v3222 = vmul.f32 %v198, %v3221
        %v3223 = vmul.f32 %v199, %v3221
        %v3224 = vmul.f32 %v201, %v3221
        %v3225 = vmul.f32 %v202, %v3221
        %v3226 = vmul.f32 %v204, %v3221
        %v3227 = vmul.f32 %v205, %v3221
        %v3228 = vmul.f32 %v207, %v3221
        %v3229 = vmul.f32 %v208, %v3221
        %v3238 = vrot.slane %v3222, 3
        %v3239 = vrot.slane %v3223, 3
        %v3240 = vsel %vm329, %v3238, %v3239
        %v3241 = vrot.slane %v3224, 3
        %v3242 = vrot.slane %v3225, 3
        %v3243 = vsel %vm329, %v3241, %v3242
        %v3244 = vrot.slane %v3226, 3
        %v3245 = vrot.slane %v3227, 3
        %v3246 = vsel %vm329, %v3244, %v3245
        %v3247 = vrot.slane %v3228, 3
        %v3248 = vrot.slane %v3229, 3
        %v3249 = vsel %vm329, %v3247, %v3248
        %v3254 = vadd.f32 %v3216, %v3240
        %v3255 = vadd.f32 %v3217, %v3243
        %v3256 = vadd.f32 %v3218, %v3246
        %v3257 = vadd.f32 %v3219, %v3249
        %s3258 = sld [smem:[#allocation2 + $0x5a]]
        %v3259 = vstv %s3258
        %v3260 = vmul.f32 %v198, %v3259
        %v3261 = vmul.f32 %v199, %v3259
        %v3262 = vmul.f32 %v201, %v3259
        %v3263 = vmul.f32 %v202, %v3259
        %v3264 = vmul.f32 %v204, %v3259
        %v3265 = vmul.f32 %v205, %v3259
        %v3266 = vmul.f32 %v207, %v3259
        %v3267 = vmul.f32 %v208, %v3259
        %v3276 = vrot.slane %v3260, 4
        %v3277 = vrot.slane %v3261, 4
        %v3278 = vsel %vm368, %v3276, %v3277
        %v3279 = vrot.slane %v3262, 4
        %v3280 = vrot.slane %v3263, 4
        %v3281 = vsel %vm368, %v3279, %v3280
        %v3282 = vrot.slane %v3264, 4
        %v3283 = vrot.slane %v3265, 4
        %v3284 = vsel %vm368, %v3282, %v3283
        %v3285 = vrot.slane %v3266, 4
        %v3286 = vrot.slane %v3267, 4
        %v3287 = vsel %vm368, %v3285, %v3286
        %v3292 = vadd.f32 %v3254, %v3278
        %v3293 = vadd.f32 %v3255, %v3281
        %v3294 = vadd.f32 %v3256, %v3284
        %v3295 = vadd.f32 %v3257, %v3287
        %s3296 = sld [smem:[#allocation2 + $0x5b]]
        %v3297 = vstv %s3296
        %v3298 = vmul.f32 %v200, %v3297
        %v3299 = vmul.f32 %v203, %v3297
        %v3300 = vmul.f32 %v206, %v3297
        %v3301 = vmul.f32 %v209, %v3297
        %v3302 = vadd.f32 %v3292, %v3298
        %v3303 = vadd.f32 %v3293, %v3299
        %v3304 = vadd.f32 %v3294, %v3300
        %v3305 = vadd.f32 %v3295, %v3301
        %s3306 = sld [smem:[#allocation2 + $0x5c]]
        %v3307 = vstv %s3306
        %v3308 = vmul.f32 %v200, %v3307
        %v3309 = vmul.f32 %v201, %v3307
        %v3310 = vmul.f32 %v203, %v3307
        %v3311 = vmul.f32 %v204, %v3307
        %v3312 = vmul.f32 %v206, %v3307
        %v3313 = vmul.f32 %v207, %v3307
        %v3314 = vmul.f32 %v209, %v3307
        %v3315 = vmul.f32 %v210, %v3307
        %v3324 = vrot.slane %v3308, 1
        %v3325 = vrot.slane %v3309, 1
        %v3326 = vsel %vm251, %v3324, %v3325
        %v3327 = vrot.slane %v3310, 1
        %v3328 = vrot.slane %v3311, 1
        %v3329 = vsel %vm251, %v3327, %v3328
        %v3330 = vrot.slane %v3312, 1
        %v3331 = vrot.slane %v3313, 1
        %v3332 = vsel %vm251, %v3330, %v3331
        %v3333 = vrot.slane %v3314, 1
        %v3334 = vrot.slane %v3315, 1
        %v3335 = vsel %vm251, %v3333, %v3334
        %v3340 = vadd.f32 %v3302, %v3326
        %v3341 = vadd.f32 %v3303, %v3329
        %v3342 = vadd.f32 %v3304, %v3332
        %v3343 = vadd.f32 %v3305, %v3335
        %s3344 = sld [smem:[#allocation2 + $0x5d]]
        %v3345 = vstv %s3344
        %v3346 = vmul.f32 %v200, %v3345
        %v3347 = vmul.f32 %v201, %v3345
        %v3348 = vmul.f32 %v203, %v3345
        %v3349 = vmul.f32 %v204, %v3345
        %v3350 = vmul.f32 %v206, %v3345
        %v3351 = vmul.f32 %v207, %v3345
        %v3352 = vmul.f32 %v209, %v3345
        %v3353 = vmul.f32 %v210, %v3345
        %v3362 = vrot.slane %v3346, 2
        %v3363 = vrot.slane %v3347, 2
        %v3364 = vsel %vm290, %v3362, %v3363
        %v3365 = vrot.slane %v3348, 2
        %v3366 = vrot.slane %v3349, 2
        %v3367 = vsel %vm290, %v3365, %v3366
        %v3368 = vrot.slane %v3350, 2
        %v3369 = vrot.slane %v3351, 2
        %v3370 = vsel %vm290, %v3368, %v3369
        %v3371 = vrot.slane %v3352, 2
        %v3372 = vrot.slane %v3353, 2
        %v3373 = vsel %vm290, %v3371, %v3372
        %v3378 = vadd.f32 %v3340, %v3364
        %v3379 = vadd.f32 %v3341, %v3367
        %v3380 = vadd.f32 %v3342, %v3370
        %v3381 = vadd.f32 %v3343, %v3373
        %s3382 = sld [smem:[#allocation2 + $0x5e]]
        %v3383 = vstv %s3382
        %v3384 = vmul.f32 %v200, %v3383
        %v3385 = vmul.f32 %v201, %v3383
        %v3386 = vmul.f32 %v203, %v3383
        %v3387 = vmul.f32 %v204, %v3383
        %v3388 = vmul.f32 %v206, %v3383
        %v3389 = vmul.f32 %v207, %v3383
        %v3390 = vmul.f32 %v209, %v3383
        %v3391 = vmul.f32 %v210, %v3383
        %v3400 = vrot.slane %v3384, 3
        %v3401 = vrot.slane %v3385, 3
        %v3402 = vsel %vm329, %v3400, %v3401
        %v3403 = vrot.slane %v3386, 3
        %v3404 = vrot.slane %v3387, 3
        %v3405 = vsel %vm329, %v3403, %v3404
        %v3406 = vrot.slane %v3388, 3
        %v3407 = vrot.slane %v3389, 3
        %v3408 = vsel %vm329, %v3406, %v3407
        %v3409 = vrot.slane %v3390, 3
        %v3410 = vrot.slane %v3391, 3
        %v3411 = vsel %vm329, %v3409, %v3410
        %v3416 = vadd.f32 %v3378, %v3402
        %v3417 = vadd.f32 %v3379, %v3405
        %v3418 = vadd.f32 %v3380, %v3408
        %v3419 = vadd.f32 %v3381, %v3411
        %s3420 = sld [smem:[#allocation2 + $0x5f]]
        %v3421 = vstv %s3420
        %v3422 = vmul.f32 %v200, %v3421
        %v3423 = vmul.f32 %v201, %v3421
        %v3424 = vmul.f32 %v203, %v3421
        %v3425 = vmul.f32 %v204, %v3421
        %v3426 = vmul.f32 %v206, %v3421
        %v3427 = vmul.f32 %v207, %v3421
        %v3428 = vmul.f32 %v209, %v3421
        %v3429 = vmul.f32 %v210, %v3421
        %v3438 = vrot.slane %v3422, 4
        %v3439 = vrot.slane %v3423, 4
        %v3440 = vsel %vm368, %v3438, %v3439
        %v3441 = vrot.slane %v3424, 4
        %v3442 = vrot.slane %v3425, 4
        %v3443 = vsel %vm368, %v3441, %v3442
        %v3444 = vrot.slane %v3426, 4
        %v3445 = vrot.slane %v3427, 4
        %v3446 = vsel %vm368, %v3444, %v3445
        %v3447 = vrot.slane %v3428, 4
        %v3448 = vrot.slane %v3429, 4
        %v3449 = vsel %vm368, %v3447, %v3448
        %v3454 = vadd.f32 %v3416, %v3440
        %v3455 = vadd.f32 %v3417, %v3443
        %v3456 = vadd.f32 %v3418, %v3446
        %v3457 = vadd.f32 %v3419, %v3449
        %s3458 = sld [smem:[#allocation2 + $0x60]]
        %v3459 = vstv %s3458
        %v3460 = vmul.f32 %v200, %v3459
        %v3461 = vmul.f32 %v201, %v3459
        %v3462 = vmul.f32 %v203, %v3459
        %v3463 = vmul.f32 %v204, %v3459
        %v3464 = vmul.f32 %v206, %v3459
        %v3465 = vmul.f32 %v207, %v3459
        %v3466 = vmul.f32 %v209, %v3459
        %v3467 = vmul.f32 %v210, %v3459
        %v3476 = vrot.slane %v3460, 5
        %v3477 = vrot.slane %v3461, 5
        %v3478 = vsel %vm407, %v3476, %v3477
        %v3479 = vrot.slane %v3462, 5
        %v3480 = vrot.slane %v3463, 5
        %v3481 = vsel %vm407, %v3479, %v3480
        %v3482 = vrot.slane %v3464, 5
        %v3483 = vrot.slane %v3465, 5
        %v3484 = vsel %vm407, %v3482, %v3483
        %v3485 = vrot.slane %v3466, 5
        %v3486 = vrot.slane %v3467, 5
        %v3487 = vsel %vm407, %v3485, %v3486
        %v3492 = vadd.f32 %v3454, %v3478
        %v3493 = vadd.f32 %v3455, %v3481
        %v3494 = vadd.f32 %v3456, %v3484
        %v3495 = vadd.f32 %v3457, %v3487
        %s3496 = sld [smem:[#allocation2 + $0x61]]
        %v3497 = vstv %s3496
        %v3498 = vmul.f32 %v200, %v3497
        %v3499 = vmul.f32 %v201, %v3497
        %v3500 = vmul.f32 %v203, %v3497
        %v3501 = vmul.f32 %v204, %v3497
        %v3502 = vmul.f32 %v206, %v3497
        %v3503 = vmul.f32 %v207, %v3497
        %v3504 = vmul.f32 %v209, %v3497
        %v3505 = vmul.f32 %v210, %v3497
        %v3514 = vrot.slane %v3498, 6
        %v3515 = vrot.slane %v3499, 6
        %v3516 = vsel %vm446, %v3514, %v3515
        %v3517 = vrot.slane %v3500, 6
        %v3518 = vrot.slane %v3501, 6
        %v3519 = vsel %vm446, %v3517, %v3518
        %v3520 = vrot.slane %v3502, 6
        %v3521 = vrot.slane %v3503, 6
        %v3522 = vsel %vm446, %v3520, %v3521
        %v3523 = vrot.slane %v3504, 6
        %v3524 = vrot.slane %v3505, 6
        %v3525 = vsel %vm446, %v3523, %v3524
        %v3530 = vadd.f32 %v3492, %v3516
        %v3531 = vadd.f32 %v3493, %v3519
        %v3532 = vadd.f32 %v3494, %v3522
        %v3533 = vadd.f32 %v3495, %v3525
        %s3534 = sld [smem:[#allocation2 + $0x62]]
        %v3535 = vstv %s3534
        %v3536 = vmul.f32 %v200, %v3535
        %v3537 = vmul.f32 %v201, %v3535
        %v3538 = vmul.f32 %v203, %v3535
        %v3539 = vmul.f32 %v204, %v3535
        %v3540 = vmul.f32 %v206, %v3535
        %v3541 = vmul.f32 %v207, %v3535
        %v3542 = vmul.f32 %v209, %v3535
        %v3543 = vmul.f32 %v210, %v3535
        %v3552 = vrot.slane %v3536, 7
        %v3553 = vrot.slane %v3537, 7
        %v3554 = vsel %vm485, %v3552, %v3553
        %v3555 = vrot.slane %v3538, 7
        %v3556 = vrot.slane %v3539, 7
        %v3557 = vsel %vm485, %v3555, %v3556
        %v3558 = vrot.slane %v3540, 7
        %v3559 = vrot.slane %v3541, 7
        %v3560 = vsel %vm485, %v3558, %v3559
        %v3561 = vrot.slane %v3542, 7
        %v3562 = vrot.slane %v3543, 7
        %v3563 = vsel %vm485, %v3561, %v3562
        %v3568 = vadd.f32 %v3530, %v3554
        %v3569 = vadd.f32 %v3531, %v3557
        %v3570 = vadd.f32 %v3532, %v3560
        %v3571 = vadd.f32 %v3533, %v3563
        %s3572 = sld [smem:[#allocation2 + $0x63]]
        %v3573 = vstv %s3572
        %v3574 = vmul.f32 %v201, %v3573
        %v3575 = vmul.f32 %v204, %v3573
        %v3576 = vmul.f32 %v207, %v3573
        %v3577 = vmul.f32 %v210, %v3573
        %v3578 = vadd.f32 %v3568, %v3574
        %v3579 = vadd.f32 %v3569, %v3575
        %v3580 = vadd.f32 %v3570, %v3576
        %v3581 = vadd.f32 %v3571, %v3577
        %s3582 = sld [smem:[#allocation2 + $0x64]]
        %v3583 = vstv %s3582
        %v3584 = vmul.f32 %v201, %v3583
        %v3585 = vmul.f32 %v202, %v3583
        %v3586 = vmul.f32 %v204, %v3583
        %v3587 = vmul.f32 %v205, %v3583
        %v3588 = vmul.f32 %v207, %v3583
        %v3589 = vmul.f32 %v208, %v3583
        %v3590 = vmul.f32 %v210, %v3583
        %v3591 = vmul.f32 %v211, %v3583
        %v3600 = vrot.slane %v3584, 1
        %v3601 = vrot.slane %v3585, 1
        %v3602 = vsel %vm251, %v3600, %v3601
        %v3603 = vrot.slane %v3586, 1
        %v3604 = vrot.slane %v3587, 1
        %v3605 = vsel %vm251, %v3603, %v3604
        %v3606 = vrot.slane %v3588, 1
        %v3607 = vrot.slane %v3589, 1
        %v3608 = vsel %vm251, %v3606, %v3607
        %v3609 = vrot.slane %v3590, 1
        %v3610 = vrot.slane %v3591, 1
        %v3611 = vsel %vm251, %v3609, %v3610
        %v3616 = vadd.f32 %v3578, %v3602
        %v3617 = vadd.f32 %v3579, %v3605
        %v3618 = vadd.f32 %v3580, %v3608
        %v3619 = vadd.f32 %v3581, %v3611
        %s3620 = sld [smem:[#allocation2 + $0x65]]
        %v3621 = vstv %s3620
        %v3622 = vmul.f32 %v201, %v3621
        %v3623 = vmul.f32 %v202, %v3621
        %v3624 = vmul.f32 %v204, %v3621
        %v3625 = vmul.f32 %v205, %v3621
        %v3626 = vmul.f32 %v207, %v3621
        %v3627 = vmul.f32 %v208, %v3621
        %v3628 = vmul.f32 %v210, %v3621
        %v3629 = vmul.f32 %v211, %v3621
        %v3638 = vrot.slane %v3622, 2
        %v3639 = vrot.slane %v3623, 2
        %v3640 = vsel %vm290, %v3638, %v3639
        %v3641 = vrot.slane %v3624, 2
        %v3642 = vrot.slane %v3625, 2
        %v3643 = vsel %vm290, %v3641, %v3642
        %v3644 = vrot.slane %v3626, 2
        %v3645 = vrot.slane %v3627, 2
        %v3646 = vsel %vm290, %v3644, %v3645
        %v3647 = vrot.slane %v3628, 2
        %v3648 = vrot.slane %v3629, 2
        %v3649 = vsel %vm290, %v3647, %v3648
        %v3654 = vadd.f32 %v3616, %v3640
        %v3655 = vadd.f32 %v3617, %v3643
        %v3656 = vadd.f32 %v3618, %v3646
        %v3657 = vadd.f32 %v3619, %v3649
        %s3658 = sld [smem:[#allocation2 + $0x66]]
        %v3659 = vstv %s3658
        %v3660 = vmul.f32 %v201, %v3659
        %v3661 = vmul.f32 %v202, %v3659
        %v3662 = vmul.f32 %v204, %v3659
        %v3663 = vmul.f32 %v205, %v3659
        %v3664 = vmul.f32 %v207, %v3659
        %v3665 = vmul.f32 %v208, %v3659
        %v3666 = vmul.f32 %v210, %v3659
        %v3667 = vmul.f32 %v211, %v3659
        %v3676 = vrot.slane %v3660, 3
        %v3677 = vrot.slane %v3661, 3
        %v3678 = vsel %vm329, %v3676, %v3677
        %v3679 = vrot.slane %v3662, 3
        %v3680 = vrot.slane %v3663, 3
        %v3681 = vsel %vm329, %v3679, %v3680
        %v3682 = vrot.slane %v3664, 3
        %v3683 = vrot.slane %v3665, 3
        %v3684 = vsel %vm329, %v3682, %v3683
        %v3685 = vrot.slane %v3666, 3
        %v3686 = vrot.slane %v3667, 3
        %v3687 = vsel %vm329, %v3685, %v3686
        %v3692 = vadd.f32 %v3654, %v3678
        %v3693 = vadd.f32 %v3655, %v3681
        %v3694 = vadd.f32 %v3656, %v3684
        %v3695 = vadd.f32 %v3657, %v3687
        %s3696 = sld [smem:[#allocation2 + $0x67]]
        %v3697 = vstv %s3696
        %v3698 = vmul.f32 %v201, %v3697
        %v3699 = vmul.f32 %v202, %v3697
        %v3700 = vmul.f32 %v204, %v3697
        %v3701 = vmul.f32 %v205, %v3697
        %v3702 = vmul.f32 %v207, %v3697
        %v3703 = vmul.f32 %v208, %v3697
        %v3704 = vmul.f32 %v210, %v3697
        %v3705 = vmul.f32 %v211, %v3697
        %v3714 = vrot.slane %v3698, 4
        %v3715 = vrot.slane %v3699, 4
        %v3716 = vsel %vm368, %v3714, %v3715
        %v3717 = vrot.slane %v3700, 4
        %v3718 = vrot.slane %v3701, 4
        %v3719 = vsel %vm368, %v3717, %v3718
        %v3720 = vrot.slane %v3702, 4
        %v3721 = vrot.slane %v3703, 4
        %v3722 = vsel %vm368, %v3720, %v3721
        %v3723 = vrot.slane %v3704, 4
        %v3724 = vrot.slane %v3705, 4
        %v3725 = vsel %vm368, %v3723, %v3724
        %v3730 = vadd.f32 %v3692, %v3716
        %v3731 = vadd.f32 %v3693, %v3719
        %v3732 = vadd.f32 %v3694, %v3722
        %v3733 = vadd.f32 %v3695, %v3725
        %s3734 = sld [smem:[#allocation2 + $0x68]]
        %v3735 = vstv %s3734
        %v3736 = vmul.f32 %v203, %v3735
        %v3737 = vmul.f32 %v206, %v3735
        %v3738 = vmul.f32 %v209, %v3735
        %v3739 = vmul.f32 %v212, %v3735
        %v3740 = vadd.f32 %v3730, %v3736
        %v3741 = vadd.f32 %v3731, %v3737
        %v3742 = vadd.f32 %v3732, %v3738
        %v3743 = vadd.f32 %v3733, %v3739
        %s3744 = sld [smem:[#allocation2 + $0x69]]
        %v3745 = vstv %s3744
        %v3746 = vmul.f32 %v203, %v3745
        %v3747 = vmul.f32 %v204, %v3745
        %v3748 = vmul.f32 %v206, %v3745
        %v3749 = vmul.f32 %v207, %v3745
        %v3750 = vmul.f32 %v209, %v3745
        %v3751 = vmul.f32 %v210, %v3745
        %v3752 = vmul.f32 %v212, %v3745
        %v3753 = vmul.f32 %v213, %v3745
        %v3762 = vrot.slane %v3746, 1
        %v3763 = vrot.slane %v3747, 1
        %v3764 = vsel %vm251, %v3762, %v3763
        %v3765 = vrot.slane %v3748, 1
        %v3766 = vrot.slane %v3749, 1
        %v3767 = vsel %vm251, %v3765, %v3766
        %v3768 = vrot.slane %v3750, 1
        %v3769 = vrot.slane %v3751, 1
        %v3770 = vsel %vm251, %v3768, %v3769
        %v3771 = vrot.slane %v3752, 1
        %v3772 = vrot.slane %v3753, 1
        %v3773 = vsel %vm251, %v3771, %v3772
        %v3778 = vadd.f32 %v3740, %v3764
        %v3779 = vadd.f32 %v3741, %v3767
        %v3780 = vadd.f32 %v3742, %v3770
        %v3781 = vadd.f32 %v3743, %v3773
        %s3782 = sld [smem:[#allocation2 + $0x6a]]
        %v3783 = vstv %s3782
        %v3784 = vmul.f32 %v203, %v3783
        %v3785 = vmul.f32 %v204, %v3783
        %v3786 = vmul.f32 %v206, %v3783
        %v3787 = vmul.f32 %v207, %v3783
        %v3788 = vmul.f32 %v209, %v3783
        %v3789 = vmul.f32 %v210, %v3783
        %v3790 = vmul.f32 %v212, %v3783
        %v3791 = vmul.f32 %v213, %v3783
        %v3800 = vrot.slane %v3784, 2
        %v3801 = vrot.slane %v3785, 2
        %v3802 = vsel %vm290, %v3800, %v3801
        %v3803 = vrot.slane %v3786, 2
        %v3804 = vrot.slane %v3787, 2
        %v3805 = vsel %vm290, %v3803, %v3804
        %v3806 = vrot.slane %v3788, 2
        %v3807 = vrot.slane %v3789, 2
        %v3808 = vsel %vm290, %v3806, %v3807
        %v3809 = vrot.slane %v3790, 2
        %v3810 = vrot.slane %v3791, 2
        %v3811 = vsel %vm290, %v3809, %v3810
        %v3816 = vadd.f32 %v3778, %v3802
        %v3817 = vadd.f32 %v3779, %v3805
        %v3818 = vadd.f32 %v3780, %v3808
        %v3819 = vadd.f32 %v3781, %v3811
        %s3820 = sld [smem:[#allocation2 + $0x6b]]
        %v3821 = vstv %s3820
        %v3822 = vmul.f32 %v203, %v3821
        %v3823 = vmul.f32 %v204, %v3821
        %v3824 = vmul.f32 %v206, %v3821
        %v3825 = vmul.f32 %v207, %v3821
        %v3826 = vmul.f32 %v209, %v3821
        %v3827 = vmul.f32 %v210, %v3821
        %v3828 = vmul.f32 %v212, %v3821
        %v3829 = vmul.f32 %v213, %v3821
        %v3838 = vrot.slane %v3822, 3
        %v3839 = vrot.slane %v3823, 3
        %v3840 = vsel %vm329, %v3838, %v3839
        %v3841 = vrot.slane %v3824, 3
        %v3842 = vrot.slane %v3825, 3
        %v3843 = vsel %vm329, %v3841, %v3842
        %v3844 = vrot.slane %v3826, 3
        %v3845 = vrot.slane %v3827, 3
        %v3846 = vsel %vm329, %v3844, %v3845
        %v3847 = vrot.slane %v3828, 3
        %v3848 = vrot.slane %v3829, 3
        %v3849 = vsel %vm329, %v3847, %v3848
        %v3854 = vadd.f32 %v3816, %v3840
        %v3855 = vadd.f32 %v3817, %v3843
        %v3856 = vadd.f32 %v3818, %v3846
        %v3857 = vadd.f32 %v3819, %v3849
        %s3858 = sld [smem:[#allocation2 + $0x6c]]
        %v3859 = vstv %s3858
        %v3860 = vmul.f32 %v203, %v3859
        %v3861 = vmul.f32 %v204, %v3859
        %v3862 = vmul.f32 %v206, %v3859
        %v3863 = vmul.f32 %v207, %v3859
        %v3864 = vmul.f32 %v209, %v3859
        %v3865 = vmul.f32 %v210, %v3859
        %v3866 = vmul.f32 %v212, %v3859
        %v3867 = vmul.f32 %v213, %v3859
        %v3876 = vrot.slane %v3860, 4
        %v3877 = vrot.slane %v3861, 4
        %v3878 = vsel %vm368, %v3876, %v3877
        %v3879 = vrot.slane %v3862, 4
        %v3880 = vrot.slane %v3863, 4
        %v3881 = vsel %vm368, %v3879, %v3880
        %v3882 = vrot.slane %v3864, 4
        %v3883 = vrot.slane %v3865, 4
        %v3884 = vsel %vm368, %v3882, %v3883
        %v3885 = vrot.slane %v3866, 4
        %v3886 = vrot.slane %v3867, 4
        %v3887 = vsel %vm368, %v3885, %v3886
        %v3892 = vadd.f32 %v3854, %v3878
        %v3893 = vadd.f32 %v3855, %v3881
        %v3894 = vadd.f32 %v3856, %v3884
        %v3895 = vadd.f32 %v3857, %v3887
        %s3896 = sld [smem:[#allocation2 + $0x6d]]
        %v3897 = vstv %s3896
        %v3898 = vmul.f32 %v203, %v3897
        %v3899 = vmul.f32 %v204, %v3897
        %v3900 = vmul.f32 %v206, %v3897
        %v3901 = vmul.f32 %v207, %v3897
        %v3902 = vmul.f32 %v209, %v3897
        %v3903 = vmul.f32 %v210, %v3897
        %v3904 = vmul.f32 %v212, %v3897
        %v3905 = vmul.f32 %v213, %v3897
        %v3914 = vrot.slane %v3898, 5
        %v3915 = vrot.slane %v3899, 5
        %v3916 = vsel %vm407, %v3914, %v3915
        %v3917 = vrot.slane %v3900, 5
        %v3918 = vrot.slane %v3901, 5
        %v3919 = vsel %vm407, %v3917, %v3918
        %v3920 = vrot.slane %v3902, 5
        %v3921 = vrot.slane %v3903, 5
        %v3922 = vsel %vm407, %v3920, %v3921
        %v3923 = vrot.slane %v3904, 5
        %v3924 = vrot.slane %v3905, 5
        %v3925 = vsel %vm407, %v3923, %v3924
        %v3930 = vadd.f32 %v3892, %v3916
        %v3931 = vadd.f32 %v3893, %v3919
        %v3932 = vadd.f32 %v3894, %v3922
        %v3933 = vadd.f32 %v3895, %v3925
        %s3934 = sld [smem:[#allocation2 + $0x6e]]
        %v3935 = vstv %s3934
        %v3936 = vmul.f32 %v203, %v3935
        %v3937 = vmul.f32 %v204, %v3935
        %v3938 = vmul.f32 %v206, %v3935
        %v3939 = vmul.f32 %v207, %v3935
        %v3940 = vmul.f32 %v209, %v3935
        %v3941 = vmul.f32 %v210, %v3935
        %v3942 = vmul.f32 %v212, %v3935
        %v3943 = vmul.f32 %v213, %v3935
        %v3952 = vrot.slane %v3936, 6
        %v3953 = vrot.slane %v3937, 6
        %v3954 = vsel %vm446, %v3952, %v3953
        %v3955 = vrot.slane %v3938, 6
        %v3956 = vrot.slane %v3939, 6
        %v3957 = vsel %vm446, %v3955, %v3956
        %v3958 = vrot.slane %v3940, 6
        %v3959 = vrot.slane %v3941, 6
        %v3960 = vsel %vm446, %v3958, %v3959
        %v3961 = vrot.slane %v3942, 6
        %v3962 = vrot.slane %v3943, 6
        %v3963 = vsel %vm446, %v3961, %v3962
        %v3968 = vadd.f32 %v3930, %v3954
        %v3969 = vadd.f32 %v3931, %v3957
        %v3970 = vadd.f32 %v3932, %v3960
        %v3971 = vadd.f32 %v3933, %v3963
        %s3972 = sld [smem:[#allocation2 + $0x6f]]
        %v3973 = vstv %s3972
        %v3974 = vmul.f32 %v203, %v3973
        %v3975 = vmul.f32 %v204, %v3973
        %v3976 = vmul.f32 %v206, %v3973
        %v3977 = vmul.f32 %v207, %v3973
        %v3978 = vmul.f32 %v209, %v3973
        %v3979 = vmul.f32 %v210, %v3973
        %v3980 = vmul.f32 %v212, %v3973
        %v3981 = vmul.f32 %v213, %v3973
        %v3990 = vrot.slane %v3974, 7
        %v3991 = vrot.slane %v3975, 7
        %v3992 = vsel %vm485, %v3990, %v3991
        %v3993 = vrot.slane %v3976, 7
        %v3994 = vrot.slane %v3977, 7
        %v3995 = vsel %vm485, %v3993, %v3994
        %v3996 = vrot.slane %v3978, 7
        %v3997 = vrot.slane %v3979, 7
        %v3998 = vsel %vm485, %v3996, %v3997
        %v3999 = vrot.slane %v3980, 7
        %v4000 = vrot.slane %v3981, 7
        %v4001 = vsel %vm485, %v3999, %v4000
        %v4006 = vadd.f32 %v3968, %v3992
        %v4007 = vadd.f32 %v3969, %v3995
        %v4008 = vadd.f32 %v3970, %v3998
        %v4009 = vadd.f32 %v3971, %v4001
        %s4010 = sld [smem:[#allocation2 + $0x70]]
        %v4011 = vstv %s4010
        %v4012 = vmul.f32 %v204, %v4011
        %v4013 = vmul.f32 %v207, %v4011
        %v4014 = vmul.f32 %v210, %v4011
        %v4015 = vmul.f32 %v213, %v4011
        %v4016 = vadd.f32 %v4006, %v4012
        %v4017 = vadd.f32 %v4007, %v4013
        %v4018 = vadd.f32 %v4008, %v4014
        %v4019 = vadd.f32 %v4009, %v4015
        %s4020 = sld [smem:[#allocation2 + $0x71]]
        %v4021 = vstv %s4020
        %v4022 = vmul.f32 %v204, %v4021
        %v4023 = vmul.f32 %v205, %v4021
        %v4024 = vmul.f32 %v207, %v4021
        %v4025 = vmul.f32 %v208, %v4021
        %v4026 = vmul.f32 %v210, %v4021
        %v4027 = vmul.f32 %v211, %v4021
        %v4028 = vmul.f32 %v213, %v4021
        %v4029 = vmul.f32 %v214, %v4021
        %v4038 = vrot.slane %v4022, 1
        %v4039 = vrot.slane %v4023, 1
        %v4040 = vsel %vm251, %v4038, %v4039
        %v4041 = vrot.slane %v4024, 1
        %v4042 = vrot.slane %v4025, 1
        %v4043 = vsel %vm251, %v4041, %v4042
        %v4044 = vrot.slane %v4026, 1
        %v4045 = vrot.slane %v4027, 1
        %v4046 = vsel %vm251, %v4044, %v4045
        %v4047 = vrot.slane %v4028, 1
        %v4048 = vrot.slane %v4029, 1
        %v4049 = vsel %vm251, %v4047, %v4048
        %v4054 = vadd.f32 %v4016, %v4040
        %v4055 = vadd.f32 %v4017, %v4043
        %v4056 = vadd.f32 %v4018, %v4046
        %v4057 = vadd.f32 %v4019, %v4049
        %s4058 = sld [smem:[#allocation2 + $0x72]]
        %v4059 = vstv %s4058
        %v4060 = vmul.f32 %v204, %v4059
        %v4061 = vmul.f32 %v205, %v4059
        %v4062 = vmul.f32 %v207, %v4059
        %v4063 = vmul.f32 %v208, %v4059
        %v4064 = vmul.f32 %v210, %v4059
        %v4065 = vmul.f32 %v211, %v4059
        %v4066 = vmul.f32 %v213, %v4059
        %v4067 = vmul.f32 %v214, %v4059
        %v4076 = vrot.slane %v4060, 2
        %v4077 = vrot.slane %v4061, 2
        %v4078 = vsel %vm290, %v4076, %v4077
        %v4079 = vrot.slane %v4062, 2
        %v4080 = vrot.slane %v4063, 2
        %v4081 = vsel %vm290, %v4079, %v4080
        %v4082 = vrot.slane %v4064, 2
        %v4083 = vrot.slane %v4065, 2
        %v4084 = vsel %vm290, %v4082, %v4083
        %v4085 = vrot.slane %v4066, 2
        %v4086 = vrot.slane %v4067, 2
        %v4087 = vsel %vm290, %v4085, %v4086
        %v4092 = vadd.f32 %v4054, %v4078
        %v4093 = vadd.f32 %v4055, %v4081
        %v4094 = vadd.f32 %v4056, %v4084
        %v4095 = vadd.f32 %v4057, %v4087
        %s4096 = sld [smem:[#allocation2 + $0x73]]
        %v4097 = vstv %s4096
        %v4098 = vmul.f32 %v204, %v4097
        %v4099 = vmul.f32 %v205, %v4097
        %v4100 = vmul.f32 %v207, %v4097
        %v4101 = vmul.f32 %v208, %v4097
        %v4102 = vmul.f32 %v210, %v4097
        %v4103 = vmul.f32 %v211, %v4097
        %v4104 = vmul.f32 %v213, %v4097
        %v4105 = vmul.f32 %v214, %v4097
        %v4114 = vrot.slane %v4098, 3
        %v4115 = vrot.slane %v4099, 3
        %v4116 = vsel %vm329, %v4114, %v4115
        %v4117 = vrot.slane %v4100, 3
        %v4118 = vrot.slane %v4101, 3
        %v4119 = vsel %vm329, %v4117, %v4118
        %v4120 = vrot.slane %v4102, 3
        %v4121 = vrot.slane %v4103, 3
        %v4122 = vsel %vm329, %v4120, %v4121
        %v4123 = vrot.slane %v4104, 3
        %v4124 = vrot.slane %v4105, 3
        %v4125 = vsel %vm329, %v4123, %v4124
        %v4130 = vadd.f32 %v4092, %v4116
        %v4131 = vadd.f32 %v4093, %v4119
        %v4132 = vadd.f32 %v4094, %v4122
        %v4133 = vadd.f32 %v4095, %v4125
        %s4134 = sld [smem:[#allocation2 + $0x74]]
        %v4135 = vstv %s4134
        %v4136 = vmul.f32 %v204, %v4135
        %v4137 = vmul.f32 %v205, %v4135
        %v4138 = vmul.f32 %v207, %v4135
        %v4139 = vmul.f32 %v208, %v4135
        %v4140 = vmul.f32 %v210, %v4135
        %v4141 = vmul.f32 %v211, %v4135
        %v4142 = vmul.f32 %v213, %v4135
        %v4143 = vmul.f32 %v214, %v4135
        %v4152 = vrot.slane %v4136, 4
        %v4153 = vrot.slane %v4137, 4
        %v4154 = vsel %vm368, %v4152, %v4153
        %v4155 = vrot.slane %v4138, 4
        %v4156 = vrot.slane %v4139, 4
        %v4157 = vsel %vm368, %v4155, %v4156
        %v4158 = vrot.slane %v4140, 4
        %v4159 = vrot.slane %v4141, 4
        %v4160 = vsel %vm368, %v4158, %v4159
        %v4161 = vrot.slane %v4142, 4
        %v4162 = vrot.slane %v4143, 4
        %v4163 = vsel %vm368, %v4161, %v4162
        %v4168 = vadd.f32 %v4130, %v4154
        %v4169 = vadd.f32 %v4131, %v4157
        %v4170 = vadd.f32 %v4132, %v4160
        %v4171 = vadd.f32 %v4133, %v4163
        %s4172 = sld [smem:[#allocation2 + $0x75]]
        %v4173 = vstv %s4172
        %v4174 = vmul.f32 %v206, %v4173
        %v4175 = vmul.f32 %v209, %v4173
        %v4176 = vmul.f32 %v212, %v4173
        %v4177 = vmul.f32 %v215, %v4173
        %v4178 = vadd.f32 %v4168, %v4174
        %v4179 = vadd.f32 %v4169, %v4175
        %v4180 = vadd.f32 %v4170, %v4176
        %v4181 = vadd.f32 %v4171, %v4177
        %s4182 = sld [smem:[#allocation2 + $0x76]]
        %v4183 = vstv %s4182
        %v4184 = vmul.f32 %v206, %v4183
        %v4185 = vmul.f32 %v207, %v4183
        %v4186 = vmul.f32 %v209, %v4183
        %v4187 = vmul.f32 %v210, %v4183
        %v4188 = vmul.f32 %v212, %v4183
        %v4189 = vmul.f32 %v213, %v4183
        %v4190 = vmul.f32 %v215, %v4183
        %v4191 = vmul.f32 %v216, %v4183
        %v4200 = vrot.slane %v4184, 1
        %v4201 = vrot.slane %v4185, 1
        %v4202 = vsel %vm251, %v4200, %v4201
        %v4203 = vrot.slane %v4186, 1
        %v4204 = vrot.slane %v4187, 1
        %v4205 = vsel %vm251, %v4203, %v4204
        %v4206 = vrot.slane %v4188, 1
        %v4207 = vrot.slane %v4189, 1
        %v4208 = vsel %vm251, %v4206, %v4207
        %v4209 = vrot.slane %v4190, 1
        %v4210 = vrot.slane %v4191, 1
        %v4211 = vsel %vm251, %v4209, %v4210
        %v4216 = vadd.f32 %v4178, %v4202
        %v4217 = vadd.f32 %v4179, %v4205
        %v4218 = vadd.f32 %v4180, %v4208
        %v4219 = vadd.f32 %v4181, %v4211
        %s4220 = sld [smem:[#allocation2 + $0x77]]
        %v4221 = vstv %s4220
        %v4222 = vmul.f32 %v206, %v4221
        %v4223 = vmul.f32 %v207, %v4221
        %v4224 = vmul.f32 %v209, %v4221
        %v4225 = vmul.f32 %v210, %v4221
        %v4226 = vmul.f32 %v212, %v4221
        %v4227 = vmul.f32 %v213, %v4221
        %v4228 = vmul.f32 %v215, %v4221
        %v4229 = vmul.f32 %v216, %v4221
        %v4238 = vrot.slane %v4222, 2
        %v4239 = vrot.slane %v4223, 2
        %v4240 = vsel %vm290, %v4238, %v4239
        %v4241 = vrot.slane %v4224, 2
        %v4242 = vrot.slane %v4225, 2
        %v4243 = vsel %vm290, %v4241, %v4242
        %v4244 = vrot.slane %v4226, 2
        %v4245 = vrot.slane %v4227, 2
        %v4246 = vsel %vm290, %v4244, %v4245
        %v4247 = vrot.slane %v4228, 2
        %v4248 = vrot.slane %v4229, 2
        %v4249 = vsel %vm290, %v4247, %v4248
        %v4254 = vadd.f32 %v4216, %v4240
        %v4255 = vadd.f32 %v4217, %v4243
        %v4256 = vadd.f32 %v4218, %v4246
        %v4257 = vadd.f32 %v4219, %v4249
        %s4258 = sld [smem:[#allocation2 + $0x78]]
        %v4259 = vstv %s4258
        %v4260 = vmul.f32 %v206, %v4259
        %v4261 = vmul.f32 %v207, %v4259
        %v4262 = vmul.f32 %v209, %v4259
        %v4263 = vmul.f32 %v210, %v4259
        %v4264 = vmul.f32 %v212, %v4259
        %v4265 = vmul.f32 %v213, %v4259
        %v4266 = vmul.f32 %v215, %v4259
        %v4267 = vmul.f32 %v216, %v4259
        %v4276 = vrot.slane %v4260, 3
        %v4277 = vrot.slane %v4261, 3
        %v4278 = vsel %vm329, %v4276, %v4277
        %v4279 = vrot.slane %v4262, 3
        %v4280 = vrot.slane %v4263, 3
        %v4281 = vsel %vm329, %v4279, %v4280
        %v4282 = vrot.slane %v4264, 3
        %v4283 = vrot.slane %v4265, 3
        %v4284 = vsel %vm329, %v4282, %v4283
        %v4285 = vrot.slane %v4266, 3
        %v4286 = vrot.slane %v4267, 3
        %v4287 = vsel %vm329, %v4285, %v4286
        %v4292 = vadd.f32 %v4254, %v4278
        %v4293 = vadd.f32 %v4255, %v4281
        %v4294 = vadd.f32 %v4256, %v4284
        %v4295 = vadd.f32 %v4257, %v4287
        %s4296 = sld [smem:[#allocation2 + $0x79]]
        %v4297 = vstv %s4296
        %v4298 = vmul.f32 %v206, %v4297
        %v4299 = vmul.f32 %v207, %v4297
        %v4300 = vmul.f32 %v209, %v4297
        %v4301 = vmul.f32 %v210, %v4297
        %v4302 = vmul.f32 %v212, %v4297
        %v4303 = vmul.f32 %v213, %v4297
        %v4304 = vmul.f32 %v215, %v4297
        %v4305 = vmul.f32 %v216, %v4297
        %v4314 = vrot.slane %v4298, 4
        %v4315 = vrot.slane %v4299, 4
        %v4316 = vsel %vm368, %v4314, %v4315
        %v4317 = vrot.slane %v4300, 4
        %v4318 = vrot.slane %v4301, 4
        %v4319 = vsel %vm368, %v4317, %v4318
        %v4320 = vrot.slane %v4302, 4
        %v4321 = vrot.slane %v4303, 4
        %v4322 = vsel %vm368, %v4320, %v4321
        %v4323 = vrot.slane %v4304, 4
        %v4324 = vrot.slane %v4305, 4
        %v4325 = vsel %vm368, %v4323, %v4324
        %v4330 = vadd.f32 %v4292, %v4316
        %v4331 = vadd.f32 %v4293, %v4319
        %v4332 = vadd.f32 %v4294, %v4322
        %v4333 = vadd.f32 %v4295, %v4325
        %s4334 = sld [smem:[#allocation2 + $0x7a]]
        %v4335 = vstv %s4334
        %v4336 = vmul.f32 %v206, %v4335
        %v4337 = vmul.f32 %v207, %v4335
        %v4338 = vmul.f32 %v209, %v4335
        %v4339 = vmul.f32 %v210, %v4335
        %v4340 = vmul.f32 %v212, %v4335
        %v4341 = vmul.f32 %v213, %v4335
        %v4342 = vmul.f32 %v215, %v4335
        %v4343 = vmul.f32 %v216, %v4335
        %v4352 = vrot.slane %v4336, 5
        %v4353 = vrot.slane %v4337, 5
        %v4354 = vsel %vm407, %v4352, %v4353
        %v4355 = vrot.slane %v4338, 5
        %v4356 = vrot.slane %v4339, 5
        %v4357 = vsel %vm407, %v4355, %v4356
        %v4358 = vrot.slane %v4340, 5
        %v4359 = vrot.slane %v4341, 5
        %v4360 = vsel %vm407, %v4358, %v4359
        %v4361 = vrot.slane %v4342, 5
        %v4362 = vrot.slane %v4343, 5
        %v4363 = vsel %vm407, %v4361, %v4362
        %v4368 = vadd.f32 %v4330, %v4354
        %v4369 = vadd.f32 %v4331, %v4357
        %v4370 = vadd.f32 %v4332, %v4360
        %v4371 = vadd.f32 %v4333, %v4363
        %s4372 = sld [smem:[#allocation2 + $0x7b]]
        %v4373 = vstv %s4372
        %v4374 = vmul.f32 %v206, %v4373
        %v4375 = vmul.f32 %v207, %v4373
        %v4376 = vmul.f32 %v209, %v4373
        %v4377 = vmul.f32 %v210, %v4373
        %v4378 = vmul.f32 %v212, %v4373
        %v4379 = vmul.f32 %v213, %v4373
        %v4380 = vmul.f32 %v215, %v4373
        %v4381 = vmul.f32 %v216, %v4373
        %v4390 = vrot.slane %v4374, 6
        %v4391 = vrot.slane %v4375, 6
        %v4392 = vsel %vm446, %v4390, %v4391
        %v4393 = vrot.slane %v4376, 6
        %v4394 = vrot.slane %v4377, 6
        %v4395 = vsel %vm446, %v4393, %v4394
        %v4396 = vrot.slane %v4378, 6
        %v4397 = vrot.slane %v4379, 6
        %v4398 = vsel %vm446, %v4396, %v4397
        %v4399 = vrot.slane %v4380, 6
        %v4400 = vrot.slane %v4381, 6
        %v4401 = vsel %vm446, %v4399, %v4400
        %v4406 = vadd.f32 %v4368, %v4392
        %v4407 = vadd.f32 %v4369, %v4395
        %v4408 = vadd.f32 %v4370, %v4398
        %v4409 = vadd.f32 %v4371, %v4401
        %s4410 = sld [smem:[#allocation2 + $0x7c]]
        %v4411 = vstv %s4410
        %v4412 = vmul.f32 %v206, %v4411
        %v4413 = vmul.f32 %v207, %v4411
        %v4414 = vmul.f32 %v209, %v4411
        %v4415 = vmul.f32 %v210, %v4411
        %v4416 = vmul.f32 %v212, %v4411
        %v4417 = vmul.f32 %v213, %v4411
        %v4418 = vmul.f32 %v215, %v4411
        %v4419 = vmul.f32 %v216, %v4411
        %v4428 = vrot.slane %v4412, 7
        %v4429 = vrot.slane %v4413, 7
        %v4430 = vsel %vm485, %v4428, %v4429
        %v4431 = vrot.slane %v4414, 7
        %v4432 = vrot.slane %v4415, 7
        %v4433 = vsel %vm485, %v4431, %v4432
        %v4434 = vrot.slane %v4416, 7
        %v4435 = vrot.slane %v4417, 7
        %v4436 = vsel %vm485, %v4434, %v4435
        %v4437 = vrot.slane %v4418, 7
        %v4438 = vrot.slane %v4419, 7
        %v4439 = vsel %vm485, %v4437, %v4438
        %v4444 = vadd.f32 %v4406, %v4430
        %v4445 = vadd.f32 %v4407, %v4433
        %v4446 = vadd.f32 %v4408, %v4436
        %v4447 = vadd.f32 %v4409, %v4439
        %s4448 = sld [smem:[#allocation2 + $0x7d]]
        %v4449 = vstv %s4448
        %v4450 = vmul.f32 %v207, %v4449
        %v4451 = vmul.f32 %v210, %v4449
        %v4452 = vmul.f32 %v213, %v4449
        %v4453 = vmul.f32 %v216, %v4449
        %v4454 = vadd.f32 %v4444, %v4450
        %v4455 = vadd.f32 %v4445, %v4451
        %v4456 = vadd.f32 %v4446, %v4452
        %v4457 = vadd.f32 %v4447, %v4453
        %s4458 = sld [smem:[#allocation2 + $0x7e]]
        %v4459 = vstv %s4458
        %v4460 = vmul.f32 %v207, %v4459
        %v4461 = vmul.f32 %v208, %v4459
        %v4462 = vmul.f32 %v210, %v4459
        %v4463 = vmul.f32 %v211, %v4459
        %v4464 = vmul.f32 %v213, %v4459
        %v4465 = vmul.f32 %v214, %v4459
        %v4466 = vmul.f32 %v216, %v4459
        %v4467 = vmul.f32 %v217, %v4459
        %v4476 = vrot.slane %v4460, 1
        %v4477 = vrot.slane %v4461, 1
        %v4478 = vsel %vm251, %v4476, %v4477
        %v4479 = vrot.slane %v4462, 1
        %v4480 = vrot.slane %v4463, 1
        %v4481 = vsel %vm251, %v4479, %v4480
        %v4482 = vrot.slane %v4464, 1
        %v4483 = vrot.slane %v4465, 1
        %v4484 = vsel %vm251, %v4482, %v4483
        %v4485 = vrot.slane %v4466, 1
        %v4486 = vrot.slane %v4467, 1
        %v4487 = vsel %vm251, %v4485, %v4486
        %v4492 = vadd.f32 %v4454, %v4478
        %v4493 = vadd.f32 %v4455, %v4481
        %v4494 = vadd.f32 %v4456, %v4484
        %v4495 = vadd.f32 %v4457, %v4487
        %s4496 = sld [smem:[#allocation2 + $0x7f]]
        %v4497 = vstv %s4496
        %v4498 = vmul.f32 %v207, %v4497
        %v4499 = vmul.f32 %v208, %v4497
        %v4500 = vmul.f32 %v210, %v4497
        %v4501 = vmul.f32 %v211, %v4497
        %v4502 = vmul.f32 %v213, %v4497
        %v4503 = vmul.f32 %v214, %v4497
        %v4504 = vmul.f32 %v216, %v4497
        %v4505 = vmul.f32 %v217, %v4497
        %v4514 = vrot.slane %v4498, 2
        %v4515 = vrot.slane %v4499, 2
        %v4516 = vsel %vm290, %v4514, %v4515
        %v4517 = vrot.slane %v4500, 2
        %v4518 = vrot.slane %v4501, 2
        %v4519 = vsel %vm290, %v4517, %v4518
        %v4520 = vrot.slane %v4502, 2
        %v4521 = vrot.slane %v4503, 2
        %v4522 = vsel %vm290, %v4520, %v4521
        %v4523 = vrot.slane %v4504, 2
        %v4524 = vrot.slane %v4505, 2
        %v4525 = vsel %vm290, %v4523, %v4524
        %v4530 = vadd.f32 %v4492, %v4516
        %v4531 = vadd.f32 %v4493, %v4519
        %v4532 = vadd.f32 %v4494, %v4522
        %v4533 = vadd.f32 %v4495, %v4525
        %s4534 = sld [smem:[#allocation2 + $0x80]]
        %v4535 = vstv %s4534
        %v4536 = vmul.f32 %v207, %v4535
        %v4537 = vmul.f32 %v208, %v4535
        %v4538 = vmul.f32 %v210, %v4535
        %v4539 = vmul.f32 %v211, %v4535
        %v4540 = vmul.f32 %v213, %v4535
        %v4541 = vmul.f32 %v214, %v4535
        %v4542 = vmul.f32 %v216, %v4535
        %v4543 = vmul.f32 %v217, %v4535
        %v4552 = vrot.slane %v4536, 3
        %v4553 = vrot.slane %v4537, 3
        %v4554 = vsel %vm329, %v4552, %v4553
        %v4555 = vrot.slane %v4538, 3
        %v4556 = vrot.slane %v4539, 3
        %v4557 = vsel %vm329, %v4555, %v4556
        %v4558 = vrot.slane %v4540, 3
        %v4559 = vrot.slane %v4541, 3
        %v4560 = vsel %vm329, %v4558, %v4559
        %v4561 = vrot.slane %v4542, 3
        %v4562 = vrot.slane %v4543, 3
        %v4563 = vsel %vm329, %v4561, %v4562
        %v4568 = vadd.f32 %v4530, %v4554
        %v4569 = vadd.f32 %v4531, %v4557
        %v4570 = vadd.f32 %v4532, %v4560
        %v4571 = vadd.f32 %v4533, %v4563
        %s4572 = sld [smem:[#allocation2 + $0x81]]
        %v4573 = vstv %s4572
        %v4574 = vmul.f32 %v207, %v4573
        %v4575 = vmul.f32 %v208, %v4573
        %v4576 = vmul.f32 %v210, %v4573
        %v4577 = vmul.f32 %v211, %v4573
        %v4578 = vmul.f32 %v213, %v4573
        %v4579 = vmul.f32 %v214, %v4573
        %v4580 = vmul.f32 %v216, %v4573
        %v4581 = vmul.f32 %v217, %v4573
        %v4590 = vrot.slane %v4574, 4
        %v4591 = vrot.slane %v4575, 4
        %v4592 = vsel %vm368, %v4590, %v4591
        %v4593 = vrot.slane %v4576, 4
        %v4594 = vrot.slane %v4577, 4
        %v4595 = vsel %vm368, %v4593, %v4594
        %v4596 = vrot.slane %v4578, 4
        %v4597 = vrot.slane %v4579, 4
        %v4598 = vsel %vm368, %v4596, %v4597
        %v4599 = vrot.slane %v4580, 4
        %v4600 = vrot.slane %v4581, 4
        %v4601 = vsel %vm368, %v4599, %v4600
        %v4606 = vadd.f32 %v4568, %v4592
        %v4607 = vadd.f32 %v4569, %v4595
        %v4608 = vadd.f32 %v4570, %v4598
        %v4609 = vadd.f32 %v4571, %v4601
        %s4610 = sld [smem:[#allocation2 + $0x82]]
        %v4611 = vstv %s4610
        %v4612 = vmul.f32 %v209, %v4611
        %v4613 = vmul.f32 %v212, %v4611
        %v4614 = vmul.f32 %v215, %v4611
        %v4615 = vmul.f32 %v218, %v4611
        %v4616 = vadd.f32 %v4606, %v4612
        %v4617 = vadd.f32 %v4607, %v4613
        %v4618 = vadd.f32 %v4608, %v4614
        %v4619 = vadd.f32 %v4609, %v4615
        %s4620 = sld [smem:[#allocation2 + $0x83]]
        %v4621 = vstv %s4620
        %v4622 = vmul.f32 %v209, %v4621
        %v4623 = vmul.f32 %v210, %v4621
        %v4624 = vmul.f32 %v212, %v4621
        %v4625 = vmul.f32 %v213, %v4621
        %v4626 = vmul.f32 %v215, %v4621
        %v4627 = vmul.f32 %v216, %v4621
        %v4628 = vmul.f32 %v218, %v4621
        %v4629 = vmul.f32 %v219, %v4621
        %v4638 = vrot.slane %v4622, 1
        %v4639 = vrot.slane %v4623, 1
        %v4640 = vsel %vm251, %v4638, %v4639
        %v4641 = vrot.slane %v4624, 1
        %v4642 = vrot.slane %v4625, 1
        %v4643 = vsel %vm251, %v4641, %v4642
        %v4644 = vrot.slane %v4626, 1
        %v4645 = vrot.slane %v4627, 1
        %v4646 = vsel %vm251, %v4644, %v4645
        %v4647 = vrot.slane %v4628, 1
        %v4648 = vrot.slane %v4629, 1
        %v4649 = vsel %vm251, %v4647, %v4648
        %v4654 = vadd.f32 %v4616, %v4640
        %v4655 = vadd.f32 %v4617, %v4643
        %v4656 = vadd.f32 %v4618, %v4646
        %v4657 = vadd.f32 %v4619, %v4649
        %s4658 = sld [smem:[#allocation2 + $0x84]]
        %v4659 = vstv %s4658
        %v4660 = vmul.f32 %v209, %v4659
        %v4661 = vmul.f32 %v210, %v4659
        %v4662 = vmul.f32 %v212, %v4659
        %v4663 = vmul.f32 %v213, %v4659
        %v4664 = vmul.f32 %v215, %v4659
        %v4665 = vmul.f32 %v216, %v4659
        %v4666 = vmul.f32 %v218, %v4659
        %v4667 = vmul.f32 %v219, %v4659
        %v4676 = vrot.slane %v4660, 2
        %v4677 = vrot.slane %v4661, 2
        %v4678 = vsel %vm290, %v4676, %v4677
        %v4679 = vrot.slane %v4662, 2
        %v4680 = vrot.slane %v4663, 2
        %v4681 = vsel %vm290, %v4679, %v4680
        %v4682 = vrot.slane %v4664, 2
        %v4683 = vrot.slane %v4665, 2
        %v4684 = vsel %vm290, %v4682, %v4683
        %v4685 = vrot.slane %v4666, 2
        %v4686 = vrot.slane %v4667, 2
        %v4687 = vsel %vm290, %v4685, %v4686
        %v4692 = vadd.f32 %v4654, %v4678
        %v4693 = vadd.f32 %v4655, %v4681
        %v4694 = vadd.f32 %v4656, %v4684
        %v4695 = vadd.f32 %v4657, %v4687
        %s4696 = sld [smem:[#allocation2 + $0x85]]
        %v4697 = vstv %s4696
        %v4698 = vmul.f32 %v209, %v4697
        %v4699 = vmul.f32 %v210, %v4697
        %v4700 = vmul.f32 %v212, %v4697
        %v4701 = vmul.f32 %v213, %v4697
        %v4702 = vmul.f32 %v215, %v4697
        %v4703 = vmul.f32 %v216, %v4697
        %v4704 = vmul.f32 %v218, %v4697
        %v4705 = vmul.f32 %v219, %v4697
        %v4714 = vrot.slane %v4698, 3
        %v4715 = vrot.slane %v4699, 3
        %v4716 = vsel %vm329, %v4714, %v4715
        %v4717 = vrot.slane %v4700, 3
        %v4718 = vrot.slane %v4701, 3
        %v4719 = vsel %vm329, %v4717, %v4718
        %v4720 = vrot.slane %v4702, 3
        %v4721 = vrot.slane %v4703, 3
        %v4722 = vsel %vm329, %v4720, %v4721
        %v4723 = vrot.slane %v4704, 3
        %v4724 = vrot.slane %v4705, 3
        %v4725 = vsel %vm329, %v4723, %v4724
        %v4730 = vadd.f32 %v4692, %v4716
        %v4731 = vadd.f32 %v4693, %v4719
        %v4732 = vadd.f32 %v4694, %v4722
        %v4733 = vadd.f32 %v4695, %v4725
        %s4734 = sld [smem:[#allocation2 + $0x86]]
        %v4735 = vstv %s4734
        %v4736 = vmul.f32 %v209, %v4735
        %v4737 = vmul.f32 %v210, %v4735
        %v4738 = vmul.f32 %v212, %v4735
        %v4739 = vmul.f32 %v213, %v4735
        %v4740 = vmul.f32 %v215, %v4735
        %v4741 = vmul.f32 %v216, %v4735
        %v4742 = vmul.f32 %v218, %v4735
        %v4743 = vmul.f32 %v219, %v4735
        %v4752 = vrot.slane %v4736, 4
        %v4753 = vrot.slane %v4737, 4
        %v4754 = vsel %vm368, %v4752, %v4753
        %v4755 = vrot.slane %v4738, 4
        %v4756 = vrot.slane %v4739, 4
        %v4757 = vsel %vm368, %v4755, %v4756
        %v4758 = vrot.slane %v4740, 4
        %v4759 = vrot.slane %v4741, 4
        %v4760 = vsel %vm368, %v4758, %v4759
        %v4761 = vrot.slane %v4742, 4
        %v4762 = vrot.slane %v4743, 4
        %v4763 = vsel %vm368, %v4761, %v4762
        %v4768 = vadd.f32 %v4730, %v4754
        %v4769 = vadd.f32 %v4731, %v4757
        %v4770 = vadd.f32 %v4732, %v4760
        %v4771 = vadd.f32 %v4733, %v4763
        %s4772 = sld [smem:[#allocation2 + $0x87]]
        %v4773 = vstv %s4772
        %v4774 = vmul.f32 %v209, %v4773
        %v4775 = vmul.f32 %v210, %v4773
        %v4776 = vmul.f32 %v212, %v4773
        %v4777 = vmul.f32 %v213, %v4773
        %v4778 = vmul.f32 %v215, %v4773
        %v4779 = vmul.f32 %v216, %v4773
        %v4780 = vmul.f32 %v218, %v4773
        %v4781 = vmul.f32 %v219, %v4773
        %v4790 = vrot.slane %v4774, 5
        %v4791 = vrot.slane %v4775, 5
        %v4792 = vsel %vm407, %v4790, %v4791
        %v4793 = vrot.slane %v4776, 5
        %v4794 = vrot.slane %v4777, 5
        %v4795 = vsel %vm407, %v4793, %v4794
        %v4796 = vrot.slane %v4778, 5
        %v4797 = vrot.slane %v4779, 5
        %v4798 = vsel %vm407, %v4796, %v4797
        %v4799 = vrot.slane %v4780, 5
        %v4800 = vrot.slane %v4781, 5
        %v4801 = vsel %vm407, %v4799, %v4800
        %v4806 = vadd.f32 %v4768, %v4792
        %v4807 = vadd.f32 %v4769, %v4795
        %v4808 = vadd.f32 %v4770, %v4798
        %v4809 = vadd.f32 %v4771, %v4801
        %s4810 = sld [smem:[#allocation2 + $0x88]]
        %v4811 = vstv %s4810
        %v4812 = vmul.f32 %v209, %v4811
        %v4813 = vmul.f32 %v210, %v4811
        %v4814 = vmul.f32 %v212, %v4811
        %v4815 = vmul.f32 %v213, %v4811
        %v4816 = vmul.f32 %v215, %v4811
        %v4817 = vmul.f32 %v216, %v4811
        %v4818 = vmul.f32 %v218, %v4811
        %v4819 = vmul.f32 %v219, %v4811
        %v4828 = vrot.slane %v4812, 6
        %v4829 = vrot.slane %v4813, 6
        %v4830 = vsel %vm446, %v4828, %v4829
        %v4831 = vrot.slane %v4814, 6
        %v4832 = vrot.slane %v4815, 6
        %v4833 = vsel %vm446, %v4831, %v4832
        %v4834 = vrot.slane %v4816, 6
        %v4835 = vrot.slane %v4817, 6
        %v4836 = vsel %vm446, %v4834, %v4835
        %v4837 = vrot.slane %v4818, 6
        %v4838 = vrot.slane %v4819, 6
        %v4839 = vsel %vm446, %v4837, %v4838
        %v4844 = vadd.f32 %v4806, %v4830
        %v4845 = vadd.f32 %v4807, %v4833
        %v4846 = vadd.f32 %v4808, %v4836
        %v4847 = vadd.f32 %v4809, %v4839
        %s4848 = sld [smem:[#allocation2 + $0x89]]
        %v4849 = vstv %s4848
        %v4850 = vmul.f32 %v209, %v4849
        %v4851 = vmul.f32 %v210, %v4849
        %v4852 = vmul.f32 %v212, %v4849
        %v4853 = vmul.f32 %v213, %v4849
        %v4854 = vmul.f32 %v215, %v4849
        %v4855 = vmul.f32 %v216, %v4849
        %v4856 = vmul.f32 %v218, %v4849
        %v4857 = vmul.f32 %v219, %v4849
        %v4866 = vrot.slane %v4850, 7
        %v4867 = vrot.slane %v4851, 7
        %v4868 = vsel %vm485, %v4866, %v4867
        %v4869 = vrot.slane %v4852, 7
        %v4870 = vrot.slane %v4853, 7
        %v4871 = vsel %vm485, %v4869, %v4870
        %v4872 = vrot.slane %v4854, 7
        %v4873 = vrot.slane %v4855, 7
        %v4874 = vsel %vm485, %v4872, %v4873
        %v4875 = vrot.slane %v4856, 7
        %v4876 = vrot.slane %v4857, 7
        %v4877 = vsel %vm485, %v4875, %v4876
        %v4882 = vadd.f32 %v4844, %v4868
        %v4883 = vadd.f32 %v4845, %v4871
        %v4884 = vadd.f32 %v4846, %v4874
        %v4885 = vadd.f32 %v4847, %v4877
        %s4886 = sld [smem:[#allocation2 + $0x8a]]
        %v4887 = vstv %s4886
        %v4888 = vmul.f32 %v210, %v4887
        %v4889 = vmul.f32 %v213, %v4887
        %v4890 = vmul.f32 %v216, %v4887
        %v4891 = vmul.f32 %v219, %v4887
        %v4892 = vadd.f32 %v4882, %v4888
        %v4893 = vadd.f32 %v4883, %v4889
        %v4894 = vadd.f32 %v4884, %v4890
        %v4895 = vadd.f32 %v4885, %v4891
        %s4896 = sld [smem:[#allocation2 + $0x8b]]
        %v4897 = vstv %s4896
        %v4898 = vmul.f32 %v210, %v4897
        %v4899 = vmul.f32 %v211, %v4897
        %v4900 = vmul.f32 %v213, %v4897
        %v4901 = vmul.f32 %v214, %v4897
        %v4902 = vmul.f32 %v216, %v4897
        %v4903 = vmul.f32 %v217, %v4897
        %v4904 = vmul.f32 %v219, %v4897
        %v4905 = vmul.f32 %v220, %v4897
        %v4914 = vrot.slane %v4898, 1
        %v4915 = vrot.slane %v4899, 1
        %v4916 = vsel %vm251, %v4914, %v4915
        %v4917 = vrot.slane %v4900, 1
        %v4918 = vrot.slane %v4901, 1
        %v4919 = vsel %vm251, %v4917, %v4918
        %v4920 = vrot.slane %v4902, 1
        %v4921 = vrot.slane %v4903, 1
        %v4922 = vsel %vm251, %v4920, %v4921
        %v4923 = vrot.slane %v4904, 1
        %v4924 = vrot.slane %v4905, 1
        %v4925 = vsel %vm251, %v4923, %v4924
        %v4930 = vadd.f32 %v4892, %v4916
        %v4931 = vadd.f32 %v4893, %v4919
        %v4932 = vadd.f32 %v4894, %v4922
        %v4933 = vadd.f32 %v4895, %v4925
        %s4934 = sld [smem:[#allocation2 + $0x8c]]
        %v4935 = vstv %s4934
        %v4936 = vmul.f32 %v210, %v4935
        %v4937 = vmul.f32 %v211, %v4935
        %v4938 = vmul.f32 %v213, %v4935
        %v4939 = vmul.f32 %v214, %v4935
        %v4940 = vmul.f32 %v216, %v4935
        %v4941 = vmul.f32 %v217, %v4935
        %v4942 = vmul.f32 %v219, %v4935
        %v4943 = vmul.f32 %v220, %v4935
        %v4952 = vrot.slane %v4936, 2
        %v4953 = vrot.slane %v4937, 2
        %v4954 = vsel %vm290, %v4952, %v4953
        %v4955 = vrot.slane %v4938, 2
        %v4956 = vrot.slane %v4939, 2
        %v4957 = vsel %vm290, %v4955, %v4956
        %v4958 = vrot.slane %v4940, 2
        %v4959 = vrot.slane %v4941, 2
        %v4960 = vsel %vm290, %v4958, %v4959
        %v4961 = vrot.slane %v4942, 2
        %v4962 = vrot.slane %v4943, 2
        %v4963 = vsel %vm290, %v4961, %v4962
        %v4968 = vadd.f32 %v4930, %v4954
        %v4969 = vadd.f32 %v4931, %v4957
        %v4970 = vadd.f32 %v4932, %v4960
        %v4971 = vadd.f32 %v4933, %v4963
        %s4972 = sld [smem:[#allocation2 + $0x8d]]
        %v4973 = vstv %s4972
        %v4974 = vmul.f32 %v210, %v4973
        %v4975 = vmul.f32 %v211, %v4973
        %v4976 = vmul.f32 %v213, %v4973
        %v4977 = vmul.f32 %v214, %v4973
        %v4978 = vmul.f32 %v216, %v4973
        %v4979 = vmul.f32 %v217, %v4973
        %v4980 = vmul.f32 %v219, %v4973
        %v4981 = vmul.f32 %v220, %v4973
        %v4990 = vrot.slane %v4974, 3
        %v4991 = vrot.slane %v4975, 3
        %v4992 = vsel %vm329, %v4990, %v4991
        %v4993 = vrot.slane %v4976, 3
        %v4994 = vrot.slane %v4977, 3
        %v4995 = vsel %vm329, %v4993, %v4994
        %v4996 = vrot.slane %v4978, 3
        %v4997 = vrot.slane %v4979, 3
        %v4998 = vsel %vm329, %v4996, %v4997
        %v4999 = vrot.slane %v4980, 3
        %v5000 = vrot.slane %v4981, 3
        %v5001 = vsel %vm329, %v4999, %v5000
        %v5006 = vadd.f32 %v4968, %v4992
        %v5007 = vadd.f32 %v4969, %v4995
        %v5008 = vadd.f32 %v4970, %v4998
        %v5009 = vadd.f32 %v4971, %v5001
        %s5010 = sld [smem:[#allocation2 + $0x8e]]
        %v5011 = vstv %s5010
        %v5012 = vmul.f32 %v210, %v5011
        %v5013 = vmul.f32 %v211, %v5011
        %v5014 = vmul.f32 %v213, %v5011
        %v5015 = vmul.f32 %v214, %v5011
        %v5016 = vmul.f32 %v216, %v5011
        %v5017 = vmul.f32 %v217, %v5011
        %v5018 = vmul.f32 %v219, %v5011
        %v5019 = vmul.f32 %v220, %v5011
        %v5028 = vrot.slane %v5012, 4
        %v5029 = vrot.slane %v5013, 4
        %v5030 = vsel %vm368, %v5028, %v5029
        %v5031 = vrot.slane %v5014, 4
        %v5032 = vrot.slane %v5015, 4
        %v5033 = vsel %vm368, %v5031, %v5032
        %v5034 = vrot.slane %v5016, 4
        %v5035 = vrot.slane %v5017, 4
        %v5036 = vsel %vm368, %v5034, %v5035
        %v5037 = vrot.slane %v5018, 4
        %v5038 = vrot.slane %v5019, 4
        %v5039 = vsel %vm368, %v5037, %v5038
        %v5044 = vadd.f32 %v5006, %v5030
        %v5045 = vadd.f32 %v5007, %v5033
        %v5046 = vadd.f32 %v5008, %v5036
        %v5047 = vadd.f32 %v5009, %v5039
        %s5048 = sld [smem:[#allocation2 + $0x8f]]
        %v5049 = vstv %s5048
        %v5050 = vmul.f32 %v212, %v5049
        %v5051 = vmul.f32 %v215, %v5049
        %v5052 = vmul.f32 %v218, %v5049
        %v5053 = vmul.f32 %v221, %v5049
        %v5054 = vadd.f32 %v5044, %v5050
        %v5055 = vadd.f32 %v5045, %v5051
        %v5056 = vadd.f32 %v5046, %v5052
        %v5057 = vadd.f32 %v5047, %v5053
        %s5058 = sld [smem:[#allocation2 + $0x90]]
        %v5059 = vstv %s5058
        %v5060 = vmul.f32 %v212, %v5059
        %v5061 = vmul.f32 %v213, %v5059
        %v5062 = vmul.f32 %v215, %v5059
        %v5063 = vmul.f32 %v216, %v5059
        %v5064 = vmul.f32 %v218, %v5059
        %v5065 = vmul.f32 %v219, %v5059
        %v5066 = vmul.f32 %v221, %v5059
        %v5067 = vmul.f32 %v222, %v5059
        %v5076 = vrot.slane %v5060, 1
        %v5077 = vrot.slane %v5061, 1
        %v5078 = vsel %vm251, %v5076, %v5077
        %v5079 = vrot.slane %v5062, 1
        %v5080 = vrot.slane %v5063, 1
        %v5081 = vsel %vm251, %v5079, %v5080
        %v5082 = vrot.slane %v5064, 1
        %v5083 = vrot.slane %v5065, 1
        %v5084 = vsel %vm251, %v5082, %v5083
        %v5085 = vrot.slane %v5066, 1
        %v5086 = vrot.slane %v5067, 1
        %v5087 = vsel %vm251, %v5085, %v5086
        %v5092 = vadd.f32 %v5054, %v5078
        %v5093 = vadd.f32 %v5055, %v5081
        %v5094 = vadd.f32 %v5056, %v5084
        %v5095 = vadd.f32 %v5057, %v5087
        %s5096 = sld [smem:[#allocation2 + $0x91]]
        %v5097 = vstv %s5096
        %v5098 = vmul.f32 %v212, %v5097
        %v5099 = vmul.f32 %v213, %v5097
        %v5100 = vmul.f32 %v215, %v5097
        %v5101 = vmul.f32 %v216, %v5097
        %v5102 = vmul.f32 %v218, %v5097
        %v5103 = vmul.f32 %v219, %v5097
        %v5104 = vmul.f32 %v221, %v5097
        %v5105 = vmul.f32 %v222, %v5097
        %v5114 = vrot.slane %v5098, 2
        %v5115 = vrot.slane %v5099, 2
        %v5116 = vsel %vm290, %v5114, %v5115
        %v5117 = vrot.slane %v5100, 2
        %v5118 = vrot.slane %v5101, 2
        %v5119 = vsel %vm290, %v5117, %v5118
        %v5120 = vrot.slane %v5102, 2
        %v5121 = vrot.slane %v5103, 2
        %v5122 = vsel %vm290, %v5120, %v5121
        %v5123 = vrot.slane %v5104, 2
        %v5124 = vrot.slane %v5105, 2
        %v5125 = vsel %vm290, %v5123, %v5124
        %v5130 = vadd.f32 %v5092, %v5116
        %v5131 = vadd.f32 %v5093, %v5119
        %v5132 = vadd.f32 %v5094, %v5122
        %v5133 = vadd.f32 %v5095, %v5125
        %s5134 = sld [smem:[#allocation2 + $0x92]]
        %v5135 = vstv %s5134
        %v5136 = vmul.f32 %v212, %v5135
        %v5137 = vmul.f32 %v213, %v5135
        %v5138 = vmul.f32 %v215, %v5135
        %v5139 = vmul.f32 %v216, %v5135
        %v5140 = vmul.f32 %v218, %v5135
        %v5141 = vmul.f32 %v219, %v5135
        %v5142 = vmul.f32 %v221, %v5135
        %v5143 = vmul.f32 %v222, %v5135
        %v5152 = vrot.slane %v5136, 3
        %v5153 = vrot.slane %v5137, 3
        %v5154 = vsel %vm329, %v5152, %v5153
        %v5155 = vrot.slane %v5138, 3
        %v5156 = vrot.slane %v5139, 3
        %v5157 = vsel %vm329, %v5155, %v5156
        %v5158 = vrot.slane %v5140, 3
        %v5159 = vrot.slane %v5141, 3
        %v5160 = vsel %vm329, %v5158, %v5159
        %v5161 = vrot.slane %v5142, 3
        %v5162 = vrot.slane %v5143, 3
        %v5163 = vsel %vm329, %v5161, %v5162
        %v5168 = vadd.f32 %v5130, %v5154
        %v5169 = vadd.f32 %v5131, %v5157
        %v5170 = vadd.f32 %v5132, %v5160
        %v5171 = vadd.f32 %v5133, %v5163
        %s5172 = sld [smem:[#allocation2 + $0x93]]
        %v5173 = vstv %s5172
        %v5174 = vmul.f32 %v212, %v5173
        %v5175 = vmul.f32 %v213, %v5173
        %v5176 = vmul.f32 %v215, %v5173
        %v5177 = vmul.f32 %v216, %v5173
        %v5178 = vmul.f32 %v218, %v5173
        %v5179 = vmul.f32 %v219, %v5173
        %v5180 = vmul.f32 %v221, %v5173
        %v5181 = vmul.f32 %v222, %v5173
        %v5190 = vrot.slane %v5174, 4
        %v5191 = vrot.slane %v5175, 4
        %v5192 = vsel %vm368, %v5190, %v5191
        %v5193 = vrot.slane %v5176, 4
        %v5194 = vrot.slane %v5177, 4
        %v5195 = vsel %vm368, %v5193, %v5194
        %v5196 = vrot.slane %v5178, 4
        %v5197 = vrot.slane %v5179, 4
        %v5198 = vsel %vm368, %v5196, %v5197
        %v5199 = vrot.slane %v5180, 4
        %v5200 = vrot.slane %v5181, 4
        %v5201 = vsel %vm368, %v5199, %v5200
        %v5206 = vadd.f32 %v5168, %v5192
        %v5207 = vadd.f32 %v5169, %v5195
        %v5208 = vadd.f32 %v5170, %v5198
        %v5209 = vadd.f32 %v5171, %v5201
        %s5210 = sld [smem:[#allocation2 + $0x94]]
        %v5211 = vstv %s5210
        %v5212 = vmul.f32 %v212, %v5211
        %v5213 = vmul.f32 %v213, %v5211
        %v5214 = vmul.f32 %v215, %v5211
        %v5215 = vmul.f32 %v216, %v5211
        %v5216 = vmul.f32 %v218, %v5211
        %v5217 = vmul.f32 %v219, %v5211
        %v5218 = vmul.f32 %v221, %v5211
        %v5219 = vmul.f32 %v222, %v5211
        %v5228 = vrot.slane %v5212, 5
        %v5229 = vrot.slane %v5213, 5
        %v5230 = vsel %vm407, %v5228, %v5229
        %v5231 = vrot.slane %v5214, 5
        %v5232 = vrot.slane %v5215, 5
        %v5233 = vsel %vm407, %v5231, %v5232
        %v5234 = vrot.slane %v5216, 5
        %v5235 = vrot.slane %v5217, 5
        %v5236 = vsel %vm407, %v5234, %v5235
        %v5237 = vrot.slane %v5218, 5
        %v5238 = vrot.slane %v5219, 5
        %v5239 = vsel %vm407, %v5237, %v5238
        %v5244 = vadd.f32 %v5206, %v5230
        %v5245 = vadd.f32 %v5207, %v5233
        %v5246 = vadd.f32 %v5208, %v5236
        %v5247 = vadd.f32 %v5209, %v5239
        %s5248 = sld [smem:[#allocation2 + $0x95]]
        %v5249 = vstv %s5248
        %v5250 = vmul.f32 %v212, %v5249
        %v5251 = vmul.f32 %v213, %v5249
        %v5252 = vmul.f32 %v215, %v5249
        %v5253 = vmul.f32 %v216, %v5249
        %v5254 = vmul.f32 %v218, %v5249
        %v5255 = vmul.f32 %v219, %v5249
        %v5256 = vmul.f32 %v221, %v5249
        %v5257 = vmul.f32 %v222, %v5249
        %v5266 = vrot.slane %v5250, 6
        %v5267 = vrot.slane %v5251, 6
        %v5268 = vsel %vm446, %v5266, %v5267
        %v5269 = vrot.slane %v5252, 6
        %v5270 = vrot.slane %v5253, 6
        %v5271 = vsel %vm446, %v5269, %v5270
        %v5272 = vrot.slane %v5254, 6
        %v5273 = vrot.slane %v5255, 6
        %v5274 = vsel %vm446, %v5272, %v5273
        %v5275 = vrot.slane %v5256, 6
        %v5276 = vrot.slane %v5257, 6
        %v5277 = vsel %vm446, %v5275, %v5276
        %v5282 = vadd.f32 %v5244, %v5268
        %v5283 = vadd.f32 %v5245, %v5271
        %v5284 = vadd.f32 %v5246, %v5274
        %v5285 = vadd.f32 %v5247, %v5277
        %s5286 = sld [smem:[#allocation2 + $0x96]]
        %v5287 = vstv %s5286
        %v5288 = vmul.f32 %v212, %v5287
        %v5289 = vmul.f32 %v213, %v5287
        %v5290 = vmul.f32 %v215, %v5287
        %v5291 = vmul.f32 %v216, %v5287
        %v5292 = vmul.f32 %v218, %v5287
        %v5293 = vmul.f32 %v219, %v5287
        %v5294 = vmul.f32 %v221, %v5287
        %v5295 = vmul.f32 %v222, %v5287
        %v5304 = vrot.slane %v5288, 7
        %v5305 = vrot.slane %v5289, 7
        %v5306 = vsel %vm485, %v5304, %v5305
        %v5307 = vrot.slane %v5290, 7
        %v5308 = vrot.slane %v5291, 7
        %v5309 = vsel %vm485, %v5307, %v5308
        %v5310 = vrot.slane %v5292, 7
        %v5311 = vrot.slane %v5293, 7
        %v5312 = vsel %vm485, %v5310, %v5311
        %v5313 = vrot.slane %v5294, 7
        %v5314 = vrot.slane %v5295, 7
        %v5315 = vsel %vm485, %v5313, %v5314
        %v5320 = vadd.f32 %v5282, %v5306
        %v5321 = vadd.f32 %v5283, %v5309
        %v5322 = vadd.f32 %v5284, %v5312
        %v5323 = vadd.f32 %v5285, %v5315
        %s5324 = sld [smem:[#allocation2 + $0x97]]
        %v5325 = vstv %s5324
        %v5326 = vmul.f32 %v213, %v5325
        %v5327 = vmul.f32 %v216, %v5325
        %v5328 = vmul.f32 %v219, %v5325
        %v5329 = vmul.f32 %v222, %v5325
        %v5330 = vadd.f32 %v5320, %v5326
        %v5331 = vadd.f32 %v5321, %v5327
        %v5332 = vadd.f32 %v5322, %v5328
        %v5333 = vadd.f32 %v5323, %v5329
        %s5334 = sld [smem:[#allocation2 + $0x98]]
        %v5335 = vstv %s5334
        %v5336 = vmul.f32 %v213, %v5335
        %v5337 = vmul.f32 %v214, %v5335
        %v5338 = vmul.f32 %v216, %v5335
        %v5339 = vmul.f32 %v217, %v5335
        %v5340 = vmul.f32 %v219, %v5335
        %v5341 = vmul.f32 %v220, %v5335
        %v5342 = vmul.f32 %v222, %v5335
        %v5343 = vmul.f32 %v223, %v5335
        %v5352 = vrot.slane %v5336, 1
        %v5353 = vrot.slane %v5337, 1
        %v5354 = vsel %vm251, %v5352, %v5353
        %v5355 = vrot.slane %v5338, 1
        %v5356 = vrot.slane %v5339, 1
        %v5357 = vsel %vm251, %v5355, %v5356
        %v5358 = vrot.slane %v5340, 1
        %v5359 = vrot.slane %v5341, 1
        %v5360 = vsel %vm251, %v5358, %v5359
        %v5361 = vrot.slane %v5342, 1
        %v5362 = vrot.slane %v5343, 1
        %v5363 = vsel %vm251, %v5361, %v5362
        %v5368 = vadd.f32 %v5330, %v5354
        %v5369 = vadd.f32 %v5331, %v5357
        %v5370 = vadd.f32 %v5332, %v5360
        %v5371 = vadd.f32 %v5333, %v5363
        %s5372 = sld [smem:[#allocation2 + $0x99]]
        %v5373 = vstv %s5372
        %v5374 = vmul.f32 %v213, %v5373
        %v5375 = vmul.f32 %v214, %v5373
        %v5376 = vmul.f32 %v216, %v5373
        %v5377 = vmul.f32 %v217, %v5373
        %v5378 = vmul.f32 %v219, %v5373
        %v5379 = vmul.f32 %v220, %v5373
        %v5380 = vmul.f32 %v222, %v5373
        %v5381 = vmul.f32 %v223, %v5373
        %v5390 = vrot.slane %v5374, 2
        %v5391 = vrot.slane %v5375, 2
        %v5392 = vsel %vm290, %v5390, %v5391
        %v5393 = vrot.slane %v5376, 2
        %v5394 = vrot.slane %v5377, 2
        %v5395 = vsel %vm290, %v5393, %v5394
        %v5396 = vrot.slane %v5378, 2
        %v5397 = vrot.slane %v5379, 2
        %v5398 = vsel %vm290, %v5396, %v5397
        %v5399 = vrot.slane %v5380, 2
        %v5400 = vrot.slane %v5381, 2
        %v5401 = vsel %vm290, %v5399, %v5400
        %v5406 = vadd.f32 %v5368, %v5392
        %v5407 = vadd.f32 %v5369, %v5395
        %v5408 = vadd.f32 %v5370, %v5398
        %v5409 = vadd.f32 %v5371, %v5401
        %s5410 = sld [smem:[#allocation2 + $0x9a]]
        %v5411 = vstv %s5410
        %v5412 = vmul.f32 %v213, %v5411
        %v5413 = vmul.f32 %v214, %v5411
        %v5414 = vmul.f32 %v216, %v5411
        %v5415 = vmul.f32 %v217, %v5411
        %v5416 = vmul.f32 %v219, %v5411
        %v5417 = vmul.f32 %v220, %v5411
        %v5418 = vmul.f32 %v222, %v5411
        %v5419 = vmul.f32 %v223, %v5411
        %v5428 = vrot.slane %v5412, 3
        %v5429 = vrot.slane %v5413, 3
        %v5430 = vsel %vm329, %v5428, %v5429
        %v5431 = vrot.slane %v5414, 3
        %v5432 = vrot.slane %v5415, 3
        %v5433 = vsel %vm329, %v5431, %v5432
        %v5434 = vrot.slane %v5416, 3
        %v5435 = vrot.slane %v5417, 3
        %v5436 = vsel %vm329, %v5434, %v5435
        %v5437 = vrot.slane %v5418, 3
        %v5438 = vrot.slane %v5419, 3
        %v5439 = vsel %vm329, %v5437, %v5438
        %v5444 = vadd.f32 %v5406, %v5430
        %v5445 = vadd.f32 %v5407, %v5433
        %v5446 = vadd.f32 %v5408, %v5436
        %v5447 = vadd.f32 %v5409, %v5439
        %s5448 = sld [smem:[#allocation2 + $0x9b]]
        %v5449 = vstv %s5448
        %v5450 = vmul.f32 %v213, %v5449
        %v5451 = vmul.f32 %v214, %v5449
        %v5452 = vmul.f32 %v216, %v5449
        %v5453 = vmul.f32 %v217, %v5449
        %v5454 = vmul.f32 %v219, %v5449
        %v5455 = vmul.f32 %v220, %v5449
        %v5456 = vmul.f32 %v222, %v5449
        %v5457 = vmul.f32 %v223, %v5449
        %v5466 = vrot.slane %v5450, 4
        %v5467 = vrot.slane %v5451, 4
        %v5468 = vsel %vm368, %v5466, %v5467
        %v5469 = vrot.slane %v5452, 4
        %v5470 = vrot.slane %v5453, 4
        %v5471 = vsel %vm368, %v5469, %v5470
        %v5472 = vrot.slane %v5454, 4
        %v5473 = vrot.slane %v5455, 4
        %v5474 = vsel %vm368, %v5472, %v5473
        %v5475 = vrot.slane %v5456, 4
        %v5476 = vrot.slane %v5457, 4
        %v5477 = vsel %vm368, %v5475, %v5476
        %v5482 = vadd.f32 %v5444, %v5468
        %v5483 = vadd.f32 %v5445, %v5471
        %v5484 = vadd.f32 %v5446, %v5474
        %v5485 = vadd.f32 %v5447, %v5477
        %s5486 = sld [smem:[#allocation2 + $0x9c]]
        %v5487 = vstv %s5486
        %v5488 = vmul.f32 %v215, %v5487
        %v5489 = vmul.f32 %v218, %v5487
        %v5490 = vmul.f32 %v221, %v5487
        %v5491 = vmul.f32 %v224, %v5487
        %v5492 = vadd.f32 %v5482, %v5488
        %v5493 = vadd.f32 %v5483, %v5489
        %v5494 = vadd.f32 %v5484, %v5490
        %v5495 = vadd.f32 %v5485, %v5491
        %s5496 = sld [smem:[#allocation2 + $0x9d]]
        %v5497 = vstv %s5496
        %v5498 = vmul.f32 %v215, %v5497
        %v5499 = vmul.f32 %v216, %v5497
        %v5500 = vmul.f32 %v218, %v5497
        %v5501 = vmul.f32 %v219, %v5497
        %v5502 = vmul.f32 %v221, %v5497
        %v5503 = vmul.f32 %v222, %v5497
        %v5504 = vmul.f32 %v224, %v5497
        %v5505 = vmul.f32 %v225, %v5497
        %v5514 = vrot.slane %v5498, 1
        %v5515 = vrot.slane %v5499, 1
        %v5516 = vsel %vm251, %v5514, %v5515
        %v5517 = vrot.slane %v5500, 1
        %v5518 = vrot.slane %v5501, 1
        %v5519 = vsel %vm251, %v5517, %v5518
        %v5520 = vrot.slane %v5502, 1
        %v5521 = vrot.slane %v5503, 1
        %v5522 = vsel %vm251, %v5520, %v5521
        %v5523 = vrot.slane %v5504, 1
        %v5524 = vrot.slane %v5505, 1
        %v5525 = vsel %vm251, %v5523, %v5524
        %v5530 = vadd.f32 %v5492, %v5516
        %v5531 = vadd.f32 %v5493, %v5519
        %v5532 = vadd.f32 %v5494, %v5522
        %v5533 = vadd.f32 %v5495, %v5525
        %s5534 = sld [smem:[#allocation2 + $0x9e]]
        %v5535 = vstv %s5534
        %v5536 = vmul.f32 %v215, %v5535
        %v5537 = vmul.f32 %v216, %v5535
        %v5538 = vmul.f32 %v218, %v5535
        %v5539 = vmul.f32 %v219, %v5535
        %v5540 = vmul.f32 %v221, %v5535
        %v5541 = vmul.f32 %v222, %v5535
        %v5542 = vmul.f32 %v224, %v5535
        %v5543 = vmul.f32 %v225, %v5535
        %v5552 = vrot.slane %v5536, 2
        %v5553 = vrot.slane %v5537, 2
        %v5554 = vsel %vm290, %v5552, %v5553
        %v5555 = vrot.slane %v5538, 2
        %v5556 = vrot.slane %v5539, 2
        %v5557 = vsel %vm290, %v5555, %v5556
        %v5558 = vrot.slane %v5540, 2
        %v5559 = vrot.slane %v5541, 2
        %v5560 = vsel %vm290, %v5558, %v5559
        %v5561 = vrot.slane %v5542, 2
        %v5562 = vrot.slane %v5543, 2
        %v5563 = vsel %vm290, %v5561, %v5562
        %v5568 = vadd.f32 %v5530, %v5554
        %v5569 = vadd.f32 %v5531, %v5557
        %v5570 = vadd.f32 %v5532, %v5560
        %v5571 = vadd.f32 %v5533, %v5563
        %s5572 = sld [smem:[#allocation2 + $0x9f]]
        %v5573 = vstv %s5572
        %v5574 = vmul.f32 %v215, %v5573
        %v5575 = vmul.f32 %v216, %v5573
        %v5576 = vmul.f32 %v218, %v5573
        %v5577 = vmul.f32 %v219, %v5573
        %v5578 = vmul.f32 %v221, %v5573
        %v5579 = vmul.f32 %v222, %v5573
        %v5580 = vmul.f32 %v224, %v5573
        %v5581 = vmul.f32 %v225, %v5573
        %v5590 = vrot.slane %v5574, 3
        %v5591 = vrot.slane %v5575, 3
        %v5592 = vsel %vm329, %v5590, %v5591
        %v5593 = vrot.slane %v5576, 3
        %v5594 = vrot.slane %v5577, 3
        %v5595 = vsel %vm329, %v5593, %v5594
        %v5596 = vrot.slane %v5578, 3
        %v5597 = vrot.slane %v5579, 3
        %v5598 = vsel %vm329, %v5596, %v5597
        %v5599 = vrot.slane %v5580, 3
        %v5600 = vrot.slane %v5581, 3
        %v5601 = vsel %vm329, %v5599, %v5600
        %v5606 = vadd.f32 %v5568, %v5592
        %v5607 = vadd.f32 %v5569, %v5595
        %v5608 = vadd.f32 %v5570, %v5598
        %v5609 = vadd.f32 %v5571, %v5601
        %s5610 = sld [smem:[#allocation2 + $0xa0]]
        %v5611 = vstv %s5610
        %v5612 = vmul.f32 %v215, %v5611
        %v5613 = vmul.f32 %v216, %v5611
        %v5614 = vmul.f32 %v218, %v5611
        %v5615 = vmul.f32 %v219, %v5611
        %v5616 = vmul.f32 %v221, %v5611
        %v5617 = vmul.f32 %v222, %v5611
        %v5618 = vmul.f32 %v224, %v5611
        %v5619 = vmul.f32 %v225, %v5611
        %v5628 = vrot.slane %v5612, 4
        %v5629 = vrot.slane %v5613, 4
        %v5630 = vsel %vm368, %v5628, %v5629
        %v5631 = vrot.slane %v5614, 4
        %v5632 = vrot.slane %v5615, 4
        %v5633 = vsel %vm368, %v5631, %v5632
        %v5634 = vrot.slane %v5616, 4
        %v5635 = vrot.slane %v5617, 4
        %v5636 = vsel %vm368, %v5634, %v5635
        %v5637 = vrot.slane %v5618, 4
        %v5638 = vrot.slane %v5619, 4
        %v5639 = vsel %vm368, %v5637, %v5638
        %v5644 = vadd.f32 %v5606, %v5630
        %v5645 = vadd.f32 %v5607, %v5633
        %v5646 = vadd.f32 %v5608, %v5636
        %v5647 = vadd.f32 %v5609, %v5639
        %s5648 = sld [smem:[#allocation2 + $0xa1]]
        %v5649 = vstv %s5648
        %v5650 = vmul.f32 %v215, %v5649
        %v5651 = vmul.f32 %v216, %v5649
        %v5652 = vmul.f32 %v218, %v5649
        %v5653 = vmul.f32 %v219, %v5649
        %v5654 = vmul.f32 %v221, %v5649
        %v5655 = vmul.f32 %v222, %v5649
        %v5656 = vmul.f32 %v224, %v5649
        %v5657 = vmul.f32 %v225, %v5649
        %v5666 = vrot.slane %v5650, 5
        %v5667 = vrot.slane %v5651, 5
        %v5668 = vsel %vm407, %v5666, %v5667
        %v5669 = vrot.slane %v5652, 5
        %v5670 = vrot.slane %v5653, 5
        %v5671 = vsel %vm407, %v5669, %v5670
        %v5672 = vrot.slane %v5654, 5
        %v5673 = vrot.slane %v5655, 5
        %v5674 = vsel %vm407, %v5672, %v5673
        %v5675 = vrot.slane %v5656, 5
        %v5676 = vrot.slane %v5657, 5
        %v5677 = vsel %vm407, %v5675, %v5676
        %v5682 = vadd.f32 %v5644, %v5668
        %v5683 = vadd.f32 %v5645, %v5671
        %v5684 = vadd.f32 %v5646, %v5674
        %v5685 = vadd.f32 %v5647, %v5677
        %s5686 = sld [smem:[#allocation2 + $0xa2]]
        %v5687 = vstv %s5686
        %v5688 = vmul.f32 %v215, %v5687
        %v5689 = vmul.f32 %v216, %v5687
        %v5690 = vmul.f32 %v218, %v5687
        %v5691 = vmul.f32 %v219, %v5687
        %v5692 = vmul.f32 %v221, %v5687
        %v5693 = vmul.f32 %v222, %v5687
        %v5694 = vmul.f32 %v224, %v5687
        %v5695 = vmul.f32 %v225, %v5687
        %v5704 = vrot.slane %v5688, 6
        %v5705 = vrot.slane %v5689, 6
        %v5706 = vsel %vm446, %v5704, %v5705
        %v5707 = vrot.slane %v5690, 6
        %v5708 = vrot.slane %v5691, 6
        %v5709 = vsel %vm446, %v5707, %v5708
        %v5710 = vrot.slane %v5692, 6
        %v5711 = vrot.slane %v5693, 6
        %v5712 = vsel %vm446, %v5710, %v5711
        %v5713 = vrot.slane %v5694, 6
        %v5714 = vrot.slane %v5695, 6
        %v5715 = vsel %vm446, %v5713, %v5714
        %v5720 = vadd.f32 %v5682, %v5706
        %v5721 = vadd.f32 %v5683, %v5709
        %v5722 = vadd.f32 %v5684, %v5712
        %v5723 = vadd.f32 %v5685, %v5715
        %s5724 = sld [smem:[#allocation2 + $0xa3]]
        %v5725 = vstv %s5724
        %v5726 = vmul.f32 %v215, %v5725
        %v5727 = vmul.f32 %v216, %v5725
        %v5728 = vmul.f32 %v218, %v5725
        %v5729 = vmul.f32 %v219, %v5725
        %v5730 = vmul.f32 %v221, %v5725
        %v5731 = vmul.f32 %v222, %v5725
        %v5732 = vmul.f32 %v224, %v5725
        %v5733 = vmul.f32 %v225, %v5725
        %v5742 = vrot.slane %v5726, 7
        %v5743 = vrot.slane %v5727, 7
        %v5744 = vsel %vm485, %v5742, %v5743
        %v5745 = vrot.slane %v5728, 7
        %v5746 = vrot.slane %v5729, 7
        %v5747 = vsel %vm485, %v5745, %v5746
        %v5748 = vrot.slane %v5730, 7
        %v5749 = vrot.slane %v5731, 7
        %v5750 = vsel %vm485, %v5748, %v5749
        %v5751 = vrot.slane %v5732, 7
        %v5752 = vrot.slane %v5733, 7
        %v5753 = vsel %vm485, %v5751, %v5752
        %v5758 = vadd.f32 %v5720, %v5744
        %v5759 = vadd.f32 %v5721, %v5747
        %v5760 = vadd.f32 %v5722, %v5750
        %v5761 = vadd.f32 %v5723, %v5753
        %s5762 = sld [smem:[#allocation2 + $0xa4]]
        %v5763 = vstv %s5762
        %v5764 = vmul.f32 %v216, %v5763
        %v5765 = vmul.f32 %v219, %v5763
        %v5766 = vmul.f32 %v222, %v5763
        %v5767 = vmul.f32 %v225, %v5763
        %v5768 = vadd.f32 %v5758, %v5764
        %v5769 = vadd.f32 %v5759, %v5765
        %v5770 = vadd.f32 %v5760, %v5766
        %v5771 = vadd.f32 %v5761, %v5767
        %s5772 = sld [smem:[#allocation2 + $0xa5]]
        %v5773 = vstv %s5772
        %v5774 = vmul.f32 %v216, %v5773
        %v5775 = vmul.f32 %v217, %v5773
        %v5776 = vmul.f32 %v219, %v5773
        %v5777 = vmul.f32 %v220, %v5773
        %v5778 = vmul.f32 %v222, %v5773
        %v5779 = vmul.f32 %v223, %v5773
        %v5780 = vmul.f32 %v225, %v5773
        %v5781 = vmul.f32 %v226, %v5773
        %v5790 = vrot.slane %v5774, 1
        %v5791 = vrot.slane %v5775, 1
        %v5792 = vsel %vm251, %v5790, %v5791
        %v5793 = vrot.slane %v5776, 1
        %v5794 = vrot.slane %v5777, 1
        %v5795 = vsel %vm251, %v5793, %v5794
        %v5796 = vrot.slane %v5778, 1
        %v5797 = vrot.slane %v5779, 1
        %v5798 = vsel %vm251, %v5796, %v5797
        %v5799 = vrot.slane %v5780, 1
        %v5800 = vrot.slane %v5781, 1
        %v5801 = vsel %vm251, %v5799, %v5800
        %v5806 = vadd.f32 %v5768, %v5792
        %v5807 = vadd.f32 %v5769, %v5795
        %v5808 = vadd.f32 %v5770, %v5798
        %v5809 = vadd.f32 %v5771, %v5801
        %s5810 = sld [smem:[#allocation2 + $0xa6]]
        %v5811 = vstv %s5810
        %v5812 = vmul.f32 %v216, %v5811
        %v5813 = vmul.f32 %v217, %v5811
        %v5814 = vmul.f32 %v219, %v5811
        %v5815 = vmul.f32 %v220, %v5811
        %v5816 = vmul.f32 %v222, %v5811
        %v5817 = vmul.f32 %v223, %v5811
        %v5818 = vmul.f32 %v225, %v5811
        %v5819 = vmul.f32 %v226, %v5811
        %v5828 = vrot.slane %v5812, 2
        %v5829 = vrot.slane %v5813, 2
        %v5830 = vsel %vm290, %v5828, %v5829
        %v5831 = vrot.slane %v5814, 2
        %v5832 = vrot.slane %v5815, 2
        %v5833 = vsel %vm290, %v5831, %v5832
        %v5834 = vrot.slane %v5816, 2
        %v5835 = vrot.slane %v5817, 2
        %v5836 = vsel %vm290, %v5834, %v5835
        %v5837 = vrot.slane %v5818, 2
        %v5838 = vrot.slane %v5819, 2
        %v5839 = vsel %vm290, %v5837, %v5838
        %v5844 = vadd.f32 %v5806, %v5830
        %v5845 = vadd.f32 %v5807, %v5833
        %v5846 = vadd.f32 %v5808, %v5836
        %v5847 = vadd.f32 %v5809, %v5839
        %s5848 = sld [smem:[#allocation2 + $0xa7]]
        %v5849 = vstv %s5848
        %v5850 = vmul.f32 %v216, %v5849
        %v5851 = vmul.f32 %v217, %v5849
        %v5852 = vmul.f32 %v219, %v5849
        %v5853 = vmul.f32 %v220, %v5849
        %v5854 = vmul.f32 %v222, %v5849
        %v5855 = vmul.f32 %v223, %v5849
        %v5856 = vmul.f32 %v225, %v5849
        %v5857 = vmul.f32 %v226, %v5849
        %v5866 = vrot.slane %v5850, 3
        %v5867 = vrot.slane %v5851, 3
        %v5868 = vsel %vm329, %v5866, %v5867
        %v5869 = vrot.slane %v5852, 3
        %v5870 = vrot.slane %v5853, 3
        %v5871 = vsel %vm329, %v5869, %v5870
        %v5872 = vrot.slane %v5854, 3
        %v5873 = vrot.slane %v5855, 3
        %v5874 = vsel %vm329, %v5872, %v5873
        %v5875 = vrot.slane %v5856, 3
        %v5876 = vrot.slane %v5857, 3
        %v5877 = vsel %vm329, %v5875, %v5876
        %v5882 = vadd.f32 %v5844, %v5868
        %v5883 = vadd.f32 %v5845, %v5871
        %v5884 = vadd.f32 %v5846, %v5874
        %v5885 = vadd.f32 %v5847, %v5877
        %s5886 = sld [smem:[#allocation2 + $0xa8]]
        %v5887 = vstv %s5886
        %v5888 = vmul.f32 %v216, %v5887
        %v5889 = vmul.f32 %v217, %v5887
        %v5890 = vmul.f32 %v219, %v5887
        %v5891 = vmul.f32 %v220, %v5887
        %v5892 = vmul.f32 %v222, %v5887
        %v5893 = vmul.f32 %v223, %v5887
        %v5894 = vmul.f32 %v225, %v5887
        %v5895 = vmul.f32 %v226, %v5887
        %v5904 = vrot.slane %v5888, 4
        %v5905 = vrot.slane %v5889, 4
        %v5906 = vsel %vm368, %v5904, %v5905
        %v5907 = vrot.slane %v5890, 4
        %v5908 = vrot.slane %v5891, 4
        %v5909 = vsel %vm368, %v5907, %v5908
        %v5910 = vrot.slane %v5892, 4
        %v5911 = vrot.slane %v5893, 4
        %v5912 = vsel %vm368, %v5910, %v5911
        %v5913 = vrot.slane %v5894, 4
        %v5914 = vrot.slane %v5895, 4
        %v5915 = vsel %vm368, %v5913, %v5914
        %v5920 = vadd.f32 %v5882, %v5906
        %v5921 = vadd.f32 %v5883, %v5909
        %v5922 = vadd.f32 %v5884, %v5912
        %v5923 = vadd.f32 %v5885, %v5915
        %vm5924 = vcmask 15360
        %5925 = vst.msk [vmem:[%s174] sm:$0xff] %vm5924, %v5920
        %5926 = vst.msk [vmem:[%s174 + $0x8] sm:$0xff] %vm5924, %v5921
        %5927 = vst.msk [vmem:[%s174 + $0x10] sm:$0xff] %vm5924, %v5922
        %5928 = vst.msk [vmem:[%s174 + $0x18] sm:$0xff] %vm5924, %v5923
        %s5929 = smul.u32 4, %s19
        %p5930 = scmp.lt.s32.totalorder %s5929, 7
        %s5931 = scalar_select %p5930, %s5929, 7
        %p5932 = scmp.lt.s32.totalorder %s18, 0
        %s5933 = scalar_select %p5932, %s18, 0
        %s5934 = sadd.s32 %s5933, %s5931
        %s5935 = smul.addr %s5934, 8
        %s5936 = scalar_lea.vmem %s2, %s5935
        // Predicated region
        $region33: #{generator_forward.1} parent=27 // pred_check
          %p5937 = pneg %p93
        $region34: #{generator_forward.1} parent=27 // pred_check_branch
          %5939 = sbr.rel (%p5937) target = $region36
        $region35: #{generator_forward.1} parent=27 // pred_region
          %s5940 = smul.u32 4, %s19
        $region36: #{generator_forward.1} parent=27 // pred_fallthru
          _
      $region28: #{generator_forward.1} parent=5 // pred_fallthru
        _
      %p5941 = scmp.le.s32.totalorder 2, %s9
      // Predicated region
      $region37: #{generator_forward.1} parent=5 // pred_check
        %p5942 = pneg %p5941
      $region38: #{generator_forward.1} parent=5 // pred_check_branch
        %5944 = sbr.rel (%p5942) target = $region40
      $region39: #{generator_forward.1} parent=5 // pred_region
        %s5945 = ssub.s32 %s9, 2
        // Predicated region
        $region41: #{generator_forward.1} parent=39 // pred_check
          %p5946 = pneg %p99
        $region42: #{generator_forward.1} parent=39 // pred_check_branch
          %5948 = sbr.rel (%p5946) target = $region44
        $region43: #{generator_forward.1} parent=39 // pred_region
          %s5949 = smul.u32 4, %s21
          %p5950 = scmp.lt.s32.totalorder %s5949, 7
          %s5951 = scalar_select %p5950, %s5949, 7
          %p5952 = scmp.lt.s32.totalorder %s20, 0
          %s5953 = scalar_select %p5952, %s20, 0
          %s5954 = sadd.s32 %s5953, %s5951
          %s5955 = smul.addr %s5954, 8
          %s5956 = scalar_lea.vmem %s2, %s5955
        $region44: #{generator_forward.1} parent=39 // pred_fallthru
          _
      $region40: #{generator_forward.1} parent=5 // pred_fallthru
        _
    $region6: #{generator_forward.1} parent=1 // loop_footer
      %s13 = sadd.s32 1, %s9
    $region7: #{generator_forward.1} parent=1 // loop_footer_branch
      %8 = sbr.rel target = $region3
    $region8: #{generator_forward.1} parent=1 // loop_exit
      _
    %5957 = vsyncpa [#allocation3], 1
    %s5958 = scalar_lea.sflag [#allocation3], 1
    %5959 = vsyncpa %s5958, 1

</llo_original>
